<compile_context>
chip_gen: v5e
topology: v5e:2x2
jax: 0.10.0
libtpu: 0.0.40
codegen_flags: <defaults>
</compile_context>

<pallas_src>
import math

import jax
import jax.numpy as jnp
from jax.experimental import pallas as pl
from jax.experimental.pallas import tpu as pltpu

ACT_DTYPE = jnp.float32      # activations / statistics
W_DTYPE = jnp.bfloat16       # matmul weight operands (MXU-native on v6e/v7x)
LN_EPS = 1e-12               # BERT layer_norm_eps default

# Packing layout of the (rows, H) vector stack: rows 0..1 = embedding LN g/b,
# then 10 rows per layer at base = 2 + 10*l with the offsets below.
_VEC_ROWS_PER_LAYER = 10
_R_SA_O_B, _R_SA_LN_G, _R_SA_LN_B = 0, 1, 2
_R_FF_O_B, _R_FF_LN_G, _R_FF_LN_B = 3, 4, 5
_R_CA_Q_B, _R_CA_O_B, _R_CA_LN_G, _R_CA_LN_B = 6, 7, 8, 9


# ---------------------------------------------------------------------------
# Fused Pallas kernel (whole forward, one pallas_call, single grid step)
# ---------------------------------------------------------------------------
def _make_qformer_kernel(cfg, has_cross_flags, B, Nt):
    H = cfg["hidden_size"]
    nh = cfg["num_heads"]
    dh = H // nh
    Nq = cfg["num_query_token"]
    inv_sqrt_dh = 1.0 / math.sqrt(dh)
    inv_sqrt2 = 1.0 / math.sqrt(2.0)

    def _ln(x, g, b):
        # LayerNorm over last dim, f32 statistics, BERT eps.
        mean = jnp.mean(x, axis=-1, keepdims=True)
        xc = x - mean
        var = jnp.mean(xc * xc, axis=-1, keepdims=True)
        return xc * jax.lax.rsqrt(var + LN_EPS) * g + b

    def _gelu(x):
        # exact erf-GELU (parity with HF "gelu")
        return 0.5 * x * (1.0 + jax.lax.erf(x * inv_sqrt2))

    def kernel(img_ref, qt_ref, vec_h_ref, b3h_ref, bi_ref, b2h_ref, projb_ref,
               sa_qkv_w_ref, sa_o_w_ref, ffn_i_w_ref, ffn_o_w_ref,
               ca_q_w_ref, ca_kv_w_ref, ca_o_w_ref, proj_w_ref, out_ref):

        def vh(row):                          # (1, H) f32 view of the vector stack
            return vec_h_ref[row:row + 1, :]

        def dense(x, w, b):                   # bf16 operands, f32 accumulation
            return jnp.dot(x.astype(W_DTYPE), w,
                           preferred_element_type=jnp.float32) + b

        # Per-head feature masks over the lane (H) axis.  Head separation uses
        # these masks instead of 16-lane slices + lane concat: masked columns
        # contribute exactly zero to the per-head contraction, so the attention
        # path is only full-width 2-D matmuls and VPU multiplies.
        lane = jax.lax.broadcasted_iota(jnp.int32, (1, H), 1)
        head_masks = [((lane >= h * dh) & (lane < (h + 1) * dh)
                       ).astype(jnp.float32) for h in range(nh)]

        def attend(q2d, k2d, v2d, Sk):
            # q2d: (B*Nq, H); k2d/v2d: (B*Sk, H).  Attention never mixes images,
            # so loop the small static batch; row slices are sublane-aligned.
            rows = []
            for b in range(B):
                qb = q2d[b * Nq:(b + 1) * Nq, :] * inv_sqrt_dh
                kb = k2d[b * Sk:(b + 1) * Sk, :]
                vb = v2d[b * Sk:(b + 1) * Sk, :]
                ctx = jnp.zeros((Nq, H), jnp.float32)
                for m in head_masks:
                    s = jax.lax.dot_general(
                        qb * m, kb, (((1,), (1,)), ((), ())),
                        preferred_element_type=jnp.float32)          # (Nq, Sk)
                    mx = jnp.max(s, axis=-1, keepdims=True)
                    p = jnp.exp(s - mx)
                    p = p / jnp.sum(p, axis=-1, keepdims=True)       # exact softmax
                    ctx = ctx + jnp.dot(p, vb * m,
                                        preferred_element_type=jnp.float32)
                rows.append(ctx)
            return jnp.concatenate(rows, axis=0)                     # (B*Nq, H)

        img = img_ref[...].astype(W_DTYPE)                           # (B*Nt, Vw)

        # BertEmbeddings with query_embeds only -> plain LayerNorm; broadcast of
        # the shared query tokens over the batch happens once, after the LN.
        x0 = _ln(qt_ref[...].astype(jnp.float32), vh(0), vh(1))     # (Nq, H)
        x = jnp.concatenate([x0] * B, axis=0)                        # (B*Nq, H)

        ci = 0
        for l, has_cross in enumerate(has_cross_flags):
            base = 2 + _VEC_ROWS_PER_LAYER * l

            # ---- self-attention (fused QKV matmul over the folded batch) ----
            qkv = dense(x, sa_qkv_w_ref[l], b3h_ref[l:l + 1, :])     # (B*Nq, 3H)
            q, k, v = qkv[:, 0:H], qkv[:, H:2 * H], qkv[:, 2 * H:3 * H]
            ctx = attend(q, k, v, Nq)
            attn = dense(ctx, sa_o_w_ref[l], vh(base + _R_SA_O_B))
            x = _ln(x + attn, vh(base + _R_SA_LN_G), vh(base + _R_SA_LN_B))

            # ---- cross-attention to image features (fused KV matmul) ----
            if has_cross:
                cq = dense(x, ca_q_w_ref[ci], vh(base + _R_CA_Q_B))
                kv = dense(img, ca_kv_w_ref[ci], b2h_ref[ci:ci + 1, :])  # (B*Nt, 2H)
                ck, cv = kv[:, 0:H], kv[:, H:2 * H]
                ctx = attend(cq, ck, cv, Nt)
                attn = dense(ctx, ca_o_w_ref[ci], vh(base + _R_CA_O_B))
                x = _ln(x + attn, vh(base + _R_CA_LN_G), vh(base + _R_CA_LN_B))
                ci += 1

            # ---- query feed-forward: dense -> exact erf-GELU -> dense ----
            h1 = dense(x, ffn_i_w_ref[l], bi_ref[l:l + 1, :])        # (B*Nq, I)
            h1 = _gelu(h1)
            ffn = dense(h1, ffn_o_w_ref[l], vh(base + _R_FF_O_B))
            x = _ln(x + ffn, vh(base + _R_FF_LN_G), vh(base + _R_FF_LN_B))

        # ---- llm_proj over the folded batch ----
        # TODO(synk): pad P to a multiple of 128 lanes (slice in the wrapper) if
        # the masked partial store ever shows up in profiles.
        out = dense(x, proj_w_ref[...], projb_ref[...])              # (B*Nq, P)
        out_ref[...] = out.astype(out_ref.dtype)

    return kernel


# ---------------------------------------------------------------------------
# Parameters: deterministic synthetic init, pre-packed into a few stacked
# arrays (weights in bf16, biases / LayerNorm vectors in f32).
# ---------------------------------------------------------------------------
def init_params(key, cfg):
    H = cfg["hidden_size"]
    Vw = cfg["vision_width"]
    I = cfg["intermediate_size"]
    P = cfg["hidden_size_projector"]
    Nq = cfg["num_query_token"]
    L = cfg["num_layers"]
    freq = cfg["cross_attention_freq"]

    has_cross = tuple((l % freq == 0) for l in range(L))
    Lc = max(sum(has_cross), 1)   # padded to >=1 so leading dims are never 0

    keys = iter(jax.random.split(key, 9))

    def w(shape):
        return (jax.random.normal(next(keys), shape, jnp.float32) * 0.02
                ).astype(W_DTYPE)

    params = {
        "has_cross": has_cross,
        "query_tokens": jax.random.normal(next(keys), (Nq, H), ACT_DTYPE) * 0.02,
        # stacked weights (single DMA each)
        "sa_qkv_w": w((L, H, 3 * H)),       # Q/K/V fused along output columns
        "sa_o_w":   w((L, H, H)),
        "ffn_i_w":  w((L, H, I)),
        "ffn_o_w":  w((L, I, H)),
        "ca_q_w":   w((Lc, H, H)),
        "ca_kv_w":  w((Lc, Vw, 2 * H)),     # cross K/V fused along output columns
        "ca_o_w":   w((Lc, H, H)),
        "proj_w":   w((H, P)),
        # stacked biases (zero-init, matching the reference dense init)
        "b3h": jnp.zeros((L, 3 * H), ACT_DTYPE),     # sa_qkv_b
        "bi":  jnp.zeros((L, I), ACT_DTYPE),         # ffn_i_b
        "b2h": jnp.zeros((Lc, 2 * H), ACT_DTYPE),    # ca_kv_b
        "proj_b": jnp.zeros((1, P), ACT_DTYPE),
    }

    # All H-wide vectors in one (rows, H) stack: emb LN g/b then 10 rows/layer.
    ones, zeros = jnp.ones((H,), ACT_DTYPE), jnp.zeros((H,), ACT_DTYPE)
    rows = [ones, zeros]                             # embedding LN gamma/beta
    for _ in range(L):
        rows += [zeros, ones, zeros,                 # sa_o_b, sa_ln_g, sa_ln_b
                 zeros, ones, zeros,                 # ffn_o_b, ffn_ln_g, ffn_ln_b
                 zeros, zeros, ones, zeros]          # ca_q_b, ca_o_b, ca_ln_g, ca_ln_b
    params["vec_h"] = jnp.stack(rows)
    return params


# ---------------------------------------------------------------------------
# Forward pass: one fused pallas_call for the whole module
# ---------------------------------------------------------------------------
def qformer_forward(image_features, params, cfg):
    Nq = cfg["num_query_token"]
    P = cfg["hidden_size_projector"]
    B, Nt, Vw = image_features.shape
    has_cross = params["has_cross"]

    img2d = image_features.reshape(B * Nt, Vw)       # host-side reshape (free)

    inputs = [
        img2d, params["query_tokens"], params["vec_h"], params["b3h"],
        params["bi"], params["b2h"], params["proj_b"],
        params["sa_qkv_w"], params["sa_o_w"], params["ffn_i_w"],
        params["ffn_o_w"], params["ca_q_w"], params["ca_kv_w"],
        params["ca_o_w"], params["proj_w"],
    ]

    def full_spec(a):
        # full-array block, resident in VMEM for the single grid step
        if a.ndim == 2:
            return pl.BlockSpec(a.shape, lambda i: (0, 0))
        return pl.BlockSpec(a.shape, lambda i: (0, 0, 0))

    kernel = _make_qformer_kernel(cfg, has_cross, B, Nt)

    out2d = pl.pallas_call(
        kernel,
        out_shape=jax.ShapeDtypeStruct((B * Nq, P), image_features.dtype),
        grid=(1,),                                   # whole batch in one step
        in_specs=[full_spec(a) for a in inputs],
        out_specs=pl.BlockSpec((B * Nq, P), lambda i: (0, 0)),
        compiler_params=pltpu.CompilerParams(
            dimension_semantics=("arbitrary",)),
    )(*inputs)
    return out2d.reshape(B, Nq, P)


# ---------------------------------------------------------------------------
if __name__ == "__main__":
    cfg = dict(
        num_query_token=8,        # config.num_query_token
        vision_width=32,          # config.vision_width (encoder_width)
        hidden_size=64,           # encoder_config.hidden_size
        num_heads=4,              # encoder_config.num_attention_heads
        intermediate_size=128,    # encoder_config.intermediate_size
        num_layers=2,             # encoder_config.num_hidden_layers
        cross_attention_freq=1,   # config.cross_attention_freq
        hidden_size_projector=96, # config.hidden_size_projector (llm_proj out)
    )

    key = jax.random.PRNGKey(0)
    pkey, xkey = jax.random.split(key)
    params = init_params(pkey, cfg)

    B, Nt = 2, 16
    image_features = jax.random.normal(
        xkey, (B, Nt, cfg["vision_width"]), dtype=ACT_DTYPE
    )

    out = qformer_forward(image_features, params, cfg)
    out = jax.block_until_ready(out)
    assert out.shape == (B, cfg["num_query_token"], cfg["hidden_size_projector"])
    assert jnp.all(jnp.isfinite(out))
    print("KERNEL_OK")
</pallas_src>

<mosaic_0001>
module attributes {stable_mosaic.version = 11 : i64} {
  func.func @kernel(%arg0: i32, %arg1: memref<32x32xf32, #tpu.memory_space<vmem>>, %arg2: memref<8x64xf32, #tpu.memory_space<vmem>>, %arg3: memref<22x64xf32, #tpu.memory_space<vmem>>, %arg4: memref<2x192xf32, #tpu.memory_space<vmem>>, %arg5: memref<2x128xf32, #tpu.memory_space<vmem>>, %arg6: memref<2x128xf32, #tpu.memory_space<vmem>>, %arg7: memref<1x96xf32, #tpu.memory_space<vmem>>, %arg8: memref<2x64x192xbf16, #tpu.memory_space<vmem>>, %arg9: memref<2x64x64xbf16, #tpu.memory_space<vmem>>, %arg10: memref<2x64x128xbf16, #tpu.memory_space<vmem>>, %arg11: memref<2x128x64xbf16, #tpu.memory_space<vmem>>, %arg12: memref<2x64x64xbf16, #tpu.memory_space<vmem>>, %arg13: memref<2x32x128xbf16, #tpu.memory_space<vmem>>, %arg14: memref<2x64x64xbf16, #tpu.memory_space<vmem>>, %arg15: memref<64x96xbf16, #tpu.memory_space<vmem>>, %arg16: memref<16x96xf32, #tpu.memory_space<vmem>>) attributes {dimension_semantics = [#tpu.dimension_semantics<arbitrary>], iteration_bounds = array<i64: 1>, scalar_prefetch = 0 : i64, scratch_operands = 0 : i64, tpu.core_type = #tpu.core_type<tc>, window_params = [{pipeline_mode = #tpu.pipeline_mode<synchronous>, transform_indices = @transform_0, window_bounds = array<i64: 32, 32>}, {pipeline_mode = #tpu.pipeline_mode<synchronous>, transform_indices = @transform_1, window_bounds = array<i64: 8, 64>}, {pipeline_mode = #tpu.pipeline_mode<synchronous>, transform_indices = @transform_2, window_bounds = array<i64: 22, 64>}, {pipeline_mode = #tpu.pipeline_mode<synchronous>, transform_indices = @transform_3, window_bounds = array<i64: 2, 192>}, {pipeline_mode = #tpu.pipeline_mode<synchronous>, transform_indices = @transform_4, window_bounds = array<i64: 2, 128>}, {pipeline_mode = #tpu.pipeline_mode<synchronous>, transform_indices = @transform_5, window_bounds = array<i64: 2, 128>}, {pipeline_mode = #tpu.pipeline_mode<synchronous>, transform_indices = @transform_6, window_bounds = array<i64: 1, 96>}, {pipeline_mode = #tpu.pipeline_mode<synchronous>, transform_indices = @transform_7, window_bounds = array<i64: 2, 64, 192>}, {pipeline_mode = #tpu.pipeline_mode<synchronous>, transform_indices = @transform_8, window_bounds = array<i64: 2, 64, 64>}, {pipeline_mode = #tpu.pipeline_mode<synchronous>, transform_indices = @transform_9, window_bounds = array<i64: 2, 64, 128>}, {pipeline_mode = #tpu.pipeline_mode<synchronous>, transform_indices = @transform_10, window_bounds = array<i64: 2, 128, 64>}, {pipeline_mode = #tpu.pipeline_mode<synchronous>, transform_indices = @transform_11, window_bounds = array<i64: 2, 64, 64>}, {pipeline_mode = #tpu.pipeline_mode<synchronous>, transform_indices = @transform_12, window_bounds = array<i64: 2, 32, 128>}, {pipeline_mode = #tpu.pipeline_mode<synchronous>, transform_indices = @transform_13, window_bounds = array<i64: 2, 64, 64>}, {pipeline_mode = #tpu.pipeline_mode<synchronous>, transform_indices = @transform_14, window_bounds = array<i64: 64, 96>}, {pipeline_mode = #tpu.pipeline_mode<synchronous>, transform_indices = @transform_15, window_bounds = array<i64: 16, 96>}]} {
    %0 = tpu.iota {dimensions = array<i32: 1>} : vector<1x64xi32>
    %c0_i32 = arith.constant 0 : i32
    %1 = vector.broadcast %c0_i32 : i32 to vector<1x64xi32>
    %2 = arith.cmpi sge, %0, %1 : vector<1x64xi32>
    %c16_i32 = arith.constant 16 : i32
    %3 = vector.broadcast %c16_i32 : i32 to vector<1x64xi32>
    %4 = arith.cmpi slt, %0, %3 : vector<1x64xi32>
    %5 = arith.andi %2, %4 : vector<1x64xi1>
    %6 = arith.extui %5 : vector<1x64xi1> to vector<1x64xi32>
    %7 = arith.sitofp %6 : vector<1x64xi32> to vector<1x64xf32>
    %c16_i32_0 = arith.constant 16 : i32
    %8 = vector.broadcast %c16_i32_0 : i32 to vector<1x64xi32>
    %9 = arith.cmpi sge, %0, %8 : vector<1x64xi32>
    %c32_i32 = arith.constant 32 : i32
    %10 = vector.broadcast %c32_i32 : i32 to vector<1x64xi32>
    %11 = arith.cmpi slt, %0, %10 : vector<1x64xi32>
    %12 = arith.andi %9, %11 : vector<1x64xi1>
    %13 = arith.extui %12 : vector<1x64xi1> to vector<1x64xi32>
    %14 = arith.sitofp %13 : vector<1x64xi32> to vector<1x64xf32>
    %c32_i32_1 = arith.constant 32 : i32
    %15 = vector.broadcast %c32_i32_1 : i32 to vector<1x64xi32>
    %16 = arith.cmpi sge, %0, %15 : vector<1x64xi32>
    %c48_i32 = arith.constant 48 : i32
    %17 = vector.broadcast %c48_i32 : i32 to vector<1x64xi32>
    %18 = arith.cmpi slt, %0, %17 : vector<1x64xi32>
    %19 = arith.andi %16, %18 : vector<1x64xi1>
    %20 = arith.extui %19 : vector<1x64xi1> to vector<1x64xi32>
    %21 = arith.sitofp %20 : vector<1x64xi32> to vector<1x64xf32>
    %c48_i32_2 = arith.constant 48 : i32
    %22 = vector.broadcast %c48_i32_2 : i32 to vector<1x64xi32>
    %23 = arith.cmpi sge, %0, %22 : vector<1x64xi32>
    %c64_i32 = arith.constant 64 : i32
    %24 = vector.broadcast %c64_i32 : i32 to vector<1x64xi32>
    %25 = arith.cmpi slt, %0, %24 : vector<1x64xi32>
    %26 = arith.andi %23, %25 : vector<1x64xi1>
    %27 = arith.extui %26 : vector<1x64xi1> to vector<1x64xi32>
    %28 = arith.sitofp %27 : vector<1x64xi32> to vector<1x64xf32>
    %c0 = arith.constant 0 : index
    %c0_3 = arith.constant 0 : index
    %29 = vector.load %arg1[%c0, %c0_3] : memref<32x32xf32, #tpu.memory_space<vmem>>, vector<32x32xf32>
    %30 = arith.truncf %29 : vector<32x32xf32> to vector<32x32xbf16>
    %c0_4 = arith.constant 0 : index
    %c0_5 = arith.constant 0 : index
    %31 = vector.load %arg2[%c0_4, %c0_5] : memref<8x64xf32, #tpu.memory_space<vmem>>, vector<8x64xf32>
    %c0_6 = arith.constant 0 : index
    %c0_7 = arith.constant 0 : index
    %32 = vector.load %arg3[%c0_6, %c0_7] : memref<22x64xf32, #tpu.memory_space<vmem>>, vector<1x64xf32>
    %c1 = arith.constant 1 : index
    %c0_8 = arith.constant 0 : index
    %33 = vector.load %arg3[%c1, %c0_8] : memref<22x64xf32, #tpu.memory_space<vmem>>, vector<1x64xf32>
    %cst = arith.constant dense<0.000000e+00> : vector<8xf32>
    %34 = vector.multi_reduction <add>, %31, %cst [1] : vector<8x64xf32> to vector<8xf32>
    %35 = vector.shape_cast %34 : vector<8xf32> to vector<8x1xf32>
    %cst_9 = arith.constant 6.400000e+01 : f32
    %36 = vector.broadcast %cst_9 : f32 to vector<8x1xf32>
    %37 = arith.divf %35, %36 : vector<8x1xf32>
    %38 = vector.broadcast %37 : vector<8x1xf32> to vector<8x64xf32>
    %39 = arith.subf %31, %38 : vector<8x64xf32>
    %40 = arith.mulf %39, %39 : vector<8x64xf32>
    %cst_10 = arith.constant dense<0.000000e+00> : vector<8xf32>
    %41 = vector.multi_reduction <add>, %40, %cst_10 [1] : vector<8x64xf32> to vector<8xf32>
    %42 = vector.shape_cast %41 : vector<8xf32> to vector<8x1xf32>
    %cst_11 = arith.constant 6.400000e+01 : f32
    %43 = vector.broadcast %cst_11 : f32 to vector<8x1xf32>
    %44 = arith.divf %42, %43 : vector<8x1xf32>
    %cst_12 = arith.constant 9.99999996E-13 : f32
    %45 = vector.broadcast %cst_12 : f32 to vector<8x1xf32>
    %46 = arith.addf %44, %45 : vector<8x1xf32>
    %47 = math.rsqrt %46 : vector<8x1xf32>
    %48 = vector.broadcast %47 : vector<8x1xf32> to vector<8x64xf32>
    %49 = arith.mulf %39, %48 : vector<8x64xf32>
    %50 = vector.broadcast %32 : vector<1x64xf32> to vector<8x64xf32>
    %51 = arith.mulf %49, %50 : vector<8x64xf32>
    %52 = vector.broadcast %33 : vector<1x64xf32> to vector<8x64xf32>
    %53 = arith.addf %51, %52 : vector<8x64xf32>
    %54 = tpu.concatenate %53, %53 in 0 : vector<8x64xf32>, vector<8x64xf32> -> vector<16x64xf32>
    %c0_13 = arith.constant 0 : index
    %c0_14 = arith.constant 0 : index
    %c0_15 = arith.constant 0 : index
    %55 = vector.load %arg8[%c0_13, %c0_14, %c0_15] : memref<2x64x192xbf16, #tpu.memory_space<vmem>>, vector<1x64x192xbf16>
    %56 = vector.shape_cast %55 : vector<1x64x192xbf16> to vector<64x192xbf16>
    %c0_16 = arith.constant 0 : index
    %c0_17 = arith.constant 0 : index
    %57 = vector.load %arg4[%c0_16, %c0_17] : memref<2x192xf32, #tpu.memory_space<vmem>>, vector<1x192xf32>
    %58 = arith.truncf %54 : vector<16x64xf32> to vector<16x64xbf16>
    %cst_18 = arith.constant dense<0.000000e+00> : vector<16x192xf32>
    %59 = tpu.matmul %58, %56, %cst_18 {dimension_numbers = #tpu.dot_dimension_numbers<[1], [0], [0], [1], [0, 0, 1, 1], [], []>} : vector<16x64xbf16>, vector<64x192xbf16>, vector<16x192xf32> -> vector<16x192xf32>
    %60 = vector.broadcast %57 : vector<1x192xf32> to vector<16x192xf32>
    %61 = arith.addf %59, %60 : vector<16x192xf32>
    %62 = vector.extract_strided_slice %61 {offsets = [0, 0], sizes = [16, 64], strides = [1, 1]} : vector<16x192xf32> to vector<16x64xf32>
    %63 = vector.extract_strided_slice %61 {offsets = [0, 64], sizes = [16, 64], strides = [1, 1]} : vector<16x192xf32> to vector<16x64xf32>
    %64 = vector.extract_strided_slice %61 {offsets = [0, 128], sizes = [16, 64], strides = [1, 1]} : vector<16x192xf32> to vector<16x64xf32>
    %65 = vector.extract_strided_slice %62 {offsets = [0, 0], sizes = [8, 64], strides = [1, 1]} : vector<16x64xf32> to vector<8x64xf32>
    %cst_19 = arith.constant 2.500000e-01 : f32
    %66 = vector.broadcast %cst_19 : f32 to vector<8x64xf32>
    %67 = arith.mulf %65, %66 : vector<8x64xf32>
    %68 = vector.extract_strided_slice %63 {offsets = [0, 0], sizes = [8, 64], strides = [1, 1]} : vector<16x64xf32> to vector<8x64xf32>
    %69 = vector.extract_strided_slice %64 {offsets = [0, 0], sizes = [8, 64], strides = [1, 1]} : vector<16x64xf32> to vector<8x64xf32>
    %cst_20 = arith.constant 0.000000e+00 : f32
    %70 = vector.broadcast %cst_20 : f32 to vector<8x64xf32>
    %71 = vector.broadcast %7 : vector<1x64xf32> to vector<8x64xf32>
    %72 = arith.mulf %67, %71 : vector<8x64xf32>
    %cst_21 = arith.constant dense<0.000000e+00> : vector<8x8xf32>
    %73 = tpu.matmul %72, %68, %cst_21 {dimension_numbers = #tpu.dot_dimension_numbers<[1], [1], [0], [0], [0, 0, 1, 0], [], []>} : vector<8x64xf32>, vector<8x64xf32>, vector<8x8xf32> -> vector<8x8xf32>
    %cst_22 = arith.constant dense<0xFF800000> : vector<8xf32>
    %74 = vector.multi_reduction <maximumf>, %73, %cst_22 [1] : vector<8x8xf32> to vector<8xf32>
    %75 = vector.shape_cast %74 : vector<8xf32> to vector<8x1xf32>
    %76 = vector.broadcast %75 : vector<8x1xf32> to vector<8x8xf32>
    %77 = arith.subf %73, %76 : vector<8x8xf32>
    %78 = math.exp %77 : vector<8x8xf32>
    %cst_23 = arith.constant dense<0.000000e+00> : vector<8xf32>
    %79 = vector.multi_reduction <add>, %78, %cst_23 [1] : vector<8x8xf32> to vector<8xf32>
    %80 = vector.shape_cast %79 : vector<8xf32> to vector<8x1xf32>
    %81 = vector.broadcast %80 : vector<8x1xf32> to vector<8x8xf32>
    %82 = arith.divf %78, %81 : vector<8x8xf32>
    %83 = vector.broadcast %7 : vector<1x64xf32> to vector<8x64xf32>
    %84 = arith.mulf %69, %83 : vector<8x64xf32>
    %cst_24 = arith.constant dense<0.000000e+00> : vector<8x64xf32>
    %85 = tpu.matmul %82, %84, %cst_24 {dimension_numbers = #tpu.dot_dimension_numbers<[1], [0], [0], [1], [0, 0, 1, 1], [], []>} : vector<8x8xf32>, vector<8x64xf32>, vector<8x64xf32> -> vector<8x64xf32>
    %86 = arith.addf %70, %85 : vector<8x64xf32>
    %87 = vector.broadcast %14 : vector<1x64xf32> to vector<8x64xf32>
    %88 = arith.mulf %67, %87 : vector<8x64xf32>
    %cst_25 = arith.constant dense<0.000000e+00> : vector<8x8xf32>
    %89 = tpu.matmul %88, %68, %cst_25 {dimension_numbers = #tpu.dot_dimension_numbers<[1], [1], [0], [0], [0, 0, 1, 0], [], []>} : vector<8x64xf32>, vector<8x64xf32>, vector<8x8xf32> -> vector<8x8xf32>
    %cst_26 = arith.constant dense<0xFF800000> : vector<8xf32>
    %90 = vector.multi_reduction <maximumf>, %89, %cst_26 [1] : vector<8x8xf32> to vector<8xf32>
    %91 = vector.shape_cast %90 : vector<8xf32> to vector<8x1xf32>
    %92 = vector.broadcast %91 : vector<8x1xf32> to vector<8x8xf32>
    %93 = arith.subf %89, %92 : vector<8x8xf32>
    %94 = math.exp %93 : vector<8x8xf32>
    %cst_27 = arith.constant dense<0.000000e+00> : vector<8xf32>
    %95 = vector.multi_reduction <add>, %94, %cst_27 [1] : vector<8x8xf32> to vector<8xf32>
    %96 = vector.shape_cast %95 : vector<8xf32> to vector<8x1xf32>
    %97 = vector.broadcast %96 : vector<8x1xf32> to vector<8x8xf32>
    %98 = arith.divf %94, %97 : vector<8x8xf32>
    %99 = vector.broadcast %14 : vector<1x64xf32> to vector<8x64xf32>
    %100 = arith.mulf %69, %99 : vector<8x64xf32>
    %cst_28 = arith.constant dense<0.000000e+00> : vector<8x64xf32>
    %101 = tpu.matmul %98, %100, %cst_28 {dimension_numbers = #tpu.dot_dimension_numbers<[1], [0], [0], [1], [0, 0, 1, 1], [], []>} : vector<8x8xf32>, vector<8x64xf32>, vector<8x64xf32> -> vector<8x64xf32>
    %102 = arith.addf %86, %101 : vector<8x64xf32>
    %103 = vector.broadcast %21 : vector<1x64xf32> to vector<8x64xf32>
    %104 = arith.mulf %67, %103 : vector<8x64xf32>
    %cst_29 = arith.constant dense<0.000000e+00> : vector<8x8xf32>
    %105 = tpu.matmul %104, %68, %cst_29 {dimension_numbers = #tpu.dot_dimension_numbers<[1], [1], [0], [0], [0, 0, 1, 0], [], []>} : vector<8x64xf32>, vector<8x64xf32>, vector<8x8xf32> -> vector<8x8xf32>
    %cst_30 = arith.constant dense<0xFF800000> : vector<8xf32>
    %106 = vector.multi_reduction <maximumf>, %105, %cst_30 [1] : vector<8x8xf32> to vector<8xf32>
    %107 = vector.shape_cast %106 : vector<8xf32> to vector<8x1xf32>
    %108 = vector.broadcast %107 : vector<8x1xf32> to vector<8x8xf32>
    %109 = arith.subf %105, %108 : vector<8x8xf32>
    %110 = math.exp %109 : vector<8x8xf32>
    %cst_31 = arith.constant dense<0.000000e+00> : vector<8xf32>
    %111 = vector.multi_reduction <add>, %110, %cst_31 [1] : vector<8x8xf32> to vector<8xf32>
    %112 = vector.shape_cast %111 : vector<8xf32> to vector<8x1xf32>
    %113 = vector.broadcast %112 : vector<8x1xf32> to vector<8x8xf32>
    %114 = arith.divf %110, %113 : vector<8x8xf32>
    %115 = vector.broadcast %21 : vector<1x64xf32> to vector<8x64xf32>
    %116 = arith.mulf %69, %115 : vector<8x64xf32>
    %cst_32 = arith.constant dense<0.000000e+00> : vector<8x64xf32>
    %117 = tpu.matmul %114, %116, %cst_32 {dimension_numbers = #tpu.dot_dimension_numbers<[1], [0], [0], [1], [0, 0, 1, 1], [], []>} : vector<8x8xf32>, vector<8x64xf32>, vector<8x64xf32> -> vector<8x64xf32>
    %118 = arith.addf %102, %117 : vector<8x64xf32>
    %119 = vector.broadcast %28 : vector<1x64xf32> to vector<8x64xf32>
    %120 = arith.mulf %67, %119 : vector<8x64xf32>
    %cst_33 = arith.constant dense<0.000000e+00> : vector<8x8xf32>
    %121 = tpu.matmul %120, %68, %cst_33 {dimension_numbers = #tpu.dot_dimension_numbers<[1], [1], [0], [0], [0, 0, 1, 0], [], []>} : vector<8x64xf32>, vector<8x64xf32>, vector<8x8xf32> -> vector<8x8xf32>
    %cst_34 = arith.constant dense<0xFF800000> : vector<8xf32>
    %122 = vector.multi_reduction <maximumf>, %121, %cst_34 [1] : vector<8x8xf32> to vector<8xf32>
    %123 = vector.shape_cast %122 : vector<8xf32> to vector<8x1xf32>
    %124 = vector.broadcast %123 : vector<8x1xf32> to vector<8x8xf32>
    %125 = arith.subf %121, %124 : vector<8x8xf32>
    %126 = math.exp %125 : vector<8x8xf32>
    %cst_35 = arith.constant dense<0.000000e+00> : vector<8xf32>
    %127 = vector.multi_reduction <add>, %126, %cst_35 [1] : vector<8x8xf32> to vector<8xf32>
    %128 = vector.shape_cast %127 : vector<8xf32> to vector<8x1xf32>
    %129 = vector.broadcast %128 : vector<8x1xf32> to vector<8x8xf32>
    %130 = arith.divf %126, %129 : vector<8x8xf32>
    %131 = vector.broadcast %28 : vector<1x64xf32> to vector<8x64xf32>
    %132 = arith.mulf %69, %131 : vector<8x64xf32>
    %cst_36 = arith.constant dense<0.000000e+00> : vector<8x64xf32>
    %133 = tpu.matmul %130, %132, %cst_36 {dimension_numbers = #tpu.dot_dimension_numbers<[1], [0], [0], [1], [0, 0, 1, 1], [], []>} : vector<8x8xf32>, vector<8x64xf32>, vector<8x64xf32> -> vector<8x64xf32>
    %134 = arith.addf %118, %133 : vector<8x64xf32>
    %135 = vector.extract_strided_slice %62 {offsets = [8, 0], sizes = [8, 64], strides = [1, 1]} : vector<16x64xf32> to vector<8x64xf32>
    %cst_37 = arith.constant 2.500000e-01 : f32
    %136 = vector.broadcast %cst_37 : f32 to vector<8x64xf32>
    %137 = arith.mulf %135, %136 : vector<8x64xf32>
    %138 = vector.extract_strided_slice %63 {offsets = [8, 0], sizes = [8, 64], strides = [1, 1]} : vector<16x64xf32> to vector<8x64xf32>
    %139 = vector.extract_strided_slice %64 {offsets = [8, 0], sizes = [8, 64], strides = [1, 1]} : vector<16x64xf32> to vector<8x64xf32>
    %cst_38 = arith.constant 0.000000e+00 : f32
    %140 = vector.broadcast %cst_38 : f32 to vector<8x64xf32>
    %141 = vector.broadcast %7 : vector<1x64xf32> to vector<8x64xf32>
    %142 = arith.mulf %137, %141 : vector<8x64xf32>
    %cst_39 = arith.constant dense<0.000000e+00> : vector<8x8xf32>
    %143 = tpu.matmul %142, %138, %cst_39 {dimension_numbers = #tpu.dot_dimension_numbers<[1], [1], [0], [0], [0, 0, 1, 0], [], []>} : vector<8x64xf32>, vector<8x64xf32>, vector<8x8xf32> -> vector<8x8xf32>
    %cst_40 = arith.constant dense<0xFF800000> : vector<8xf32>
    %144 = vector.multi_reduction <maximumf>, %143, %cst_40 [1] : vector<8x8xf32> to vector<8xf32>
    %145 = vector.shape_cast %144 : vector<8xf32> to vector<8x1xf32>
    %146 = vector.broadcast %145 : vector<8x1xf32> to vector<8x8xf32>
    %147 = arith.subf %143, %146 : vector<8x8xf32>
    %148 = math.exp %147 : vector<8x8xf32>
    %cst_41 = arith.constant dense<0.000000e+00> : vector<8xf32>
    %149 = vector.multi_reduction <add>, %148, %cst_41 [1] : vector<8x8xf32> to vector<8xf32>
    %150 = vector.shape_cast %149 : vector<8xf32> to vector<8x1xf32>
    %151 = vector.broadcast %150 : vector<8x1xf32> to vector<8x8xf32>
    %152 = arith.divf %148, %151 : vector<8x8xf32>
    %153 = vector.broadcast %7 : vector<1x64xf32> to vector<8x64xf32>
    %154 = arith.mulf %139, %153 : vector<8x64xf32>
    %cst_42 = arith.constant dense<0.000000e+00> : vector<8x64xf32>
    %155 = tpu.matmul %152, %154, %cst_42 {dimension_numbers = #tpu.dot_dimension_numbers<[1], [0], [0], [1], [0, 0, 1, 1], [], []>} : vector<8x8xf32>, vector<8x64xf32>, vector<8x64xf32> -> vector<8x64xf32>
    %156 = arith.addf %140, %155 : vector<8x64xf32>
    %157 = vector.broadcast %14 : vector<1x64xf32> to vector<8x64xf32>
    %158 = arith.mulf %137, %157 : vector<8x64xf32>
    %cst_43 = arith.constant dense<0.000000e+00> : vector<8x8xf32>
    %159 = tpu.matmul %158, %138, %cst_43 {dimension_numbers = #tpu.dot_dimension_numbers<[1], [1], [0], [0], [0, 0, 1, 0], [], []>} : vector<8x64xf32>, vector<8x64xf32>, vector<8x8xf32> -> vector<8x8xf32>
    %cst_44 = arith.constant dense<0xFF800000> : vector<8xf32>
    %160 = vector.multi_reduction <maximumf>, %159, %cst_44 [1] : vector<8x8xf32> to vector<8xf32>
    %161 = vector.shape_cast %160 : vector<8xf32> to vector<8x1xf32>
    %162 = vector.broadcast %161 : vector<8x1xf32> to vector<8x8xf32>
    %163 = arith.subf %159, %162 : vector<8x8xf32>
    %164 = math.exp %163 : vector<8x8xf32>
    %cst_45 = arith.constant dense<0.000000e+00> : vector<8xf32>
    %165 = vector.multi_reduction <add>, %164, %cst_45 [1] : vector<8x8xf32> to vector<8xf32>
    %166 = vector.shape_cast %165 : vector<8xf32> to vector<8x1xf32>
    %167 = vector.broadcast %166 : vector<8x1xf32> to vector<8x8xf32>
    %168 = arith.divf %164, %167 : vector<8x8xf32>
    %169 = vector.broadcast %14 : vector<1x64xf32> to vector<8x64xf32>
    %170 = arith.mulf %139, %169 : vector<8x64xf32>
    %cst_46 = arith.constant dense<0.000000e+00> : vector<8x64xf32>
    %171 = tpu.matmul %168, %170, %cst_46 {dimension_numbers = #tpu.dot_dimension_numbers<[1], [0], [0], [1], [0, 0, 1, 1], [], []>} : vector<8x8xf32>, vector<8x64xf32>, vector<8x64xf32> -> vector<8x64xf32>
    %172 = arith.addf %156, %171 : vector<8x64xf32>
    %173 = vector.broadcast %21 : vector<1x64xf32> to vector<8x64xf32>
    %174 = arith.mulf %137, %173 : vector<8x64xf32>
    %cst_47 = arith.constant dense<0.000000e+00> : vector<8x8xf32>
    %175 = tpu.matmul %174, %138, %cst_47 {dimension_numbers = #tpu.dot_dimension_numbers<[1], [1], [0], [0], [0, 0, 1, 0], [], []>} : vector<8x64xf32>, vector<8x64xf32>, vector<8x8xf32> -> vector<8x8xf32>
    %cst_48 = arith.constant dense<0xFF800000> : vector<8xf32>
    %176 = vector.multi_reduction <maximumf>, %175, %cst_48 [1] : vector<8x8xf32> to vector<8xf32>
    %177 = vector.shape_cast %176 : vector<8xf32> to vector<8x1xf32>
    %178 = vector.broadcast %177 : vector<8x1xf32> to vector<8x8xf32>
    %179 = arith.subf %175, %178 : vector<8x8xf32>
    %180 = math.exp %179 : vector<8x8xf32>
    %cst_49 = arith.constant dense<0.000000e+00> : vector<8xf32>
    %181 = vector.multi_reduction <add>, %180, %cst_49 [1] : vector<8x8xf32> to vector<8xf32>
    %182 = vector.shape_cast %181 : vector<8xf32> to vector<8x1xf32>
    %183 = vector.broadcast %182 : vector<8x1xf32> to vector<8x8xf32>
    %184 = arith.divf %180, %183 : vector<8x8xf32>
    %185 = vector.broadcast %21 : vector<1x64xf32> to vector<8x64xf32>
    %186 = arith.mulf %139, %185 : vector<8x64xf32>
    %cst_50 = arith.constant dense<0.000000e+00> : vector<8x64xf32>
    %187 = tpu.matmul %184, %186, %cst_50 {dimension_numbers = #tpu.dot_dimension_numbers<[1], [0], [0], [1], [0, 0, 1, 1], [], []>} : vector<8x8xf32>, vector<8x64xf32>, vector<8x64xf32> -> vector<8x64xf32>
    %188 = arith.addf %172, %187 : vector<8x64xf32>
    %189 = vector.broadcast %28 : vector<1x64xf32> to vector<8x64xf32>
    %190 = arith.mulf %137, %189 : vector<8x64xf32>
    %cst_51 = arith.constant dense<0.000000e+00> : vector<8x8xf32>
    %191 = tpu.matmul %190, %138, %cst_51 {dimension_numbers = #tpu.dot_dimension_numbers<[1], [1], [0], [0], [0, 0, 1, 0], [], []>} : vector<8x64xf32>, vector<8x64xf32>, vector<8x8xf32> -> vector<8x8xf32>
    %cst_52 = arith.constant dense<0xFF800000> : vector<8xf32>
    %192 = vector.multi_reduction <maximumf>, %191, %cst_52 [1] : vector<8x8xf32> to vector<8xf32>
    %193 = vector.shape_cast %192 : vector<8xf32> to vector<8x1xf32>
    %194 = vector.broadcast %193 : vector<8x1xf32> to vector<8x8xf32>
    %195 = arith.subf %191, %194 : vector<8x8xf32>
    %196 = math.exp %195 : vector<8x8xf32>
    %cst_53 = arith.constant dense<0.000000e+00> : vector<8xf32>
    %197 = vector.multi_reduction <add>, %196, %cst_53 [1] : vector<8x8xf32> to vector<8xf32>
    %198 = vector.shape_cast %197 : vector<8xf32> to vector<8x1xf32>
    %199 = vector.broadcast %198 : vector<8x1xf32> to vector<8x8xf32>
    %200 = arith.divf %196, %199 : vector<8x8xf32>
    %201 = vector.broadcast %28 : vector<1x64xf32> to vector<8x64xf32>
    %202 = arith.mulf %139, %201 : vector<8x64xf32>
    %cst_54 = arith.constant dense<0.000000e+00> : vector<8x64xf32>
    %203 = tpu.matmul %200, %202, %cst_54 {dimension_numbers = #tpu.dot_dimension_numbers<[1], [0], [0], [1], [0, 0, 1, 1], [], []>} : vector<8x8xf32>, vector<8x64xf32>, vector<8x64xf32> -> vector<8x64xf32>
    %204 = arith.addf %188, %203 : vector<8x64xf32>
    %205 = tpu.concatenate %134, %204 in 0 : vector<8x64xf32>, vector<8x64xf32> -> vector<16x64xf32>
    %c0_55 = arith.constant 0 : index
    %c0_56 = arith.constant 0 : index
    %c0_57 = arith.constant 0 : index
    %206 = vector.load %arg9[%c0_55, %c0_56, %c0_57] : memref<2x64x64xbf16, #tpu.memory_space<vmem>>, vector<1x64x64xbf16>
    %207 = vector.shape_cast %206 : vector<1x64x64xbf16> to vector<64x64xbf16>
    %c2 = arith.constant 2 : index
    %c0_58 = arith.constant 0 : index
    %208 = vector.load %arg3[%c2, %c0_58] : memref<22x64xf32, #tpu.memory_space<vmem>>, vector<1x64xf32>
    %209 = arith.truncf %205 : vector<16x64xf32> to vector<16x64xbf16>
    %cst_59 = arith.constant dense<0.000000e+00> : vector<16x64xf32>
    %210 = tpu.matmul %209, %207, %cst_59 {dimension_numbers = #tpu.dot_dimension_numbers<[1], [0], [0], [1], [0, 0, 1, 1], [], []>} : vector<16x64xbf16>, vector<64x64xbf16>, vector<16x64xf32> -> vector<16x64xf32>
    %211 = vector.broadcast %208 : vector<1x64xf32> to vector<16x64xf32>
    %212 = arith.addf %210, %211 : vector<16x64xf32>
    %213 = arith.addf %54, %212 : vector<16x64xf32>
    %c3 = arith.constant 3 : index
    %c0_60 = arith.constant 0 : index
    %214 = vector.load %arg3[%c3, %c0_60] : memref<22x64xf32, #tpu.memory_space<vmem>>, vector<1x64xf32>
    %c4 = arith.constant 4 : index
    %c0_61 = arith.constant 0 : index
    %215 = vector.load %arg3[%c4, %c0_61] : memref<22x64xf32, #tpu.memory_space<vmem>>, vector<1x64xf32>
    %cst_62 = arith.constant dense<0.000000e+00> : vector<16xf32>
    %216 = vector.multi_reduction <add>, %213, %cst_62 [1] : vector<16x64xf32> to vector<16xf32>
    %217 = vector.shape_cast %216 : vector<16xf32> to vector<16x1xf32>
    %cst_63 = arith.constant 6.400000e+01 : f32
    %218 = vector.broadcast %cst_63 : f32 to vector<16x1xf32>
    %219 = arith.divf %217, %218 : vector<16x1xf32>
    %220 = vector.broadcast %219 : vector<16x1xf32> to vector<16x64xf32>
    %221 = arith.subf %213, %220 : vector<16x64xf32>
    %222 = arith.mulf %221, %221 : vector<16x64xf32>
    %cst_64 = arith.constant dense<0.000000e+00> : vector<16xf32>
    %223 = vector.multi_reduction <add>, %222, %cst_64 [1] : vector<16x64xf32> to vector<16xf32>
    %224 = vector.shape_cast %223 : vector<16xf32> to vector<16x1xf32>
    %cst_65 = arith.constant 6.400000e+01 : f32
    %225 = vector.broadcast %cst_65 : f32 to vector<16x1xf32>
    %226 = arith.divf %224, %225 : vector<16x1xf32>
    %cst_66 = arith.constant 9.99999996E-13 : f32
    %227 = vector.broadcast %cst_66 : f32 to vector<16x1xf32>
    %228 = arith.addf %226, %227 : vector<16x1xf32>
    %229 = math.rsqrt %228 : vector<16x1xf32>
    %230 = vector.broadcast %229 : vector<16x1xf32> to vector<16x64xf32>
    %231 = arith.mulf %221, %230 : vector<16x64xf32>
    %232 = vector.broadcast %214 : vector<1x64xf32> to vector<16x64xf32>
    %233 = arith.mulf %231, %232 : vector<16x64xf32>
    %234 = vector.broadcast %215 : vector<1x64xf32> to vector<16x64xf32>
    %235 = arith.addf %233, %234 : vector<16x64xf32>
    %c0_67 = arith.constant 0 : index
    %c0_68 = arith.constant 0 : index
    %c0_69 = arith.constant 0 : index
    %236 = vector.load %arg12[%c0_67, %c0_68, %c0_69] : memref<2x64x64xbf16, #tpu.memory_space<vmem>>, vector<1x64x64xbf16>
    %237 = vector.shape_cast %236 : vector<1x64x64xbf16> to vector<64x64xbf16>
    %c8 = arith.constant 8 : index
    %c0_70 = arith.constant 0 : index
    %238 = vector.load %arg3[%c8, %c0_70] : memref<22x64xf32, #tpu.memory_space<vmem>>, vector<1x64xf32>
    %239 = arith.truncf %235 : vector<16x64xf32> to vector<16x64xbf16>
    %cst_71 = arith.constant dense<0.000000e+00> : vector<16x64xf32>
    %240 = tpu.matmul %239, %237, %cst_71 {dimension_numbers = #tpu.dot_dimension_numbers<[1], [0], [0], [1], [0, 0, 1, 1], [], []>} : vector<16x64xbf16>, vector<64x64xbf16>, vector<16x64xf32> -> vector<16x64xf32>
    %241 = vector.broadcast %238 : vector<1x64xf32> to vector<16x64xf32>
    %242 = arith.addf %240, %241 : vector<16x64xf32>
    %c0_72 = arith.constant 0 : index
    %c0_73 = arith.constant 0 : index
    %c0_74 = arith.constant 0 : index
    %243 = vector.load %arg13[%c0_72, %c0_73, %c0_74] : memref<2x32x128xbf16, #tpu.memory_space<vmem>>, vector<1x32x128xbf16>
    %244 = vector.shape_cast %243 : vector<1x32x128xbf16> to vector<32x128xbf16>
    %c0_75 = arith.constant 0 : index
    %c0_76 = arith.constant 0 : index
    %245 = vector.load %arg6[%c0_75, %c0_76] : memref<2x128xf32, #tpu.memory_space<vmem>>, vector<1x128xf32>
    %cst_77 = arith.constant dense<0.000000e+00> : vector<32x128xf32>
    %246 = tpu.matmul %30, %244, %cst_77 {dimension_numbers = #tpu.dot_dimension_numbers<[1], [0], [0], [1], [0, 0, 1, 1], [], []>} : vector<32x32xbf16>, vector<32x128xbf16>, vector<32x128xf32> -> vector<32x128xf32>
    %247 = vector.broadcast %245 : vector<1x128xf32> to vector<32x128xf32>
    %248 = arith.addf %246, %247 : vector<32x128xf32>
    %249 = vector.extract_strided_slice %248 {offsets = [0, 0], sizes = [32, 64], strides = [1, 1]} : vector<32x128xf32> to vector<32x64xf32>
    %250 = vector.extract_strided_slice %248 {offsets = [0, 64], sizes = [32, 64], strides = [1, 1]} : vector<32x128xf32> to vector<32x64xf32>
    %251 = vector.extract_strided_slice %242 {offsets = [0, 0], sizes = [8, 64], strides = [1, 1]} : vector<16x64xf32> to vector<8x64xf32>
    %cst_78 = arith.constant 2.500000e-01 : f32
    %252 = vector.broadcast %cst_78 : f32 to vector<8x64xf32>
    %253 = arith.mulf %251, %252 : vector<8x64xf32>
    %254 = vector.extract_strided_slice %249 {offsets = [0, 0], sizes = [16, 64], strides = [1, 1]} : vector<32x64xf32> to vector<16x64xf32>
    %255 = vector.extract_strided_slice %250 {offsets = [0, 0], sizes = [16, 64], strides = [1, 1]} : vector<32x64xf32> to vector<16x64xf32>
    %cst_79 = arith.constant 0.000000e+00 : f32
    %256 = vector.broadcast %cst_79 : f32 to vector<8x64xf32>
    %257 = vector.broadcast %7 : vector<1x64xf32> to vector<8x64xf32>
    %258 = arith.mulf %253, %257 : vector<8x64xf32>
    %cst_80 = arith.constant dense<0.000000e+00> : vector<8x16xf32>
    %259 = tpu.matmul %258, %254, %cst_80 {dimension_numbers = #tpu.dot_dimension_numbers<[1], [1], [0], [0], [0, 0, 1, 0], [], []>} : vector<8x64xf32>, vector<16x64xf32>, vector<8x16xf32> -> vector<8x16xf32>
    %cst_81 = arith.constant dense<0xFF800000> : vector<8xf32>
    %260 = vector.multi_reduction <maximumf>, %259, %cst_81 [1] : vector<8x16xf32> to vector<8xf32>
    %261 = vector.shape_cast %260 : vector<8xf32> to vector<8x1xf32>
    %262 = vector.broadcast %261 : vector<8x1xf32> to vector<8x16xf32>
    %263 = arith.subf %259, %262 : vector<8x16xf32>
    %264 = math.exp %263 : vector<8x16xf32>
    %cst_82 = arith.constant dense<0.000000e+00> : vector<8xf32>
    %265 = vector.multi_reduction <add>, %264, %cst_82 [1] : vector<8x16xf32> to vector<8xf32>
    %266 = vector.shape_cast %265 : vector<8xf32> to vector<8x1xf32>
    %267 = vector.broadcast %266 : vector<8x1xf32> to vector<8x16xf32>
    %268 = arith.divf %264, %267 : vector<8x16xf32>
    %269 = vector.broadcast %7 : vector<1x64xf32> to vector<16x64xf32>
    %270 = arith.mulf %255, %269 : vector<16x64xf32>
    %cst_83 = arith.constant dense<0.000000e+00> : vector<8x64xf32>
    %271 = tpu.matmul %268, %270, %cst_83 {dimension_numbers = #tpu.dot_dimension_numbers<[1], [0], [0], [1], [0, 0, 1, 1], [], []>} : vector<8x16xf32>, vector<16x64xf32>, vector<8x64xf32> -> vector<8x64xf32>
    %272 = arith.addf %256, %271 : vector<8x64xf32>
    %273 = vector.broadcast %14 : vector<1x64xf32> to vector<8x64xf32>
    %274 = arith.mulf %253, %273 : vector<8x64xf32>
    %cst_84 = arith.constant dense<0.000000e+00> : vector<8x16xf32>
    %275 = tpu.matmul %274, %254, %cst_84 {dimension_numbers = #tpu.dot_dimension_numbers<[1], [1], [0], [0], [0, 0, 1, 0], [], []>} : vector<8x64xf32>, vector<16x64xf32>, vector<8x16xf32> -> vector<8x16xf32>
    %cst_85 = arith.constant dense<0xFF800000> : vector<8xf32>
    %276 = vector.multi_reduction <maximumf>, %275, %cst_85 [1] : vector<8x16xf32> to vector<8xf32>
    %277 = vector.shape_cast %276 : vector<8xf32> to vector<8x1xf32>
    %278 = vector.broadcast %277 : vector<8x1xf32> to vector<8x16xf32>
    %279 = arith.subf %275, %278 : vector<8x16xf32>
    %280 = math.exp %279 : vector<8x16xf32>
    %cst_86 = arith.constant dense<0.000000e+00> : vector<8xf32>
    %281 = vector.multi_reduction <add>, %280, %cst_86 [1] : vector<8x16xf32> to vector<8xf32>
    %282 = vector.shape_cast %281 : vector<8xf32> to vector<8x1xf32>
    %283 = vector.broadcast %282 : vector<8x1xf32> to vector<8x16xf32>
    %284 = arith.divf %280, %283 : vector<8x16xf32>
    %285 = vector.broadcast %14 : vector<1x64xf32> to vector<16x64xf32>
    %286 = arith.mulf %255, %285 : vector<16x64xf32>
    %cst_87 = arith.constant dense<0.000000e+00> : vector<8x64xf32>
    %287 = tpu.matmul %284, %286, %cst_87 {dimension_numbers = #tpu.dot_dimension_numbers<[1], [0], [0], [1], [0, 0, 1, 1], [], []>} : vector<8x16xf32>, vector<16x64xf32>, vector<8x64xf32> -> vector<8x64xf32>
    %288 = arith.addf %272, %287 : vector<8x64xf32>
    %289 = vector.broadcast %21 : vector<1x64xf32> to vector<8x64xf32>
    %290 = arith.mulf %253, %289 : vector<8x64xf32>
    %cst_88 = arith.constant dense<0.000000e+00> : vector<8x16xf32>
    %291 = tpu.matmul %290, %254, %cst_88 {dimension_numbers = #tpu.dot_dimension_numbers<[1], [1], [0], [0], [0, 0, 1, 0], [], []>} : vector<8x64xf32>, vector<16x64xf32>, vector<8x16xf32> -> vector<8x16xf32>
    %cst_89 = arith.constant dense<0xFF800000> : vector<8xf32>
    %292 = vector.multi_reduction <maximumf>, %291, %cst_89 [1] : vector<8x16xf32> to vector<8xf32>
    %293 = vector.shape_cast %292 : vector<8xf32> to vector<8x1xf32>
    %294 = vector.broadcast %293 : vector<8x1xf32> to vector<8x16xf32>
    %295 = arith.subf %291, %294 : vector<8x16xf32>
    %296 = math.exp %295 : vector<8x16xf32>
    %cst_90 = arith.constant dense<0.000000e+00> : vector<8xf32>
    %297 = vector.multi_reduction <add>, %296, %cst_90 [1] : vector<8x16xf32> to vector<8xf32>
    %298 = vector.shape_cast %297 : vector<8xf32> to vector<8x1xf32>
    %299 = vector.broadcast %298 : vector<8x1xf32> to vector<8x16xf32>
    %300 = arith.divf %296, %299 : vector<8x16xf32>
    %301 = vector.broadcast %21 : vector<1x64xf32> to vector<16x64xf32>
    %302 = arith.mulf %255, %301 : vector<16x64xf32>
    %cst_91 = arith.constant dense<0.000000e+00> : vector<8x64xf32>
    %303 = tpu.matmul %300, %302, %cst_91 {dimension_numbers = #tpu.dot_dimension_numbers<[1], [0], [0], [1], [0, 0, 1, 1], [], []>} : vector<8x16xf32>, vector<16x64xf32>, vector<8x64xf32> -> vector<8x64xf32>
    %304 = arith.addf %288, %303 : vector<8x64xf32>
    %305 = vector.broadcast %28 : vector<1x64xf32> to vector<8x64xf32>
    %306 = arith.mulf %253, %305 : vector<8x64xf32>
    %cst_92 = arith.constant dense<0.000000e+00> : vector<8x16xf32>
    %307 = tpu.matmul %306, %254, %cst_92 {dimension_numbers = #tpu.dot_dimension_numbers<[1], [1], [0], [0], [0, 0, 1, 0], [], []>} : vector<8x64xf32>, vector<16x64xf32>, vector<8x16xf32> -> vector<8x16xf32>
    %cst_93 = arith.constant dense<0xFF800000> : vector<8xf32>
    %308 = vector.multi_reduction <maximumf>, %307, %cst_93 [1] : vector<8x16xf32> to vector<8xf32>
    %309 = vector.shape_cast %308 : vector<8xf32> to vector<8x1xf32>
    %310 = vector.broadcast %309 : vector<8x1xf32> to vector<8x16xf32>
    %311 = arith.subf %307, %310 : vector<8x16xf32>
    %312 = math.exp %311 : vector<8x16xf32>
    %cst_94 = arith.constant dense<0.000000e+00> : vector<8xf32>
    %313 = vector.multi_reduction <add>, %312, %cst_94 [1] : vector<8x16xf32> to vector<8xf32>
    %314 = vector.shape_cast %313 : vector<8xf32> to vector<8x1xf32>
    %315 = vector.broadcast %314 : vector<8x1xf32> to vector<8x16xf32>
    %316 = arith.divf %312, %315 : vector<8x16xf32>
    %317 = vector.broadcast %28 : vector<1x64xf32> to vector<16x64xf32>
    %318 = arith.mulf %255, %317 : vector<16x64xf32>
    %cst_95 = arith.constant dense<0.000000e+00> : vector<8x64xf32>
    %319 = tpu.matmul %316, %318, %cst_95 {dimension_numbers = #tpu.dot_dimension_numbers<[1], [0], [0], [1], [0, 0, 1, 1], [], []>} : vector<8x16xf32>, vector<16x64xf32>, vector<8x64xf32> -> vector<8x64xf32>
    %320 = arith.addf %304, %319 : vector<8x64xf32>
    %321 = vector.extract_strided_slice %242 {offsets = [8, 0], sizes = [8, 64], strides = [1, 1]} : vector<16x64xf32> to vector<8x64xf32>
    %cst_96 = arith.constant 2.500000e-01 : f32
    %322 = vector.broadcast %cst_96 : f32 to vector<8x64xf32>
    %323 = arith.mulf %321, %322 : vector<8x64xf32>
    %324 = vector.extract_strided_slice %249 {offsets = [16, 0], sizes = [16, 64], strides = [1, 1]} : vector<32x64xf32> to vector<16x64xf32>
    %325 = vector.extract_strided_slice %250 {offsets = [16, 0], sizes = [16, 64], strides = [1, 1]} : vector<32x64xf32> to vector<16x64xf32>
    %cst_97 = arith.constant 0.000000e+00 : f32
    %326 = vector.broadcast %cst_97 : f32 to vector<8x64xf32>
    %327 = vector.broadcast %7 : vector<1x64xf32> to vector<8x64xf32>
    %328 = arith.mulf %323, %327 : vector<8x64xf32>
    %cst_98 = arith.constant dense<0.000000e+00> : vector<8x16xf32>
    %329 = tpu.matmul %328, %324, %cst_98 {dimension_numbers = #tpu.dot_dimension_numbers<[1], [1], [0], [0], [0, 0, 1, 0], [], []>} : vector<8x64xf32>, vector<16x64xf32>, vector<8x16xf32> -> vector<8x16xf32>
    %cst_99 = arith.constant dense<0xFF800000> : vector<8xf32>
    %330 = vector.multi_reduction <maximumf>, %329, %cst_99 [1] : vector<8x16xf32> to vector<8xf32>
    %331 = vector.shape_cast %330 : vector<8xf32> to vector<8x1xf32>
    %332 = vector.broadcast %331 : vector<8x1xf32> to vector<8x16xf32>
    %333 = arith.subf %329, %332 : vector<8x16xf32>
    %334 = math.exp %333 : vector<8x16xf32>
    %cst_100 = arith.constant dense<0.000000e+00> : vector<8xf32>
    %335 = vector.multi_reduction <add>, %334, %cst_100 [1] : vector<8x16xf32> to vector<8xf32>
    %336 = vector.shape_cast %335 : vector<8xf32> to vector<8x1xf32>
    %337 = vector.broadcast %336 : vector<8x1xf32> to vector<8x16xf32>
    %338 = arith.divf %334, %337 : vector<8x16xf32>
    %339 = vector.broadcast %7 : vector<1x64xf32> to vector<16x64xf32>
    %340 = arith.mulf %325, %339 : vector<16x64xf32>
    %cst_101 = arith.constant dense<0.000000e+00> : vector<8x64xf32>
    %341 = tpu.matmul %338, %340, %cst_101 {dimension_numbers = #tpu.dot_dimension_numbers<[1], [0], [0], [1], [0, 0, 1, 1], [], []>} : vector<8x16xf32>, vector<16x64xf32>, vector<8x64xf32> -> vector<8x64xf32>
    %342 = arith.addf %326, %341 : vector<8x64xf32>
    %343 = vector.broadcast %14 : vector<1x64xf32> to vector<8x64xf32>
    %344 = arith.mulf %323, %343 : vector<8x64xf32>
    %cst_102 = arith.constant dense<0.000000e+00> : vector<8x16xf32>
    %345 = tpu.matmul %344, %324, %cst_102 {dimension_numbers = #tpu.dot_dimension_numbers<[1], [1], [0], [0], [0, 0, 1, 0], [], []>} : vector<8x64xf32>, vector<16x64xf32>, vector<8x16xf32> -> vector<8x16xf32>
    %cst_103 = arith.constant dense<0xFF800000> : vector<8xf32>
    %346 = vector.multi_reduction <maximumf>, %345, %cst_103 [1] : vector<8x16xf32> to vector<8xf32>
    %347 = vector.shape_cast %346 : vector<8xf32> to vector<8x1xf32>
    %348 = vector.broadcast %347 : vector<8x1xf32> to vector<8x16xf32>
    %349 = arith.subf %345, %348 : vector<8x16xf32>
    %350 = math.exp %349 : vector<8x16xf32>
    %cst_104 = arith.constant dense<0.000000e+00> : vector<8xf32>
    %351 = vector.multi_reduction <add>, %350, %cst_104 [1] : vector<8x16xf32> to vector<8xf32>
    %352 = vector.shape_cast %351 : vector<8xf32> to vector<8x1xf32>
    %353 = vector.broadcast %352 : vector<8x1xf32> to vector<8x16xf32>
    %354 = arith.divf %350, %353 : vector<8x16xf32>
    %355 = vector.broadcast %14 : vector<1x64xf32> to vector<16x64xf32>
    %356 = arith.mulf %325, %355 : vector<16x64xf32>
    %cst_105 = arith.constant dense<0.000000e+00> : vector<8x64xf32>
    %357 = tpu.matmul %354, %356, %cst_105 {dimension_numbers = #tpu.dot_dimension_numbers<[1], [0], [0], [1], [0, 0, 1, 1], [], []>} : vector<8x16xf32>, vector<16x64xf32>, vector<8x64xf32> -> vector<8x64xf32>
    %358 = arith.addf %342, %357 : vector<8x64xf32>
    %359 = vector.broadcast %21 : vector<1x64xf32> to vector<8x64xf32>
    %360 = arith.mulf %323, %359 : vector<8x64xf32>
    %cst_106 = arith.constant dense<0.000000e+00> : vector<8x16xf32>
    %361 = tpu.matmul %360, %324, %cst_106 {dimension_numbers = #tpu.dot_dimension_numbers<[1], [1], [0], [0], [0, 0, 1, 0], [], []>} : vector<8x64xf32>, vector<16x64xf32>, vector<8x16xf32> -> vector<8x16xf32>
    %cst_107 = arith.constant dense<0xFF800000> : vector<8xf32>
    %362 = vector.multi_reduction <maximumf>, %361, %cst_107 [1] : vector<8x16xf32> to vector<8xf32>
    %363 = vector.shape_cast %362 : vector<8xf32> to vector<8x1xf32>
    %364 = vector.broadcast %363 : vector<8x1xf32> to vector<8x16xf32>
    %365 = arith.subf %361, %364 : vector<8x16xf32>
    %366 = math.exp %365 : vector<8x16xf32>
    %cst_108 = arith.constant dense<0.000000e+00> : vector<8xf32>
    %367 = vector.multi_reduction <add>, %366, %cst_108 [1] : vector<8x16xf32> to vector<8xf32>
    %368 = vector.shape_cast %367 : vector<8xf32> to vector<8x1xf32>
    %369 = vector.broadcast %368 : vector<8x1xf32> to vector<8x16xf32>
    %370 = arith.divf %366, %369 : vector<8x16xf32>
    %371 = vector.broadcast %21 : vector<1x64xf32> to vector<16x64xf32>
    %372 = arith.mulf %325, %371 : vector<16x64xf32>
    %cst_109 = arith.constant dense<0.000000e+00> : vector<8x64xf32>
    %373 = tpu.matmul %370, %372, %cst_109 {dimension_numbers = #tpu.dot_dimension_numbers<[1], [0], [0], [1], [0, 0, 1, 1], [], []>} : vector<8x16xf32>, vector<16x64xf32>, vector<8x64xf32> -> vector<8x64xf32>
    %374 = arith.addf %358, %373 : vector<8x64xf32>
    %375 = vector.broadcast %28 : vector<1x64xf32> to vector<8x64xf32>
    %376 = arith.mulf %323, %375 : vector<8x64xf32>
    %cst_110 = arith.constant dense<0.000000e+00> : vector<8x16xf32>
    %377 = tpu.matmul %376, %324, %cst_110 {dimension_numbers = #tpu.dot_dimension_numbers<[1], [1], [0], [0], [0, 0, 1, 0], [], []>} : vector<8x64xf32>, vector<16x64xf32>, vector<8x16xf32> -> vector<8x16xf32>
    %cst_111 = arith.constant dense<0xFF800000> : vector<8xf32>
    %378 = vector.multi_reduction <maximumf>, %377, %cst_111 [1] : vector<8x16xf32> to vector<8xf32>
    %379 = vector.shape_cast %378 : vector<8xf32> to vector<8x1xf32>
    %380 = vector.broadcast %379 : vector<8x1xf32> to vector<8x16xf32>
    %381 = arith.subf %377, %380 : vector<8x16xf32>
    %382 = math.exp %381 : vector<8x16xf32>
    %cst_112 = arith.constant dense<0.000000e+00> : vector<8xf32>
    %383 = vector.multi_reduction <add>, %382, %cst_112 [1] : vector<8x16xf32> to vector<8xf32>
    %384 = vector.shape_cast %383 : vector<8xf32> to vector<8x1xf32>
    %385 = vector.broadcast %384 : vector<8x1xf32> to vector<8x16xf32>
    %386 = arith.divf %382, %385 : vector<8x16xf32>
    %387 = vector.broadcast %28 : vector<1x64xf32> to vector<16x64xf32>
    %388 = arith.mulf %325, %387 : vector<16x64xf32>
    %cst_113 = arith.constant dense<0.000000e+00> : vector<8x64xf32>
    %389 = tpu.matmul %386, %388, %cst_113 {dimension_numbers = #tpu.dot_dimension_numbers<[1], [0], [0], [1], [0, 0, 1, 1], [], []>} : vector<8x16xf32>, vector<16x64xf32>, vector<8x64xf32> -> vector<8x64xf32>
    %390 = arith.addf %374, %389 : vector<8x64xf32>
    %391 = tpu.concatenate %320, %390 in 0 : vector<8x64xf32>, vector<8x64xf32> -> vector<16x64xf32>
    %c0_114 = arith.constant 0 : index
    %c0_115 = arith.constant 0 : index
    %c0_116 = arith.constant 0 : index
    %392 = vector.load %arg14[%c0_114, %c0_115, %c0_116] : memref<2x64x64xbf16, #tpu.memory_space<vmem>>, vector<1x64x64xbf16>
    %393 = vector.shape_cast %392 : vector<1x64x64xbf16> to vector<64x64xbf16>
    %c9 = arith.constant 9 : index
    %c0_117 = arith.constant 0 : index
    %394 = vector.load %arg3[%c9, %c0_117] : memref<22x64xf32, #tpu.memory_space<vmem>>, vector<1x64xf32>
    %395 = arith.truncf %391 : vector<16x64xf32> to vector<16x64xbf16>
    %cst_118 = arith.constant dense<0.000000e+00> : vector<16x64xf32>
    %396 = tpu.matmul %395, %393, %cst_118 {dimension_numbers = #tpu.dot_dimension_numbers<[1], [0], [0], [1], [0, 0, 1, 1], [], []>} : vector<16x64xbf16>, vector<64x64xbf16>, vector<16x64xf32> -> vector<16x64xf32>
    %397 = vector.broadcast %394 : vector<1x64xf32> to vector<16x64xf32>
    %398 = arith.addf %396, %397 : vector<16x64xf32>
    %399 = arith.addf %235, %398 : vector<16x64xf32>
    %c10 = arith.constant 10 : index
    %c0_119 = arith.constant 0 : index
    %400 = vector.load %arg3[%c10, %c0_119] : memref<22x64xf32, #tpu.memory_space<vmem>>, vector<1x64xf32>
    %c11 = arith.constant 11 : index
    %c0_120 = arith.constant 0 : index
    %401 = vector.load %arg3[%c11, %c0_120] : memref<22x64xf32, #tpu.memory_space<vmem>>, vector<1x64xf32>
    %cst_121 = arith.constant dense<0.000000e+00> : vector<16xf32>
    %402 = vector.multi_reduction <add>, %399, %cst_121 [1] : vector<16x64xf32> to vector<16xf32>
    %403 = vector.shape_cast %402 : vector<16xf32> to vector<16x1xf32>
    %cst_122 = arith.constant 6.400000e+01 : f32
    %404 = vector.broadcast %cst_122 : f32 to vector<16x1xf32>
    %405 = arith.divf %403, %404 : vector<16x1xf32>
    %406 = vector.broadcast %405 : vector<16x1xf32> to vector<16x64xf32>
    %407 = arith.subf %399, %406 : vector<16x64xf32>
    %408 = arith.mulf %407, %407 : vector<16x64xf32>
    %cst_123 = arith.constant dense<0.000000e+00> : vector<16xf32>
    %409 = vector.multi_reduction <add>, %408, %cst_123 [1] : vector<16x64xf32> to vector<16xf32>
    %410 = vector.shape_cast %409 : vector<16xf32> to vector<16x1xf32>
    %cst_124 = arith.constant 6.400000e+01 : f32
    %411 = vector.broadcast %cst_124 : f32 to vector<16x1xf32>
    %412 = arith.divf %410, %411 : vector<16x1xf32>
    %cst_125 = arith.constant 9.99999996E-13 : f32
    %413 = vector.broadcast %cst_125 : f32 to vector<16x1xf32>
    %414 = arith.addf %412, %413 : vector<16x1xf32>
    %415 = math.rsqrt %414 : vector<16x1xf32>
    %416 = vector.broadcast %415 : vector<16x1xf32> to vector<16x64xf32>
    %417 = arith.mulf %407, %416 : vector<16x64xf32>
    %418 = vector.broadcast %400 : vector<1x64xf32> to vector<16x64xf32>
    %419 = arith.mulf %417, %418 : vector<16x64xf32>
    %420 = vector.broadcast %401 : vector<1x64xf32> to vector<16x64xf32>
    %421 = arith.addf %419, %420 : vector<16x64xf32>
    %c0_126 = arith.constant 0 : index
    %c0_127 = arith.constant 0 : index
    %c0_128 = arith.constant 0 : index
    %422 = vector.load %arg10[%c0_126, %c0_127, %c0_128] : memref<2x64x128xbf16, #tpu.memory_space<vmem>>, vector<1x64x128xbf16>
    %423 = vector.shape_cast %422 : vector<1x64x128xbf16> to vector<64x128xbf16>
    %c0_129 = arith.constant 0 : index
    %c0_130 = arith.constant 0 : index
    %424 = vector.load %arg5[%c0_129, %c0_130] : memref<2x128xf32, #tpu.memory_space<vmem>>, vector<1x128xf32>
    %425 = arith.truncf %421 : vector<16x64xf32> to vector<16x64xbf16>
    %cst_131 = arith.constant dense<0.000000e+00> : vector<16x128xf32>
    %426 = tpu.matmul %425, %423, %cst_131 {dimension_numbers = #tpu.dot_dimension_numbers<[1], [0], [0], [1], [0, 0, 1, 1], [], []>} : vector<16x64xbf16>, vector<64x128xbf16>, vector<16x128xf32> -> vector<16x128xf32>
    %427 = vector.broadcast %424 : vector<1x128xf32> to vector<16x128xf32>
    %428 = arith.addf %426, %427 : vector<16x128xf32>
    %cst_132 = arith.constant 5.000000e-01 : f32
    %429 = vector.broadcast %cst_132 : f32 to vector<16x128xf32>
    %430 = arith.mulf %429, %428 : vector<16x128xf32>
    %cst_133 = arith.constant 0.707106769 : f32
    %431 = vector.broadcast %cst_133 : f32 to vector<16x128xf32>
    %432 = arith.mulf %428, %431 : vector<16x128xf32>
    %433 = math.erf %432 : vector<16x128xf32>
    %cst_134 = arith.constant 1.000000e+00 : f32
    %434 = vector.broadcast %cst_134 : f32 to vector<16x128xf32>
    %435 = arith.addf %434, %433 : vector<16x128xf32>
    %436 = arith.mulf %430, %435 : vector<16x128xf32>
    %c0_135 = arith.constant 0 : index
    %c0_136 = arith.constant 0 : index
    %c0_137 = arith.constant 0 : index
    %437 = vector.load %arg11[%c0_135, %c0_136, %c0_137] : memref<2x128x64xbf16, #tpu.memory_space<vmem>>, vector<1x128x64xbf16>
    %438 = vector.shape_cast %437 : vector<1x128x64xbf16> to vector<128x64xbf16>
    %c5 = arith.constant 5 : index
    %c0_138 = arith.constant 0 : index
    %439 = vector.load %arg3[%c5, %c0_138] : memref<22x64xf32, #tpu.memory_space<vmem>>, vector<1x64xf32>
    %440 = arith.truncf %436 : vector<16x128xf32> to vector<16x128xbf16>
    %cst_139 = arith.constant dense<0.000000e+00> : vector<16x64xf32>
    %441 = tpu.matmul %440, %438, %cst_139 {dimension_numbers = #tpu.dot_dimension_numbers<[1], [0], [0], [1], [0, 0, 1, 1], [], []>} : vector<16x128xbf16>, vector<128x64xbf16>, vector<16x64xf32> -> vector<16x64xf32>
    %442 = vector.broadcast %439 : vector<1x64xf32> to vector<16x64xf32>
    %443 = arith.addf %441, %442 : vector<16x64xf32>
    %444 = arith.addf %421, %443 : vector<16x64xf32>
    %c6 = arith.constant 6 : index
    %c0_140 = arith.constant 0 : index
    %445 = vector.load %arg3[%c6, %c0_140] : memref<22x64xf32, #tpu.memory_space<vmem>>, vector<1x64xf32>
    %c7 = arith.constant 7 : index
    %c0_141 = arith.constant 0 : index
    %446 = vector.load %arg3[%c7, %c0_141] : memref<22x64xf32, #tpu.memory_space<vmem>>, vector<1x64xf32>
    %cst_142 = arith.constant dense<0.000000e+00> : vector<16xf32>
    %447 = vector.multi_reduction <add>, %444, %cst_142 [1] : vector<16x64xf32> to vector<16xf32>
    %448 = vector.shape_cast %447 : vector<16xf32> to vector<16x1xf32>
    %cst_143 = arith.constant 6.400000e+01 : f32
    %449 = vector.broadcast %cst_143 : f32 to vector<16x1xf32>
    %450 = arith.divf %448, %449 : vector<16x1xf32>
    %451 = vector.broadcast %450 : vector<16x1xf32> to vector<16x64xf32>
    %452 = arith.subf %444, %451 : vector<16x64xf32>
    %453 = arith.mulf %452, %452 : vector<16x64xf32>
    %cst_144 = arith.constant dense<0.000000e+00> : vector<16xf32>
    %454 = vector.multi_reduction <add>, %453, %cst_144 [1] : vector<16x64xf32> to vector<16xf32>
    %455 = vector.shape_cast %454 : vector<16xf32> to vector<16x1xf32>
    %cst_145 = arith.constant 6.400000e+01 : f32
    %456 = vector.broadcast %cst_145 : f32 to vector<16x1xf32>
    %457 = arith.divf %455, %456 : vector<16x1xf32>
    %cst_146 = arith.constant 9.99999996E-13 : f32
    %458 = vector.broadcast %cst_146 : f32 to vector<16x1xf32>
    %459 = arith.addf %457, %458 : vector<16x1xf32>
    %460 = math.rsqrt %459 : vector<16x1xf32>
    %461 = vector.broadcast %460 : vector<16x1xf32> to vector<16x64xf32>
    %462 = arith.mulf %452, %461 : vector<16x64xf32>
    %463 = vector.broadcast %445 : vector<1x64xf32> to vector<16x64xf32>
    %464 = arith.mulf %462, %463 : vector<16x64xf32>
    %465 = vector.broadcast %446 : vector<1x64xf32> to vector<16x64xf32>
    %466 = arith.addf %464, %465 : vector<16x64xf32>
    %c1_147 = arith.constant 1 : index
    %c0_148 = arith.constant 0 : index
    %c0_149 = arith.constant 0 : index
    %467 = vector.load %arg8[%c1_147, %c0_148, %c0_149] : memref<2x64x192xbf16, #tpu.memory_space<vmem>>, vector<1x64x192xbf16>
    %468 = vector.shape_cast %467 : vector<1x64x192xbf16> to vector<64x192xbf16>
    %c1_150 = arith.constant 1 : index
    %c0_151 = arith.constant 0 : index
    %469 = vector.load %arg4[%c1_150, %c0_151] : memref<2x192xf32, #tpu.memory_space<vmem>>, vector<1x192xf32>
    %470 = arith.truncf %466 : vector<16x64xf32> to vector<16x64xbf16>
    %cst_152 = arith.constant dense<0.000000e+00> : vector<16x192xf32>
    %471 = tpu.matmul %470, %468, %cst_152 {dimension_numbers = #tpu.dot_dimension_numbers<[1], [0], [0], [1], [0, 0, 1, 1], [], []>} : vector<16x64xbf16>, vector<64x192xbf16>, vector<16x192xf32> -> vector<16x192xf32>
    %472 = vector.broadcast %469 : vector<1x192xf32> to vector<16x192xf32>
    %473 = arith.addf %471, %472 : vector<16x192xf32>
    %474 = vector.extract_strided_slice %473 {offsets = [0, 0], sizes = [16, 64], strides = [1, 1]} : vector<16x192xf32> to vector<16x64xf32>
    %475 = vector.extract_strided_slice %473 {offsets = [0, 64], sizes = [16, 64], strides = [1, 1]} : vector<16x192xf32> to vector<16x64xf32>
    %476 = vector.extract_strided_slice %473 {offsets = [0, 128], sizes = [16, 64], strides = [1, 1]} : vector<16x192xf32> to vector<16x64xf32>
    %477 = vector.extract_strided_slice %474 {offsets = [0, 0], sizes = [8, 64], strides = [1, 1]} : vector<16x64xf32> to vector<8x64xf32>
    %cst_153 = arith.constant 2.500000e-01 : f32
    %478 = vector.broadcast %cst_153 : f32 to vector<8x64xf32>
    %479 = arith.mulf %477, %478 : vector<8x64xf32>
    %480 = vector.extract_strided_slice %475 {offsets = [0, 0], sizes = [8, 64], strides = [1, 1]} : vector<16x64xf32> to vector<8x64xf32>
    %481 = vector.extract_strided_slice %476 {offsets = [0, 0], sizes = [8, 64], strides = [1, 1]} : vector<16x64xf32> to vector<8x64xf32>
    %cst_154 = arith.constant 0.000000e+00 : f32
    %482 = vector.broadcast %cst_154 : f32 to vector<8x64xf32>
    %483 = vector.broadcast %7 : vector<1x64xf32> to vector<8x64xf32>
    %484 = arith.mulf %479, %483 : vector<8x64xf32>
    %cst_155 = arith.constant dense<0.000000e+00> : vector<8x8xf32>
    %485 = tpu.matmul %484, %480, %cst_155 {dimension_numbers = #tpu.dot_dimension_numbers<[1], [1], [0], [0], [0, 0, 1, 0], [], []>} : vector<8x64xf32>, vector<8x64xf32>, vector<8x8xf32> -> vector<8x8xf32>
    %cst_156 = arith.constant dense<0xFF800000> : vector<8xf32>
    %486 = vector.multi_reduction <maximumf>, %485, %cst_156 [1] : vector<8x8xf32> to vector<8xf32>
    %487 = vector.shape_cast %486 : vector<8xf32> to vector<8x1xf32>
    %488 = vector.broadcast %487 : vector<8x1xf32> to vector<8x8xf32>
    %489 = arith.subf %485, %488 : vector<8x8xf32>
    %490 = math.exp %489 : vector<8x8xf32>
    %cst_157 = arith.constant dense<0.000000e+00> : vector<8xf32>
    %491 = vector.multi_reduction <add>, %490, %cst_157 [1] : vector<8x8xf32> to vector<8xf32>
    %492 = vector.shape_cast %491 : vector<8xf32> to vector<8x1xf32>
    %493 = vector.broadcast %492 : vector<8x1xf32> to vector<8x8xf32>
    %494 = arith.divf %490, %493 : vector<8x8xf32>
    %495 = vector.broadcast %7 : vector<1x64xf32> to vector<8x64xf32>
    %496 = arith.mulf %481, %495 : vector<8x64xf32>
    %cst_158 = arith.constant dense<0.000000e+00> : vector<8x64xf32>
    %497 = tpu.matmul %494, %496, %cst_158 {dimension_numbers = #tpu.dot_dimension_numbers<[1], [0], [0], [1], [0, 0, 1, 1], [], []>} : vector<8x8xf32>, vector<8x64xf32>, vector<8x64xf32> -> vector<8x64xf32>
    %498 = arith.addf %482, %497 : vector<8x64xf32>
    %499 = vector.broadcast %14 : vector<1x64xf32> to vector<8x64xf32>
    %500 = arith.mulf %479, %499 : vector<8x64xf32>
    %cst_159 = arith.constant dense<0.000000e+00> : vector<8x8xf32>
    %501 = tpu.matmul %500, %480, %cst_159 {dimension_numbers = #tpu.dot_dimension_numbers<[1], [1], [0], [0], [0, 0, 1, 0], [], []>} : vector<8x64xf32>, vector<8x64xf32>, vector<8x8xf32> -> vector<8x8xf32>
    %cst_160 = arith.constant dense<0xFF800000> : vector<8xf32>
    %502 = vector.multi_reduction <maximumf>, %501, %cst_160 [1] : vector<8x8xf32> to vector<8xf32>
    %503 = vector.shape_cast %502 : vector<8xf32> to vector<8x1xf32>
    %504 = vector.broadcast %503 : vector<8x1xf32> to vector<8x8xf32>
    %505 = arith.subf %501, %504 : vector<8x8xf32>
    %506 = math.exp %505 : vector<8x8xf32>
    %cst_161 = arith.constant dense<0.000000e+00> : vector<8xf32>
    %507 = vector.multi_reduction <add>, %506, %cst_161 [1] : vector<8x8xf32> to vector<8xf32>
    %508 = vector.shape_cast %507 : vector<8xf32> to vector<8x1xf32>
    %509 = vector.broadcast %508 : vector<8x1xf32> to vector<8x8xf32>
    %510 = arith.divf %506, %509 : vector<8x8xf32>
    %511 = vector.broadcast %14 : vector<1x64xf32> to vector<8x64xf32>
    %512 = arith.mulf %481, %511 : vector<8x64xf32>
    %cst_162 = arith.constant dense<0.000000e+00> : vector<8x64xf32>
    %513 = tpu.matmul %510, %512, %cst_162 {dimension_numbers = #tpu.dot_dimension_numbers<[1], [0], [0], [1], [0, 0, 1, 1], [], []>} : vector<8x8xf32>, vector<8x64xf32>, vector<8x64xf32> -> vector<8x64xf32>
    %514 = arith.addf %498, %513 : vector<8x64xf32>
    %515 = vector.broadcast %21 : vector<1x64xf32> to vector<8x64xf32>
    %516 = arith.mulf %479, %515 : vector<8x64xf32>
    %cst_163 = arith.constant dense<0.000000e+00> : vector<8x8xf32>
    %517 = tpu.matmul %516, %480, %cst_163 {dimension_numbers = #tpu.dot_dimension_numbers<[1], [1], [0], [0], [0, 0, 1, 0], [], []>} : vector<8x64xf32>, vector<8x64xf32>, vector<8x8xf32> -> vector<8x8xf32>
    %cst_164 = arith.constant dense<0xFF800000> : vector<8xf32>
    %518 = vector.multi_reduction <maximumf>, %517, %cst_164 [1] : vector<8x8xf32> to vector<8xf32>
    %519 = vector.shape_cast %518 : vector<8xf32> to vector<8x1xf32>
    %520 = vector.broadcast %519 : vector<8x1xf32> to vector<8x8xf32>
    %521 = arith.subf %517, %520 : vector<8x8xf32>
    %522 = math.exp %521 : vector<8x8xf32>
    %cst_165 = arith.constant dense<0.000000e+00> : vector<8xf32>
    %523 = vector.multi_reduction <add>, %522, %cst_165 [1] : vector<8x8xf32> to vector<8xf32>
    %524 = vector.shape_cast %523 : vector<8xf32> to vector<8x1xf32>
    %525 = vector.broadcast %524 : vector<8x1xf32> to vector<8x8xf32>
    %526 = arith.divf %522, %525 : vector<8x8xf32>
    %527 = vector.broadcast %21 : vector<1x64xf32> to vector<8x64xf32>
    %528 = arith.mulf %481, %527 : vector<8x64xf32>
    %cst_166 = arith.constant dense<0.000000e+00> : vector<8x64xf32>
    %529 = tpu.matmul %526, %528, %cst_166 {dimension_numbers = #tpu.dot_dimension_numbers<[1], [0], [0], [1], [0, 0, 1, 1], [], []>} : vector<8x8xf32>, vector<8x64xf32>, vector<8x64xf32> -> vector<8x64xf32>
    %530 = arith.addf %514, %529 : vector<8x64xf32>
    %531 = vector.broadcast %28 : vector<1x64xf32> to vector<8x64xf32>
    %532 = arith.mulf %479, %531 : vector<8x64xf32>
    %cst_167 = arith.constant dense<0.000000e+00> : vector<8x8xf32>
    %533 = tpu.matmul %532, %480, %cst_167 {dimension_numbers = #tpu.dot_dimension_numbers<[1], [1], [0], [0], [0, 0, 1, 0], [], []>} : vector<8x64xf32>, vector<8x64xf32>, vector<8x8xf32> -> vector<8x8xf32>
    %cst_168 = arith.constant dense<0xFF800000> : vector<8xf32>
    %534 = vector.multi_reduction <maximumf>, %533, %cst_168 [1] : vector<8x8xf32> to vector<8xf32>
    %535 = vector.shape_cast %534 : vector<8xf32> to vector<8x1xf32>
    %536 = vector.broadcast %535 : vector<8x1xf32> to vector<8x8xf32>
    %537 = arith.subf %533, %536 : vector<8x8xf32>
    %538 = math.exp %537 : vector<8x8xf32>
    %cst_169 = arith.constant dense<0.000000e+00> : vector<8xf32>
    %539 = vector.multi_reduction <add>, %538, %cst_169 [1] : vector<8x8xf32> to vector<8xf32>
    %540 = vector.shape_cast %539 : vector<8xf32> to vector<8x1xf32>
    %541 = vector.broadcast %540 : vector<8x1xf32> to vector<8x8xf32>
    %542 = arith.divf %538, %541 : vector<8x8xf32>
    %543 = vector.broadcast %28 : vector<1x64xf32> to vector<8x64xf32>
    %544 = arith.mulf %481, %543 : vector<8x64xf32>
    %cst_170 = arith.constant dense<0.000000e+00> : vector<8x64xf32>
    %545 = tpu.matmul %542, %544, %cst_170 {dimension_numbers = #tpu.dot_dimension_numbers<[1], [0], [0], [1], [0, 0, 1, 1], [], []>} : vector<8x8xf32>, vector<8x64xf32>, vector<8x64xf32> -> vector<8x64xf32>
    %546 = arith.addf %530, %545 : vector<8x64xf32>
    %547 = vector.extract_strided_slice %474 {offsets = [8, 0], sizes = [8, 64], strides = [1, 1]} : vector<16x64xf32> to vector<8x64xf32>
    %cst_171 = arith.constant 2.500000e-01 : f32
    %548 = vector.broadcast %cst_171 : f32 to vector<8x64xf32>
    %549 = arith.mulf %547, %548 : vector<8x64xf32>
    %550 = vector.extract_strided_slice %475 {offsets = [8, 0], sizes = [8, 64], strides = [1, 1]} : vector<16x64xf32> to vector<8x64xf32>
    %551 = vector.extract_strided_slice %476 {offsets = [8, 0], sizes = [8, 64], strides = [1, 1]} : vector<16x64xf32> to vector<8x64xf32>
    %cst_172 = arith.constant 0.000000e+00 : f32
    %552 = vector.broadcast %cst_172 : f32 to vector<8x64xf32>
    %553 = vector.broadcast %7 : vector<1x64xf32> to vector<8x64xf32>
    %554 = arith.mulf %549, %553 : vector<8x64xf32>
    %cst_173 = arith.constant dense<0.000000e+00> : vector<8x8xf32>
    %555 = tpu.matmul %554, %550, %cst_173 {dimension_numbers = #tpu.dot_dimension_numbers<[1], [1], [0], [0], [0, 0, 1, 0], [], []>} : vector<8x64xf32>, vector<8x64xf32>, vector<8x8xf32> -> vector<8x8xf32>
    %cst_174 = arith.constant dense<0xFF800000> : vector<8xf32>
    %556 = vector.multi_reduction <maximumf>, %555, %cst_174 [1] : vector<8x8xf32> to vector<8xf32>
    %557 = vector.shape_cast %556 : vector<8xf32> to vector<8x1xf32>
    %558 = vector.broadcast %557 : vector<8x1xf32> to vector<8x8xf32>
    %559 = arith.subf %555, %558 : vector<8x8xf32>
    %560 = math.exp %559 : vector<8x8xf32>
    %cst_175 = arith.constant dense<0.000000e+00> : vector<8xf32>
    %561 = vector.multi_reduction <add>, %560, %cst_175 [1] : vector<8x8xf32> to vector<8xf32>
    %562 = vector.shape_cast %561 : vector<8xf32> to vector<8x1xf32>
    %563 = vector.broadcast %562 : vector<8x1xf32> to vector<8x8xf32>
    %564 = arith.divf %560, %563 : vector<8x8xf32>
    %565 = vector.broadcast %7 : vector<1x64xf32> to vector<8x64xf32>
    %566 = arith.mulf %551, %565 : vector<8x64xf32>
    %cst_176 = arith.constant dense<0.000000e+00> : vector<8x64xf32>
    %567 = tpu.matmul %564, %566, %cst_176 {dimension_numbers = #tpu.dot_dimension_numbers<[1], [0], [0], [1], [0, 0, 1, 1], [], []>} : vector<8x8xf32>, vector<8x64xf32>, vector<8x64xf32> -> vector<8x64xf32>
    %568 = arith.addf %552, %567 : vector<8x64xf32>
    %569 = vector.broadcast %14 : vector<1x64xf32> to vector<8x64xf32>
    %570 = arith.mulf %549, %569 : vector<8x64xf32>
    %cst_177 = arith.constant dense<0.000000e+00> : vector<8x8xf32>
    %571 = tpu.matmul %570, %550, %cst_177 {dimension_numbers = #tpu.dot_dimension_numbers<[1], [1], [0], [0], [0, 0, 1, 0], [], []>} : vector<8x64xf32>, vector<8x64xf32>, vector<8x8xf32> -> vector<8x8xf32>
    %cst_178 = arith.constant dense<0xFF800000> : vector<8xf32>
    %572 = vector.multi_reduction <maximumf>, %571, %cst_178 [1] : vector<8x8xf32> to vector<8xf32>
    %573 = vector.shape_cast %572 : vector<8xf32> to vector<8x1xf32>
    %574 = vector.broadcast %573 : vector<8x1xf32> to vector<8x8xf32>
    %575 = arith.subf %571, %574 : vector<8x8xf32>
    %576 = math.exp %575 : vector<8x8xf32>
    %cst_179 = arith.constant dense<0.000000e+00> : vector<8xf32>
    %577 = vector.multi_reduction <add>, %576, %cst_179 [1] : vector<8x8xf32> to vector<8xf32>
    %578 = vector.shape_cast %577 : vector<8xf32> to vector<8x1xf32>
    %579 = vector.broadcast %578 : vector<8x1xf32> to vector<8x8xf32>
    %580 = arith.divf %576, %579 : vector<8x8xf32>
    %581 = vector.broadcast %14 : vector<1x64xf32> to vector<8x64xf32>
    %582 = arith.mulf %551, %581 : vector<8x64xf32>
    %cst_180 = arith.constant dense<0.000000e+00> : vector<8x64xf32>
    %583 = tpu.matmul %580, %582, %cst_180 {dimension_numbers = #tpu.dot_dimension_numbers<[1], [0], [0], [1], [0, 0, 1, 1], [], []>} : vector<8x8xf32>, vector<8x64xf32>, vector<8x64xf32> -> vector<8x64xf32>
    %584 = arith.addf %568, %583 : vector<8x64xf32>
    %585 = vector.broadcast %21 : vector<1x64xf32> to vector<8x64xf32>
    %586 = arith.mulf %549, %585 : vector<8x64xf32>
    %cst_181 = arith.constant dense<0.000000e+00> : vector<8x8xf32>
    %587 = tpu.matmul %586, %550, %cst_181 {dimension_numbers = #tpu.dot_dimension_numbers<[1], [1], [0], [0], [0, 0, 1, 0], [], []>} : vector<8x64xf32>, vector<8x64xf32>, vector<8x8xf32> -> vector<8x8xf32>
    %cst_182 = arith.constant dense<0xFF800000> : vector<8xf32>
    %588 = vector.multi_reduction <maximumf>, %587, %cst_182 [1] : vector<8x8xf32> to vector<8xf32>
    %589 = vector.shape_cast %588 : vector<8xf32> to vector<8x1xf32>
    %590 = vector.broadcast %589 : vector<8x1xf32> to vector<8x8xf32>
    %591 = arith.subf %587, %590 : vector<8x8xf32>
    %592 = math.exp %591 : vector<8x8xf32>
    %cst_183 = arith.constant dense<0.000000e+00> : vector<8xf32>
    %593 = vector.multi_reduction <add>, %592, %cst_183 [1] : vector<8x8xf32> to vector<8xf32>
    %594 = vector.shape_cast %593 : vector<8xf32> to vector<8x1xf32>
    %595 = vector.broadcast %594 : vector<8x1xf32> to vector<8x8xf32>
    %596 = arith.divf %592, %595 : vector<8x8xf32>
    %597 = vector.broadcast %21 : vector<1x64xf32> to vector<8x64xf32>
    %598 = arith.mulf %551, %597 : vector<8x64xf32>
    %cst_184 = arith.constant dense<0.000000e+00> : vector<8x64xf32>
    %599 = tpu.matmul %596, %598, %cst_184 {dimension_numbers = #tpu.dot_dimension_numbers<[1], [0], [0], [1], [0, 0, 1, 1], [], []>} : vector<8x8xf32>, vector<8x64xf32>, vector<8x64xf32> -> vector<8x64xf32>
    %600 = arith.addf %584, %599 : vector<8x64xf32>
    %601 = vector.broadcast %28 : vector<1x64xf32> to vector<8x64xf32>
    %602 = arith.mulf %549, %601 : vector<8x64xf32>
    %cst_185 = arith.constant dense<0.000000e+00> : vector<8x8xf32>
    %603 = tpu.matmul %602, %550, %cst_185 {dimension_numbers = #tpu.dot_dimension_numbers<[1], [1], [0], [0], [0, 0, 1, 0], [], []>} : vector<8x64xf32>, vector<8x64xf32>, vector<8x8xf32> -> vector<8x8xf32>
    %cst_186 = arith.constant dense<0xFF800000> : vector<8xf32>
    %604 = vector.multi_reduction <maximumf>, %603, %cst_186 [1] : vector<8x8xf32> to vector<8xf32>
    %605 = vector.shape_cast %604 : vector<8xf32> to vector<8x1xf32>
    %606 = vector.broadcast %605 : vector<8x1xf32> to vector<8x8xf32>
    %607 = arith.subf %603, %606 : vector<8x8xf32>
    %608 = math.exp %607 : vector<8x8xf32>
    %cst_187 = arith.constant dense<0.000000e+00> : vector<8xf32>
    %609 = vector.multi_reduction <add>, %608, %cst_187 [1] : vector<8x8xf32> to vector<8xf32>
    %610 = vector.shape_cast %609 : vector<8xf32> to vector<8x1xf32>
    %611 = vector.broadcast %610 : vector<8x1xf32> to vector<8x8xf32>
    %612 = arith.divf %608, %611 : vector<8x8xf32>
    %613 = vector.broadcast %28 : vector<1x64xf32> to vector<8x64xf32>
    %614 = arith.mulf %551, %613 : vector<8x64xf32>
    %cst_188 = arith.constant dense<0.000000e+00> : vector<8x64xf32>
    %615 = tpu.matmul %612, %614, %cst_188 {dimension_numbers = #tpu.dot_dimension_numbers<[1], [0], [0], [1], [0, 0, 1, 1], [], []>} : vector<8x8xf32>, vector<8x64xf32>, vector<8x64xf32> -> vector<8x64xf32>
    %616 = arith.addf %600, %615 : vector<8x64xf32>
    %617 = tpu.concatenate %546, %616 in 0 : vector<8x64xf32>, vector<8x64xf32> -> vector<16x64xf32>
    %c1_189 = arith.constant 1 : index
    %c0_190 = arith.constant 0 : index
    %c0_191 = arith.constant 0 : index
    %618 = vector.load %arg9[%c1_189, %c0_190, %c0_191] : memref<2x64x64xbf16, #tpu.memory_space<vmem>>, vector<1x64x64xbf16>
    %619 = vector.shape_cast %618 : vector<1x64x64xbf16> to vector<64x64xbf16>
    %c12 = arith.constant 12 : index
    %c0_192 = arith.constant 0 : index
    %620 = vector.load %arg3[%c12, %c0_192] : memref<22x64xf32, #tpu.memory_space<vmem>>, vector<1x64xf32>
    %621 = arith.truncf %617 : vector<16x64xf32> to vector<16x64xbf16>
    %cst_193 = arith.constant dense<0.000000e+00> : vector<16x64xf32>
    %622 = tpu.matmul %621, %619, %cst_193 {dimension_numbers = #tpu.dot_dimension_numbers<[1], [0], [0], [1], [0, 0, 1, 1], [], []>} : vector<16x64xbf16>, vector<64x64xbf16>, vector<16x64xf32> -> vector<16x64xf32>
    %623 = vector.broadcast %620 : vector<1x64xf32> to vector<16x64xf32>
    %624 = arith.addf %622, %623 : vector<16x64xf32>
    %625 = arith.addf %466, %624 : vector<16x64xf32>
    %c13 = arith.constant 13 : index
    %c0_194 = arith.constant 0 : index
    %626 = vector.load %arg3[%c13, %c0_194] : memref<22x64xf32, #tpu.memory_space<vmem>>, vector<1x64xf32>
    %c14 = arith.constant 14 : index
    %c0_195 = arith.constant 0 : index
    %627 = vector.load %arg3[%c14, %c0_195] : memref<22x64xf32, #tpu.memory_space<vmem>>, vector<1x64xf32>
    %cst_196 = arith.constant dense<0.000000e+00> : vector<16xf32>
    %628 = vector.multi_reduction <add>, %625, %cst_196 [1] : vector<16x64xf32> to vector<16xf32>
    %629 = vector.shape_cast %628 : vector<16xf32> to vector<16x1xf32>
    %cst_197 = arith.constant 6.400000e+01 : f32
    %630 = vector.broadcast %cst_197 : f32 to vector<16x1xf32>
    %631 = arith.divf %629, %630 : vector<16x1xf32>
    %632 = vector.broadcast %631 : vector<16x1xf32> to vector<16x64xf32>
    %633 = arith.subf %625, %632 : vector<16x64xf32>
    %634 = arith.mulf %633, %633 : vector<16x64xf32>
    %cst_198 = arith.constant dense<0.000000e+00> : vector<16xf32>
    %635 = vector.multi_reduction <add>, %634, %cst_198 [1] : vector<16x64xf32> to vector<16xf32>
    %636 = vector.shape_cast %635 : vector<16xf32> to vector<16x1xf32>
    %cst_199 = arith.constant 6.400000e+01 : f32
    %637 = vector.broadcast %cst_199 : f32 to vector<16x1xf32>
    %638 = arith.divf %636, %637 : vector<16x1xf32>
    %cst_200 = arith.constant 9.99999996E-13 : f32
    %639 = vector.broadcast %cst_200 : f32 to vector<16x1xf32>
    %640 = arith.addf %638, %639 : vector<16x1xf32>
    %641 = math.rsqrt %640 : vector<16x1xf32>
    %642 = vector.broadcast %641 : vector<16x1xf32> to vector<16x64xf32>
    %643 = arith.mulf %633, %642 : vector<16x64xf32>
    %644 = vector.broadcast %626 : vector<1x64xf32> to vector<16x64xf32>
    %645 = arith.mulf %643, %644 : vector<16x64xf32>
    %646 = vector.broadcast %627 : vector<1x64xf32> to vector<16x64xf32>
    %647 = arith.addf %645, %646 : vector<16x64xf32>
    %c1_201 = arith.constant 1 : index
    %c0_202 = arith.constant 0 : index
    %c0_203 = arith.constant 0 : index
    %648 = vector.load %arg12[%c1_201, %c0_202, %c0_203] : memref<2x64x64xbf16, #tpu.memory_space<vmem>>, vector<1x64x64xbf16>
    %649 = vector.shape_cast %648 : vector<1x64x64xbf16> to vector<64x64xbf16>
    %c18 = arith.constant 18 : index
    %c0_204 = arith.constant 0 : index
    %650 = vector.load %arg3[%c18, %c0_204] : memref<22x64xf32, #tpu.memory_space<vmem>>, vector<1x64xf32>
    %651 = arith.truncf %647 : vector<16x64xf32> to vector<16x64xbf16>
    %cst_205 = arith.constant dense<0.000000e+00> : vector<16x64xf32>
    %652 = tpu.matmul %651, %649, %cst_205 {dimension_numbers = #tpu.dot_dimension_numbers<[1], [0], [0], [1], [0, 0, 1, 1], [], []>} : vector<16x64xbf16>, vector<64x64xbf16>, vector<16x64xf32> -> vector<16x64xf32>
    %653 = vector.broadcast %650 : vector<1x64xf32> to vector<16x64xf32>
    %654 = arith.addf %652, %653 : vector<16x64xf32>
    %c1_206 = arith.constant 1 : index
    %c0_207 = arith.constant 0 : index
    %c0_208 = arith.constant 0 : index
    %655 = vector.load %arg13[%c1_206, %c0_207, %c0_208] : memref<2x32x128xbf16, #tpu.memory_space<vmem>>, vector<1x32x128xbf16>
    %656 = vector.shape_cast %655 : vector<1x32x128xbf16> to vector<32x128xbf16>
    %c1_209 = arith.constant 1 : index
    %c0_210 = arith.constant 0 : index
    %657 = vector.load %arg6[%c1_209, %c0_210] : memref<2x128xf32, #tpu.memory_space<vmem>>, vector<1x128xf32>
    %cst_211 = arith.constant dense<0.000000e+00> : vector<32x128xf32>
    %658 = tpu.matmul %30, %656, %cst_211 {dimension_numbers = #tpu.dot_dimension_numbers<[1], [0], [0], [1], [0, 0, 1, 1], [], []>} : vector<32x32xbf16>, vector<32x128xbf16>, vector<32x128xf32> -> vector<32x128xf32>
    %659 = vector.broadcast %657 : vector<1x128xf32> to vector<32x128xf32>
    %660 = arith.addf %658, %659 : vector<32x128xf32>
    %661 = vector.extract_strided_slice %660 {offsets = [0, 0], sizes = [32, 64], strides = [1, 1]} : vector<32x128xf32> to vector<32x64xf32>
    %662 = vector.extract_strided_slice %660 {offsets = [0, 64], sizes = [32, 64], strides = [1, 1]} : vector<32x128xf32> to vector<32x64xf32>
    %663 = vector.extract_strided_slice %654 {offsets = [0, 0], sizes = [8, 64], strides = [1, 1]} : vector<16x64xf32> to vector<8x64xf32>
    %cst_212 = arith.constant 2.500000e-01 : f32
    %664 = vector.broadcast %cst_212 : f32 to vector<8x64xf32>
    %665 = arith.mulf %663, %664 : vector<8x64xf32>
    %666 = vector.extract_strided_slice %661 {offsets = [0, 0], sizes = [16, 64], strides = [1, 1]} : vector<32x64xf32> to vector<16x64xf32>
    %667 = vector.extract_strided_slice %662 {offsets = [0, 0], sizes = [16, 64], strides = [1, 1]} : vector<32x64xf32> to vector<16x64xf32>
    %cst_213 = arith.constant 0.000000e+00 : f32
    %668 = vector.broadcast %cst_213 : f32 to vector<8x64xf32>
    %669 = vector.broadcast %7 : vector<1x64xf32> to vector<8x64xf32>
    %670 = arith.mulf %665, %669 : vector<8x64xf32>
    %cst_214 = arith.constant dense<0.000000e+00> : vector<8x16xf32>
    %671 = tpu.matmul %670, %666, %cst_214 {dimension_numbers = #tpu.dot_dimension_numbers<[1], [1], [0], [0], [0, 0, 1, 0], [], []>} : vector<8x64xf32>, vector<16x64xf32>, vector<8x16xf32> -> vector<8x16xf32>
    %cst_215 = arith.constant dense<0xFF800000> : vector<8xf32>
    %672 = vector.multi_reduction <maximumf>, %671, %cst_215 [1] : vector<8x16xf32> to vector<8xf32>
    %673 = vector.shape_cast %672 : vector<8xf32> to vector<8x1xf32>
    %674 = vector.broadcast %673 : vector<8x1xf32> to vector<8x16xf32>
    %675 = arith.subf %671, %674 : vector<8x16xf32>
    %676 = math.exp %675 : vector<8x16xf32>
    %cst_216 = arith.constant dense<0.000000e+00> : vector<8xf32>
    %677 = vector.multi_reduction <add>, %676, %cst_216 [1] : vector<8x16xf32> to vector<8xf32>
    %678 = vector.shape_cast %677 : vector<8xf32> to vector<8x1xf32>
    %679 = vector.broadcast %678 : vector<8x1xf32> to vector<8x16xf32>
    %680 = arith.divf %676, %679 : vector<8x16xf32>
    %681 = vector.broadcast %7 : vector<1x64xf32> to vector<16x64xf32>
    %682 = arith.mulf %667, %681 : vector<16x64xf32>
    %cst_217 = arith.constant dense<0.000000e+00> : vector<8x64xf32>
    %683 = tpu.matmul %680, %682, %cst_217 {dimension_numbers = #tpu.dot_dimension_numbers<[1], [0], [0], [1], [0, 0, 1, 1], [], []>} : vector<8x16xf32>, vector<16x64xf32>, vector<8x64xf32> -> vector<8x64xf32>
    %684 = arith.addf %668, %683 : vector<8x64xf32>
    %685 = vector.broadcast %14 : vector<1x64xf32> to vector<8x64xf32>
    %686 = arith.mulf %665, %685 : vector<8x64xf32>
    %cst_218 = arith.constant dense<0.000000e+00> : vector<8x16xf32>
    %687 = tpu.matmul %686, %666, %cst_218 {dimension_numbers = #tpu.dot_dimension_numbers<[1], [1], [0], [0], [0, 0, 1, 0], [], []>} : vector<8x64xf32>, vector<16x64xf32>, vector<8x16xf32> -> vector<8x16xf32>
    %cst_219 = arith.constant dense<0xFF800000> : vector<8xf32>
    %688 = vector.multi_reduction <maximumf>, %687, %cst_219 [1] : vector<8x16xf32> to vector<8xf32>
    %689 = vector.shape_cast %688 : vector<8xf32> to vector<8x1xf32>
    %690 = vector.broadcast %689 : vector<8x1xf32> to vector<8x16xf32>
    %691 = arith.subf %687, %690 : vector<8x16xf32>
    %692 = math.exp %691 : vector<8x16xf32>
    %cst_220 = arith.constant dense<0.000000e+00> : vector<8xf32>
    %693 = vector.multi_reduction <add>, %692, %cst_220 [1] : vector<8x16xf32> to vector<8xf32>
    %694 = vector.shape_cast %693 : vector<8xf32> to vector<8x1xf32>
    %695 = vector.broadcast %694 : vector<8x1xf32> to vector<8x16xf32>
    %696 = arith.divf %692, %695 : vector<8x16xf32>
    %697 = vector.broadcast %14 : vector<1x64xf32> to vector<16x64xf32>
    %698 = arith.mulf %667, %697 : vector<16x64xf32>
    %cst_221 = arith.constant dense<0.000000e+00> : vector<8x64xf32>
    %699 = tpu.matmul %696, %698, %cst_221 {dimension_numbers = #tpu.dot_dimension_numbers<[1], [0], [0], [1], [0, 0, 1, 1], [], []>} : vector<8x16xf32>, vector<16x64xf32>, vector<8x64xf32> -> vector<8x64xf32>
    %700 = arith.addf %684, %699 : vector<8x64xf32>
    %701 = vector.broadcast %21 : vector<1x64xf32> to vector<8x64xf32>
    %702 = arith.mulf %665, %701 : vector<8x64xf32>
    %cst_222 = arith.constant dense<0.000000e+00> : vector<8x16xf32>
    %703 = tpu.matmul %702, %666, %cst_222 {dimension_numbers = #tpu.dot_dimension_numbers<[1], [1], [0], [0], [0, 0, 1, 0], [], []>} : vector<8x64xf32>, vector<16x64xf32>, vector<8x16xf32> -> vector<8x16xf32>
    %cst_223 = arith.constant dense<0xFF800000> : vector<8xf32>
    %704 = vector.multi_reduction <maximumf>, %703, %cst_223 [1] : vector<8x16xf32> to vector<8xf32>
    %705 = vector.shape_cast %704 : vector<8xf32> to vector<8x1xf32>
    %706 = vector.broadcast %705 : vector<8x1xf32> to vector<8x16xf32>
    %707 = arith.subf %703, %706 : vector<8x16xf32>
    %708 = math.exp %707 : vector<8x16xf32>
    %cst_224 = arith.constant dense<0.000000e+00> : vector<8xf32>
    %709 = vector.multi_reduction <add>, %708, %cst_224 [1] : vector<8x16xf32> to vector<8xf32>
    %710 = vector.shape_cast %709 : vector<8xf32> to vector<8x1xf32>
    %711 = vector.broadcast %710 : vector<8x1xf32> to vector<8x16xf32>
    %712 = arith.divf %708, %711 : vector<8x16xf32>
    %713 = vector.broadcast %21 : vector<1x64xf32> to vector<16x64xf32>
    %714 = arith.mulf %667, %713 : vector<16x64xf32>
    %cst_225 = arith.constant dense<0.000000e+00> : vector<8x64xf32>
    %715 = tpu.matmul %712, %714, %cst_225 {dimension_numbers = #tpu.dot_dimension_numbers<[1], [0], [0], [1], [0, 0, 1, 1], [], []>} : vector<8x16xf32>, vector<16x64xf32>, vector<8x64xf32> -> vector<8x64xf32>
    %716 = arith.addf %700, %715 : vector<8x64xf32>
    %717 = vector.broadcast %28 : vector<1x64xf32> to vector<8x64xf32>
    %718 = arith.mulf %665, %717 : vector<8x64xf32>
    %cst_226 = arith.constant dense<0.000000e+00> : vector<8x16xf32>
    %719 = tpu.matmul %718, %666, %cst_226 {dimension_numbers = #tpu.dot_dimension_numbers<[1], [1], [0], [0], [0, 0, 1, 0], [], []>} : vector<8x64xf32>, vector<16x64xf32>, vector<8x16xf32> -> vector<8x16xf32>
    %cst_227 = arith.constant dense<0xFF800000> : vector<8xf32>
    %720 = vector.multi_reduction <maximumf>, %719, %cst_227 [1] : vector<8x16xf32> to vector<8xf32>
    %721 = vector.shape_cast %720 : vector<8xf32> to vector<8x1xf32>
    %722 = vector.broadcast %721 : vector<8x1xf32> to vector<8x16xf32>
    %723 = arith.subf %719, %722 : vector<8x16xf32>
    %724 = math.exp %723 : vector<8x16xf32>
    %cst_228 = arith.constant dense<0.000000e+00> : vector<8xf32>
    %725 = vector.multi_reduction <add>, %724, %cst_228 [1] : vector<8x16xf32> to vector<8xf32>
    %726 = vector.shape_cast %725 : vector<8xf32> to vector<8x1xf32>
    %727 = vector.broadcast %726 : vector<8x1xf32> to vector<8x16xf32>
    %728 = arith.divf %724, %727 : vector<8x16xf32>
    %729 = vector.broadcast %28 : vector<1x64xf32> to vector<16x64xf32>
    %730 = arith.mulf %667, %729 : vector<16x64xf32>
    %cst_229 = arith.constant dense<0.000000e+00> : vector<8x64xf32>
    %731 = tpu.matmul %728, %730, %cst_229 {dimension_numbers = #tpu.dot_dimension_numbers<[1], [0], [0], [1], [0, 0, 1, 1], [], []>} : vector<8x16xf32>, vector<16x64xf32>, vector<8x64xf32> -> vector<8x64xf32>
    %732 = arith.addf %716, %731 : vector<8x64xf32>
    %733 = vector.extract_strided_slice %654 {offsets = [8, 0], sizes = [8, 64], strides = [1, 1]} : vector<16x64xf32> to vector<8x64xf32>
    %cst_230 = arith.constant 2.500000e-01 : f32
    %734 = vector.broadcast %cst_230 : f32 to vector<8x64xf32>
    %735 = arith.mulf %733, %734 : vector<8x64xf32>
    %736 = vector.extract_strided_slice %661 {offsets = [16, 0], sizes = [16, 64], strides = [1, 1]} : vector<32x64xf32> to vector<16x64xf32>
    %737 = vector.extract_strided_slice %662 {offsets = [16, 0], sizes = [16, 64], strides = [1, 1]} : vector<32x64xf32> to vector<16x64xf32>
    %cst_231 = arith.constant 0.000000e+00 : f32
    %738 = vector.broadcast %cst_231 : f32 to vector<8x64xf32>
    %739 = vector.broadcast %7 : vector<1x64xf32> to vector<8x64xf32>
    %740 = arith.mulf %735, %739 : vector<8x64xf32>
    %cst_232 = arith.constant dense<0.000000e+00> : vector<8x16xf32>
    %741 = tpu.matmul %740, %736, %cst_232 {dimension_numbers = #tpu.dot_dimension_numbers<[1], [1], [0], [0], [0, 0, 1, 0], [], []>} : vector<8x64xf32>, vector<16x64xf32>, vector<8x16xf32> -> vector<8x16xf32>
    %cst_233 = arith.constant dense<0xFF800000> : vector<8xf32>
    %742 = vector.multi_reduction <maximumf>, %741, %cst_233 [1] : vector<8x16xf32> to vector<8xf32>
    %743 = vector.shape_cast %742 : vector<8xf32> to vector<8x1xf32>
    %744 = vector.broadcast %743 : vector<8x1xf32> to vector<8x16xf32>
    %745 = arith.subf %741, %744 : vector<8x16xf32>
    %746 = math.exp %745 : vector<8x16xf32>
    %cst_234 = arith.constant dense<0.000000e+00> : vector<8xf32>
    %747 = vector.multi_reduction <add>, %746, %cst_234 [1] : vector<8x16xf32> to vector<8xf32>
    %748 = vector.shape_cast %747 : vector<8xf32> to vector<8x1xf32>
    %749 = vector.broadcast %748 : vector<8x1xf32> to vector<8x16xf32>
    %750 = arith.divf %746, %749 : vector<8x16xf32>
    %751 = vector.broadcast %7 : vector<1x64xf32> to vector<16x64xf32>
    %752 = arith.mulf %737, %751 : vector<16x64xf32>
    %cst_235 = arith.constant dense<0.000000e+00> : vector<8x64xf32>
    %753 = tpu.matmul %750, %752, %cst_235 {dimension_numbers = #tpu.dot_dimension_numbers<[1], [0], [0], [1], [0, 0, 1, 1], [], []>} : vector<8x16xf32>, vector<16x64xf32>, vector<8x64xf32> -> vector<8x64xf32>
    %754 = arith.addf %738, %753 : vector<8x64xf32>
    %755 = vector.broadcast %14 : vector<1x64xf32> to vector<8x64xf32>
    %756 = arith.mulf %735, %755 : vector<8x64xf32>
    %cst_236 = arith.constant dense<0.000000e+00> : vector<8x16xf32>
    %757 = tpu.matmul %756, %736, %cst_236 {dimension_numbers = #tpu.dot_dimension_numbers<[1], [1], [0], [0], [0, 0, 1, 0], [], []>} : vector<8x64xf32>, vector<16x64xf32>, vector<8x16xf32> -> vector<8x16xf32>
    %cst_237 = arith.constant dense<0xFF800000> : vector<8xf32>
    %758 = vector.multi_reduction <maximumf>, %757, %cst_237 [1] : vector<8x16xf32> to vector<8xf32>
    %759 = vector.shape_cast %758 : vector<8xf32> to vector<8x1xf32>
    %760 = vector.broadcast %759 : vector<8x1xf32> to vector<8x16xf32>
    %761 = arith.subf %757, %760 : vector<8x16xf32>
    %762 = math.exp %761 : vector<8x16xf32>
    %cst_238 = arith.constant dense<0.000000e+00> : vector<8xf32>
    %763 = vector.multi_reduction <add>, %762, %cst_238 [1] : vector<8x16xf32> to vector<8xf32>
    %764 = vector.shape_cast %763 : vector<8xf32> to vector<8x1xf32>
    %765 = vector.broadcast %764 : vector<8x1xf32> to vector<8x16xf32>
    %766 = arith.divf %762, %765 : vector<8x16xf32>
    %767 = vector.broadcast %14 : vector<1x64xf32> to vector<16x64xf32>
    %768 = arith.mulf %737, %767 : vector<16x64xf32>
    %cst_239 = arith.constant dense<0.000000e+00> : vector<8x64xf32>
    %769 = tpu.matmul %766, %768, %cst_239 {dimension_numbers = #tpu.dot_dimension_numbers<[1], [0], [0], [1], [0, 0, 1, 1], [], []>} : vector<8x16xf32>, vector<16x64xf32>, vector<8x64xf32> -> vector<8x64xf32>
    %770 = arith.addf %754, %769 : vector<8x64xf32>
    %771 = vector.broadcast %21 : vector<1x64xf32> to vector<8x64xf32>
    %772 = arith.mulf %735, %771 : vector<8x64xf32>
    %cst_240 = arith.constant dense<0.000000e+00> : vector<8x16xf32>
    %773 = tpu.matmul %772, %736, %cst_240 {dimension_numbers = #tpu.dot_dimension_numbers<[1], [1], [0], [0], [0, 0, 1, 0], [], []>} : vector<8x64xf32>, vector<16x64xf32>, vector<8x16xf32> -> vector<8x16xf32>
    %cst_241 = arith.constant dense<0xFF800000> : vector<8xf32>
    %774 = vector.multi_reduction <maximumf>, %773, %cst_241 [1] : vector<8x16xf32> to vector<8xf32>
    %775 = vector.shape_cast %774 : vector<8xf32> to vector<8x1xf32>
    %776 = vector.broadcast %775 : vector<8x1xf32> to vector<8x16xf32>
    %777 = arith.subf %773, %776 : vector<8x16xf32>
    %778 = math.exp %777 : vector<8x16xf32>
    %cst_242 = arith.constant dense<0.000000e+00> : vector<8xf32>
    %779 = vector.multi_reduction <add>, %778, %cst_242 [1] : vector<8x16xf32> to vector<8xf32>
    %780 = vector.shape_cast %779 : vector<8xf32> to vector<8x1xf32>
    %781 = vector.broadcast %780 : vector<8x1xf32> to vector<8x16xf32>
    %782 = arith.divf %778, %781 : vector<8x16xf32>
    %783 = vector.broadcast %21 : vector<1x64xf32> to vector<16x64xf32>
    %784 = arith.mulf %737, %783 : vector<16x64xf32>
    %cst_243 = arith.constant dense<0.000000e+00> : vector<8x64xf32>
    %785 = tpu.matmul %782, %784, %cst_243 {dimension_numbers = #tpu.dot_dimension_numbers<[1], [0], [0], [1], [0, 0, 1, 1], [], []>} : vector<8x16xf32>, vector<16x64xf32>, vector<8x64xf32> -> vector<8x64xf32>
    %786 = arith.addf %770, %785 : vector<8x64xf32>
    %787 = vector.broadcast %28 : vector<1x64xf32> to vector<8x64xf32>
    %788 = arith.mulf %735, %787 : vector<8x64xf32>
    %cst_244 = arith.constant dense<0.000000e+00> : vector<8x16xf32>
    %789 = tpu.matmul %788, %736, %cst_244 {dimension_numbers = #tpu.dot_dimension_numbers<[1], [1], [0], [0], [0, 0, 1, 0], [], []>} : vector<8x64xf32>, vector<16x64xf32>, vector<8x16xf32> -> vector<8x16xf32>
    %cst_245 = arith.constant dense<0xFF800000> : vector<8xf32>
    %790 = vector.multi_reduction <maximumf>, %789, %cst_245 [1] : vector<8x16xf32> to vector<8xf32>
    %791 = vector.shape_cast %790 : vector<8xf32> to vector<8x1xf32>
    %792 = vector.broadcast %791 : vector<8x1xf32> to vector<8x16xf32>
    %793 = arith.subf %789, %792 : vector<8x16xf32>
    %794 = math.exp %793 : vector<8x16xf32>
    %cst_246 = arith.constant dense<0.000000e+00> : vector<8xf32>
    %795 = vector.multi_reduction <add>, %794, %cst_246 [1] : vector<8x16xf32> to vector<8xf32>
    %796 = vector.shape_cast %795 : vector<8xf32> to vector<8x1xf32>
    %797 = vector.broadcast %796 : vector<8x1xf32> to vector<8x16xf32>
    %798 = arith.divf %794, %797 : vector<8x16xf32>
    %799 = vector.broadcast %28 : vector<1x64xf32> to vector<16x64xf32>
    %800 = arith.mulf %737, %799 : vector<16x64xf32>
    %cst_247 = arith.constant dense<0.000000e+00> : vector<8x64xf32>
    %801 = tpu.matmul %798, %800, %cst_247 {dimension_numbers = #tpu.dot_dimension_numbers<[1], [0], [0], [1], [0, 0, 1, 1], [], []>} : vector<8x16xf32>, vector<16x64xf32>, vector<8x64xf32> -> vector<8x64xf32>
    %802 = arith.addf %786, %801 : vector<8x64xf32>
    %803 = tpu.concatenate %732, %802 in 0 : vector<8x64xf32>, vector<8x64xf32> -> vector<16x64xf32>
    %c1_248 = arith.constant 1 : index
    %c0_249 = arith.constant 0 : index
    %c0_250 = arith.constant 0 : index
    %804 = vector.load %arg14[%c1_248, %c0_249, %c0_250] : memref<2x64x64xbf16, #tpu.memory_space<vmem>>, vector<1x64x64xbf16>
    %805 = vector.shape_cast %804 : vector<1x64x64xbf16> to vector<64x64xbf16>
    %c19 = arith.constant 19 : index
    %c0_251 = arith.constant 0 : index
    %806 = vector.load %arg3[%c19, %c0_251] : memref<22x64xf32, #tpu.memory_space<vmem>>, vector<1x64xf32>
    %807 = arith.truncf %803 : vector<16x64xf32> to vector<16x64xbf16>
    %cst_252 = arith.constant dense<0.000000e+00> : vector<16x64xf32>
    %808 = tpu.matmul %807, %805, %cst_252 {dimension_numbers = #tpu.dot_dimension_numbers<[1], [0], [0], [1], [0, 0, 1, 1], [], []>} : vector<16x64xbf16>, vector<64x64xbf16>, vector<16x64xf32> -> vector<16x64xf32>
    %809 = vector.broadcast %806 : vector<1x64xf32> to vector<16x64xf32>
    %810 = arith.addf %808, %809 : vector<16x64xf32>
    %811 = arith.addf %647, %810 : vector<16x64xf32>
    %c20 = arith.constant 20 : index
    %c0_253 = arith.constant 0 : index
    %812 = vector.load %arg3[%c20, %c0_253] : memref<22x64xf32, #tpu.memory_space<vmem>>, vector<1x64xf32>
    %c21 = arith.constant 21 : index
    %c0_254 = arith.constant 0 : index
    %813 = vector.load %arg3[%c21, %c0_254] : memref<22x64xf32, #tpu.memory_space<vmem>>, vector<1x64xf32>
    %cst_255 = arith.constant dense<0.000000e+00> : vector<16xf32>
    %814 = vector.multi_reduction <add>, %811, %cst_255 [1] : vector<16x64xf32> to vector<16xf32>
    %815 = vector.shape_cast %814 : vector<16xf32> to vector<16x1xf32>
    %cst_256 = arith.constant 6.400000e+01 : f32
    %816 = vector.broadcast %cst_256 : f32 to vector<16x1xf32>
    %817 = arith.divf %815, %816 : vector<16x1xf32>
    %818 = vector.broadcast %817 : vector<16x1xf32> to vector<16x64xf32>
    %819 = arith.subf %811, %818 : vector<16x64xf32>
    %820 = arith.mulf %819, %819 : vector<16x64xf32>
    %cst_257 = arith.constant dense<0.000000e+00> : vector<16xf32>
    %821 = vector.multi_reduction <add>, %820, %cst_257 [1] : vector<16x64xf32> to vector<16xf32>
    %822 = vector.shape_cast %821 : vector<16xf32> to vector<16x1xf32>
    %cst_258 = arith.constant 6.400000e+01 : f32
    %823 = vector.broadcast %cst_258 : f32 to vector<16x1xf32>
    %824 = arith.divf %822, %823 : vector<16x1xf32>
    %cst_259 = arith.constant 9.99999996E-13 : f32
    %825 = vector.broadcast %cst_259 : f32 to vector<16x1xf32>
    %826 = arith.addf %824, %825 : vector<16x1xf32>
    %827 = math.rsqrt %826 : vector<16x1xf32>
    %828 = vector.broadcast %827 : vector<16x1xf32> to vector<16x64xf32>
    %829 = arith.mulf %819, %828 : vector<16x64xf32>
    %830 = vector.broadcast %812 : vector<1x64xf32> to vector<16x64xf32>
    %831 = arith.mulf %829, %830 : vector<16x64xf32>
    %832 = vector.broadcast %813 : vector<1x64xf32> to vector<16x64xf32>
    %833 = arith.addf %831, %832 : vector<16x64xf32>
    %c1_260 = arith.constant 1 : index
    %c0_261 = arith.constant 0 : index
    %c0_262 = arith.constant 0 : index
    %834 = vector.load %arg10[%c1_260, %c0_261, %c0_262] : memref<2x64x128xbf16, #tpu.memory_space<vmem>>, vector<1x64x128xbf16>
    %835 = vector.shape_cast %834 : vector<1x64x128xbf16> to vector<64x128xbf16>
    %c1_263 = arith.constant 1 : index
    %c0_264 = arith.constant 0 : index
    %836 = vector.load %arg5[%c1_263, %c0_264] : memref<2x128xf32, #tpu.memory_space<vmem>>, vector<1x128xf32>
    %837 = arith.truncf %833 : vector<16x64xf32> to vector<16x64xbf16>
    %cst_265 = arith.constant dense<0.000000e+00> : vector<16x128xf32>
    %838 = tpu.matmul %837, %835, %cst_265 {dimension_numbers = #tpu.dot_dimension_numbers<[1], [0], [0], [1], [0, 0, 1, 1], [], []>} : vector<16x64xbf16>, vector<64x128xbf16>, vector<16x128xf32> -> vector<16x128xf32>
    %839 = vector.broadcast %836 : vector<1x128xf32> to vector<16x128xf32>
    %840 = arith.addf %838, %839 : vector<16x128xf32>
    %cst_266 = arith.constant 5.000000e-01 : f32
    %841 = vector.broadcast %cst_266 : f32 to vector<16x128xf32>
    %842 = arith.mulf %841, %840 : vector<16x128xf32>
    %cst_267 = arith.constant 0.707106769 : f32
    %843 = vector.broadcast %cst_267 : f32 to vector<16x128xf32>
    %844 = arith.mulf %840, %843 : vector<16x128xf32>
    %845 = math.erf %844 : vector<16x128xf32>
    %cst_268 = arith.constant 1.000000e+00 : f32
    %846 = vector.broadcast %cst_268 : f32 to vector<16x128xf32>
    %847 = arith.addf %846, %845 : vector<16x128xf32>
    %848 = arith.mulf %842, %847 : vector<16x128xf32>
    %c1_269 = arith.constant 1 : index
    %c0_270 = arith.constant 0 : index
    %c0_271 = arith.constant 0 : index
    %849 = vector.load %arg11[%c1_269, %c0_270, %c0_271] : memref<2x128x64xbf16, #tpu.memory_space<vmem>>, vector<1x128x64xbf16>
    %850 = vector.shape_cast %849 : vector<1x128x64xbf16> to vector<128x64xbf16>
    %c15 = arith.constant 15 : index
    %c0_272 = arith.constant 0 : index
    %851 = vector.load %arg3[%c15, %c0_272] : memref<22x64xf32, #tpu.memory_space<vmem>>, vector<1x64xf32>
    %852 = arith.truncf %848 : vector<16x128xf32> to vector<16x128xbf16>
    %cst_273 = arith.constant dense<0.000000e+00> : vector<16x64xf32>
    %853 = tpu.matmul %852, %850, %cst_273 {dimension_numbers = #tpu.dot_dimension_numbers<[1], [0], [0], [1], [0, 0, 1, 1], [], []>} : vector<16x128xbf16>, vector<128x64xbf16>, vector<16x64xf32> -> vector<16x64xf32>
    %854 = vector.broadcast %851 : vector<1x64xf32> to vector<16x64xf32>
    %855 = arith.addf %853, %854 : vector<16x64xf32>
    %856 = arith.addf %833, %855 : vector<16x64xf32>
    %c16 = arith.constant 16 : index
    %c0_274 = arith.constant 0 : index
    %857 = vector.load %arg3[%c16, %c0_274] : memref<22x64xf32, #tpu.memory_space<vmem>>, vector<1x64xf32>
    %c17 = arith.constant 17 : index
    %c0_275 = arith.constant 0 : index
    %858 = vector.load %arg3[%c17, %c0_275] : memref<22x64xf32, #tpu.memory_space<vmem>>, vector<1x64xf32>
    %cst_276 = arith.constant dense<0.000000e+00> : vector<16xf32>
    %859 = vector.multi_reduction <add>, %856, %cst_276 [1] : vector<16x64xf32> to vector<16xf32>
    %860 = vector.shape_cast %859 : vector<16xf32> to vector<16x1xf32>
    %cst_277 = arith.constant 6.400000e+01 : f32
    %861 = vector.broadcast %cst_277 : f32 to vector<16x1xf32>
    %862 = arith.divf %860, %861 : vector<16x1xf32>
    %863 = vector.broadcast %862 : vector<16x1xf32> to vector<16x64xf32>
    %864 = arith.subf %856, %863 : vector<16x64xf32>
    %865 = arith.mulf %864, %864 : vector<16x64xf32>
    %cst_278 = arith.constant dense<0.000000e+00> : vector<16xf32>
    %866 = vector.multi_reduction <add>, %865, %cst_278 [1] : vector<16x64xf32> to vector<16xf32>
    %867 = vector.shape_cast %866 : vector<16xf32> to vector<16x1xf32>
    %cst_279 = arith.constant 6.400000e+01 : f32
    %868 = vector.broadcast %cst_279 : f32 to vector<16x1xf32>
    %869 = arith.divf %867, %868 : vector<16x1xf32>
    %cst_280 = arith.constant 9.99999996E-13 : f32
    %870 = vector.broadcast %cst_280 : f32 to vector<16x1xf32>
    %871 = arith.addf %869, %870 : vector<16x1xf32>
    %872 = math.rsqrt %871 : vector<16x1xf32>
    %873 = vector.broadcast %872 : vector<16x1xf32> to vector<16x64xf32>
    %874 = arith.mulf %864, %873 : vector<16x64xf32>
    %875 = vector.broadcast %857 : vector<1x64xf32> to vector<16x64xf32>
    %876 = arith.mulf %874, %875 : vector<16x64xf32>
    %877 = vector.broadcast %858 : vector<1x64xf32> to vector<16x64xf32>
    %878 = arith.addf %876, %877 : vector<16x64xf32>
    %c0_281 = arith.constant 0 : index
    %c0_282 = arith.constant 0 : index
    %879 = vector.load %arg15[%c0_281, %c0_282] : memref<64x96xbf16, #tpu.memory_space<vmem>>, vector<64x96xbf16>
    %c0_283 = arith.constant 0 : index
    %c0_284 = arith.constant 0 : index
    %880 = vector.load %arg7[%c0_283, %c0_284] : memref<1x96xf32, #tpu.memory_space<vmem>>, vector<1x96xf32>
    %881 = arith.truncf %878 : vector<16x64xf32> to vector<16x64xbf16>
    %cst_285 = arith.constant dense<0.000000e+00> : vector<16x96xf32>
    %882 = tpu.matmul %881, %879, %cst_285 {dimension_numbers = #tpu.dot_dimension_numbers<[1], [0], [0], [1], [0, 0, 1, 1], [], []>} : vector<16x64xbf16>, vector<64x96xbf16>, vector<16x96xf32> -> vector<16x96xf32>
    %883 = vector.broadcast %880 : vector<1x96xf32> to vector<16x96xf32>
    %884 = arith.addf %882, %883 : vector<16x96xf32>
    %c0_286 = arith.constant 0 : index
    %c0_287 = arith.constant 0 : index
    %885 = vector.load %arg16[%c0_286, %c0_287] : memref<16x96xf32, #tpu.memory_space<vmem>>, vector<16x96xf32>
    tpu.vector_store %arg16[%c0_286, %c0_287], %884 {strides = array<i32>} : memref<16x96xf32, #tpu.memory_space<vmem>>, vector<16x96xf32>,
    return
  }
  func.func @transform_0(%arg0: i32) -> (i32, i32) {
    %c0_i32 = arith.constant 0 : i32
    %c0_i32_0 = arith.constant 0 : i32
    %c0_i32_1 = arith.constant 0 : i32
    return %c0_i32, %c0_i32_0 : i32, i32
  }
  func.func @transform_1(%arg0: i32) -> (i32, i32) {
    %c0_i32 = arith.constant 0 : i32
    %c0_i32_0 = arith.constant 0 : i32
    %c0_i32_1 = arith.constant 0 : i32
    return %c0_i32, %c0_i32_0 : i32, i32
  }
  func.func @transform_2(%arg0: i32) -> (i32, i32) {
    %c0_i32 = arith.constant 0 : i32
    %c0_i32_0 = arith.constant 0 : i32
    %c0_i32_1 = arith.constant 0 : i32
    return %c0_i32, %c0_i32_0 : i32, i32
  }
  func.func @transform_3(%arg0: i32) -> (i32, i32) {
    %c0_i32 = arith.constant 0 : i32
    %c0_i32_0 = arith.constant 0 : i32
    %c0_i32_1 = arith.constant 0 : i32
    return %c0_i32, %c0_i32_0 : i32, i32
  }
  func.func @transform_4(%arg0: i32) -> (i32, i32) {
    %c0_i32 = arith.constant 0 : i32
    %c0_i32_0 = arith.constant 0 : i32
    %c0_i32_1 = arith.constant 0 : i32
    return %c0_i32, %c0_i32_0 : i32, i32
  }
  func.func @transform_5(%arg0: i32) -> (i32, i32) {
    %c0_i32 = arith.constant 0 : i32
    %c0_i32_0 = arith.constant 0 : i32
    %c0_i32_1 = arith.constant 0 : i32
    return %c0_i32, %c0_i32_0 : i32, i32
  }
  func.func @transform_6(%arg0: i32) -> (i32, i32) {
    %c0_i32 = arith.constant 0 : i32
    %c0_i32_0 = arith.constant 0 : i32
    %c0_i32_1 = arith.constant 0 : i32
    return %c0_i32, %c0_i32_0 : i32, i32
  }
  func.func @transform_7(%arg0: i32) -> (i32, i32, i32) {
    %c0_i32 = arith.constant 0 : i32
    %c0_i32_0 = arith.constant 0 : i32
    %c0_i32_1 = arith.constant 0 : i32
    %c0_i32_2 = arith.constant 0 : i32
    return %c0_i32, %c0_i32_0, %c0_i32_1 : i32, i32, i32
  }
  func.func @transform_8(%arg0: i32) -> (i32, i32, i32) {
    %c0_i32 = arith.constant 0 : i32
    %c0_i32_0 = arith.constant 0 : i32
    %c0_i32_1 = arith.constant 0 : i32
    %c0_i32_2 = arith.constant 0 : i32
    return %c0_i32, %c0_i32_0, %c0_i32_1 : i32, i32, i32
  }
  func.func @transform_9(%arg0: i32) -> (i32, i32, i32) {
    %c0_i32 = arith.constant 0 : i32
    %c0_i32_0 = arith.constant 0 : i32
    %c0_i32_1 = arith.constant 0 : i32
    %c0_i32_2 = arith.constant 0 : i32
    return %c0_i32, %c0_i32_0, %c0_i32_1 : i32, i32, i32
  }
  func.func @transform_10(%arg0: i32) -> (i32, i32, i32) {
    %c0_i32 = arith.constant 0 : i32
    %c0_i32_0 = arith.constant 0 : i32
    %c0_i32_1 = arith.constant 0 : i32
    %c0_i32_2 = arith.constant 0 : i32
    return %c0_i32, %c0_i32_0, %c0_i32_1 : i32, i32, i32
  }
  func.func @transform_11(%arg0: i32) -> (i32, i32, i32) {
    %c0_i32 = arith.constant 0 : i32
    %c0_i32_0 = arith.constant 0 : i32
    %c0_i32_1 = arith.constant 0 : i32
    %c0_i32_2 = arith.constant 0 : i32
    return %c0_i32, %c0_i32_0, %c0_i32_1 : i32, i32, i32
  }
  func.func @transform_12(%arg0: i32) -> (i32, i32, i32) {
    %c0_i32 = arith.constant 0 : i32
    %c0_i32_0 = arith.constant 0 : i32
    %c0_i32_1 = arith.constant 0 : i32
    %c0_i32_2 = arith.constant 0 : i32
    return %c0_i32, %c0_i32_0, %c0_i32_1 : i32, i32, i32
  }
  func.func @transform_13(%arg0: i32) -> (i32, i32, i32) {
    %c0_i32 = arith.constant 0 : i32
    %c0_i32_0 = arith.constant 0 : i32
    %c0_i32_1 = arith.constant 0 : i32
    %c0_i32_2 = arith.constant 0 : i32
    return %c0_i32, %c0_i32_0, %c0_i32_1 : i32, i32, i32
  }
  func.func @transform_14(%arg0: i32) -> (i32, i32) {
    %c0_i32 = arith.constant 0 : i32
    %c0_i32_0 = arith.constant 0 : i32
    %c0_i32_1 = arith.constant 0 : i32
    return %c0_i32, %c0_i32_0 : i32, i32
  }
  func.func @transform_15(%arg0: i32) -> (i32, i32) {
    %c0_i32 = arith.constant 0 : i32
    %c0_i32_0 = arith.constant 0 : i32
    %c0_i32_1 = arith.constant 0 : i32
    return %c0_i32, %c0_i32_0 : i32, i32
  }
}

</mosaic_0001>

<llo_original>
// kernel: tpu_custom_call.1
$region0: #{tpu_custom_call.1}
  #allocation0 [shape = 'u32[]', space=smem, size = 0x4, offset = 0x4, fixed_abs, tag = 'smem constant byte address 0x4 - core index']
  #allocation1 [shape = 'u32[72,128]{1,0:T(1,128)}', space=vmem, size = 0x9000, scoped, tag = 'internal scratch']
  %s0 = inlined_call_operand.hbm [shape: f32[32,32], index: 0, kind: input, shape index: {}]
  %s1 = inlined_call_operand.hbm [shape: f32[8,64], index: 1, kind: input, shape index: {}]
  %s2 = inlined_call_operand.hbm [shape: f32[22,64], index: 2, kind: input, shape index: {}]
  %s3 = inlined_call_operand.vmem [shape: f32[2,192], index: 3, kind: input, shape index: {}]
  %s4 = inlined_call_operand.vmem [shape: f32[2,128], index: 4, kind: input, shape index: {}]
  %s5 = inlined_call_operand.hbm [shape: f32[2,128], index: 5, kind: input, shape index: {}]
  %s6 = inlined_call_operand.hbm [shape: f32[1,96], index: 6, kind: input, shape index: {}]
  %s7 = inlined_call_operand.vmem [shape: bf16[2,64,192], index: 7, kind: input, shape index: {}]
  %s8 = inlined_call_operand.vmem [shape: bf16[2,64,64], index: 8, kind: input, shape index: {}]
  %s9 = inlined_call_operand.hbm [shape: bf16[2,64,128], index: 9, kind: input, shape index: {}]
  %s10 = inlined_call_operand.vmem [shape: bf16[2,128,64], index: 10, kind: input, shape index: {}]
  %s11 = inlined_call_operand.hbm [shape: bf16[2,64,64], index: 11, kind: input, shape index: {}]
  %s12 = inlined_call_operand.hbm [shape: bf16[2,32,128], index: 12, kind: input, shape index: {}]
  %s13 = inlined_call_operand.hbm [shape: bf16[2,64,64], index: 13, kind: input, shape index: {}]
  %s14 = inlined_call_operand.hbm [shape: bf16[64,96], index: 14, kind: input, shape index: {}]
  %s15 = inlined_call_operand.hbm [shape: f32[16,96], index: 15, kind: output, shape index: {}]
  %s16 = sld [smem:[#allocation0]]
  $region110: #{tpu_custom_call.1} parent=0
    _
  %s18 = ssub.s32 1, %s16
  %s19 = scalar_select 0, %s18, %s16
  $region1: #{tpu_custom_call.1} parent=0
    #allocation2 [shape = 'u8[16384]{0}', space=vmem, size = 0x4000, scoped, tag = 'input window, operand 0, single buffered']
    #allocation3 [shape = 's32[1]{0}', space=sflag, size = 0x4, scoped, tag = 'scoped memory for tpu_custom_call.1']
    #allocation4 [shape = 's32[1]{0}', space=sflag, size = 0x4, scoped, tag = 'scoped memory for tpu_custom_call.1']
    #allocation5 [shape = 'u8[4096]{0}', space=vmem, size = 0x1000, scoped, tag = 'input window, operand 1, single buffered']
    #allocation6 [shape = 's32[1]{0}', space=sflag, size = 0x4, scoped, tag = 'scoped memory for tpu_custom_call.1']
    #allocation7 [shape = 'u8[12288]{0}', space=vmem, size = 0x3000, scoped, tag = 'input window, operand 2, single buffered']
    #allocation8 [shape = 'u8[1024]{0}', space=vmem, size = 0x400, scoped, tag = 'input window, operand 5, single buffered']
    #allocation9 [shape = 's32[1]{0}', space=sflag, size = 0x4, scoped, tag = 'scoped memory for tpu_custom_call.1']
    #allocation10 [shape = 'u8[512]{0}', space=vmem, size = 0x400, scoped, tag = 'input window, operand 6, single buffered']
    #allocation11 [shape = 'u8[32768]{0}', space=vmem, size = 0x8000, scoped, tag = 'input window, operand 9, single buffered']
    #allocation12 [shape = 's32[1]{0}', space=sflag, size = 0x4, scoped, tag = 'scoped memory for tpu_custom_call.1']
    #allocation13 [shape = 'u8[32768]{0}', space=vmem, size = 0x8000, scoped, tag = 'input window, operand 11, single buffered']
    #allocation14 [shape = 'u8[16384]{0}', space=vmem, size = 0x4000, scoped, tag = 'input window, operand 12, single buffered']
    #allocation15 [shape = 's32[1]{0}', space=sflag, size = 0x4, scoped, tag = 'scoped memory for tpu_custom_call.1']
    #allocation16 [shape = 'u8[32768]{0}', space=vmem, size = 0x8000, scoped, tag = 'input window, operand 13, single buffered']
    #allocation17 [shape = 'u8[16384]{0}', space=vmem, size = 0x4000, scoped, tag = 'input window, operand 14, single buffered']
    #allocation18 [shape = 's32[1]{0}', space=sflag, size = 0x4, scoped, tag = 'scoped memory for tpu_custom_call.1']
    #allocation19 [shape = 'u8[8192]{0}', space=vmem, size = 0x2000, scoped, tag = 'output window, operand 0, single buffered']
    %20 = vsyncpa [#allocation3], 0
    %21 = vsyncpa [#allocation6], 0
    %22 = vsyncpa [#allocation9], 0
    %23 = vsyncpa [#allocation12], 0
    %24 = vsyncpa [#allocation15], 0
    %25 = vsyncpa [#allocation18], 0
    %26 = vsyncpa [#allocation4], 0
    // Predicated region
    $region2: #{tpu_custom_call.1} parent=1 // pred_check
      _
    $region3: #{tpu_custom_call.1} parent=1 // pred_check_branch
      %28 = sbr.rel (0) target = $region5
    $region4: #{tpu_custom_call.1} parent=1 // pred_region
      %30 = vsyncadd [#allocation3], 0
      %s31 = sshll.u32 %s0, 4
      %s32 = int_to_ptr.hbm [resolvable:$true] %s31
      %s33 = sshll.u32 [#allocation2], 4
      %s34 = int_to_ptr.vmem [resolvable:$true] %s33
      %39 = dma.hbm_to_vmem [thread:$0]  %s32, 512, %s34, [#allocation3], 128, 128, 8
    $region5: #{tpu_custom_call.1} parent=1 // pred_fallthru
      _
    // Predicated region
    $region6: #{tpu_custom_call.1} parent=1 // pred_check
      _
    $region7: #{tpu_custom_call.1} parent=1 // pred_check_branch
      %41 = sbr.rel (0) target = $region9
    $region8: #{tpu_custom_call.1} parent=1 // pred_region
      %43 = vsyncadd [#allocation6], 0
      %s45 = sshll.u32 %s1, 4
      %s46 = int_to_ptr.hbm [resolvable:$true] %s45
      %s47 = sshll.u32 [#allocation5], 4
      %s48 = int_to_ptr.vmem [resolvable:$true] %s47
      %50 = dma.hbm_to_vmem [thread:$0]  %s46, 128, %s48, [#allocation6]
    $region9: #{tpu_custom_call.1} parent=1 // pred_fallthru
      _
    // Predicated region
    $region10: #{tpu_custom_call.1} parent=1 // pred_check
      _
    $region11: #{tpu_custom_call.1} parent=1 // pred_check_branch
      %52 = sbr.rel (0) target = $region13
    $region12: #{tpu_custom_call.1} parent=1 // pred_region
      %54 = vsyncadd [#allocation6], 0
      %s55 = sshll.u32 %s2, 4
      %s56 = int_to_ptr.hbm [resolvable:$true] %s55
      %s57 = sshll.u32 [#allocation7], 4
      %s58 = int_to_ptr.vmem [resolvable:$true] %s57
      %63 = dma.hbm_to_vmem [thread:$0]  %s56, 384, %s58, [#allocation6], 128, 128, 8
    $region13: #{tpu_custom_call.1} parent=1 // pred_fallthru
      _
    // Predicated region
    $region14: #{tpu_custom_call.1} parent=1 // pred_check
      _
    $region15: #{tpu_custom_call.1} parent=1 // pred_check_branch
      %65 = sbr.rel (0) target = $region17
    $region16: #{tpu_custom_call.1} parent=1 // pred_region
      _
    $region17: #{tpu_custom_call.1} parent=1 // pred_fallthru
      _
    // Predicated region
    $region18: #{tpu_custom_call.1} parent=1 // pred_check
      _
    $region19: #{tpu_custom_call.1} parent=1 // pred_check_branch
      %67 = sbr.rel (0) target = $region21
    $region20: #{tpu_custom_call.1} parent=1 // pred_region
      _
    $region21: #{tpu_custom_call.1} parent=1 // pred_fallthru
      _
    // Predicated region
    $region22: #{tpu_custom_call.1} parent=1 // pred_check
      _
    $region23: #{tpu_custom_call.1} parent=1 // pred_check_branch
      %69 = sbr.rel (0) target = $region25
    $region24: #{tpu_custom_call.1} parent=1 // pred_region
      %71 = vsyncadd [#allocation9], 0
      %s73 = sshll.u32 %s5, 4
      %s74 = int_to_ptr.hbm [resolvable:$true] %s73
      %s75 = sshll.u32 [#allocation8], 4
      %s76 = int_to_ptr.vmem [resolvable:$true] %s75
      %78 = dma.hbm_to_vmem [thread:$0]  %s74, 32, %s76, [#allocation9]
    $region25: #{tpu_custom_call.1} parent=1 // pred_fallthru
      _
    // Predicated region
    $region26: #{tpu_custom_call.1} parent=1 // pred_check
      _
    $region27: #{tpu_custom_call.1} parent=1 // pred_check_branch
      %80 = sbr.rel (0) target = $region29
    $region28: #{tpu_custom_call.1} parent=1 // pred_region
      %82 = vsyncadd [#allocation9], 0
      %s84 = sshll.u32 %s6, 4
      %s85 = int_to_ptr.hbm [resolvable:$true] %s84
      %s86 = sshll.u32 [#allocation10], 4
      %s87 = int_to_ptr.vmem [resolvable:$true] %s86
      %89 = dma.hbm_to_vmem [thread:$0]  %s85, 16, %s87, [#allocation9]
    $region29: #{tpu_custom_call.1} parent=1 // pred_fallthru
      _
    // Predicated region
    $region30: #{tpu_custom_call.1} parent=1 // pred_check
      _
    $region31: #{tpu_custom_call.1} parent=1 // pred_check_branch
      %91 = sbr.rel (0) target = $region33
    $region32: #{tpu_custom_call.1} parent=1 // pred_region
      _
    $region33: #{tpu_custom_call.1} parent=1 // pred_fallthru
      _
    // Predicated region
    $region34: #{tpu_custom_call.1} parent=1 // pred_check
      _
    $region35: #{tpu_custom_call.1} parent=1 // pred_check_branch
      %93 = sbr.rel (0) target = $region37
    $region36: #{tpu_custom_call.1} parent=1 // pred_region
      _
    $region37: #{tpu_custom_call.1} parent=1 // pred_fallthru
      _
    // Predicated region
    $region38: #{tpu_custom_call.1} parent=1 // pred_check
      _
    $region39: #{tpu_custom_call.1} parent=1 // pred_check_branch
      %95 = sbr.rel (0) target = $region41
    $region40: #{tpu_custom_call.1} parent=1 // pred_region
      %97 = vsyncadd [#allocation12], 0
      %s98 = sshll.u32 %s9, 4
      %s99 = int_to_ptr.hbm [resolvable:$true] %s98
      %s100 = sshll.u32 [#allocation11], 4
      %s101 = int_to_ptr.vmem [resolvable:$true] %s100
      %106 = dma.hbm_to_vmem [thread:$0]  %s99, 1024, %s101, [#allocation12], 64, 64, 4
    $region41: #{tpu_custom_call.1} parent=1 // pred_fallthru
      _
    // Predicated region
    $region42: #{tpu_custom_call.1} parent=1 // pred_check
      _
    $region43: #{tpu_custom_call.1} parent=1 // pred_check_branch
      %108 = sbr.rel (0) target = $region45
    $region44: #{tpu_custom_call.1} parent=1 // pred_region
      _
    $region45: #{tpu_custom_call.1} parent=1 // pred_fallthru
      _
    // Predicated region
    $region46: #{tpu_custom_call.1} parent=1 // pred_check
      _
    $region47: #{tpu_custom_call.1} parent=1 // pred_check_branch
      %110 = sbr.rel (0) target = $region49
    $region48: #{tpu_custom_call.1} parent=1 // pred_region
      %112 = vsyncadd [#allocation12], 0
      %s113 = sshll.u32 %s11, 4
      %s114 = int_to_ptr.hbm [resolvable:$true] %s113
      %s115 = sshll.u32 [#allocation13], 4
      %s116 = int_to_ptr.vmem [resolvable:$true] %s115
      %121 = dma.hbm_to_vmem [thread:$0]  %s114, 1024, %s116, [#allocation12], 64, 64, 4
    $region49: #{tpu_custom_call.1} parent=1 // pred_fallthru
      _
    // Predicated region
    $region50: #{tpu_custom_call.1} parent=1 // pred_check
      _
    $region51: #{tpu_custom_call.1} parent=1 // pred_check_branch
      %123 = sbr.rel (0) target = $region53
    $region52: #{tpu_custom_call.1} parent=1 // pred_region
      %125 = vsyncadd [#allocation15], 0
      %s126 = sshll.u32 %s12, 4
      %s127 = int_to_ptr.hbm [resolvable:$true] %s126
      %s128 = sshll.u32 [#allocation14], 4
      %s129 = int_to_ptr.vmem [resolvable:$true] %s128
      %134 = dma.hbm_to_vmem [thread:$0]  %s127, 512, %s129, [#allocation15], 64, 64, 4
    $region53: #{tpu_custom_call.1} parent=1 // pred_fallthru
      _
    // Predicated region
    $region54: #{tpu_custom_call.1} parent=1 // pred_check
      _
    $region55: #{tpu_custom_call.1} parent=1 // pred_check_branch
      %136 = sbr.rel (0) target = $region57
    $region56: #{tpu_custom_call.1} parent=1 // pred_region
      %138 = vsyncadd [#allocation15], 0
      %s139 = sshll.u32 %s13, 4
      %s140 = int_to_ptr.hbm [resolvable:$true] %s139
      %s141 = sshll.u32 [#allocation16], 4
      %s142 = int_to_ptr.vmem [resolvable:$true] %s141
      %147 = dma.hbm_to_vmem [thread:$0]  %s140, 1024, %s142, [#allocation15], 64, 64, 4
    $region57: #{tpu_custom_call.1} parent=1 // pred_fallthru
      _
    // Predicated region
    $region58: #{tpu_custom_call.1} parent=1 // pred_check
      _
    $region59: #{tpu_custom_call.1} parent=1 // pred_check_branch
      %149 = sbr.rel (0) target = $region61
    $region60: #{tpu_custom_call.1} parent=1 // pred_region
      %151 = vsyncadd [#allocation18], 0
      %s152 = sshll.u32 %s14, 4
      %s153 = int_to_ptr.hbm [resolvable:$true] %s152
      %s154 = sshll.u32 [#allocation17], 4
      %s155 = int_to_ptr.vmem [resolvable:$true] %s154
      %160 = dma.hbm_to_vmem [thread:$0]  %s153, 512, %s155, [#allocation18], 64, 64, 4
    $region61: #{tpu_custom_call.1} parent=1 // pred_fallthru
      _
    // Predicated region
    $region62: #{tpu_custom_call.1} parent=1 // pred_check
      _
    $region63: #{tpu_custom_call.1} parent=1 // pred_check_branch
      %162 = sbr.rel (0) target = $region65
    $region64: #{tpu_custom_call.1} parent=1 // pred_region
      %164 = dma.done [#allocation3], 512
    $region65: #{tpu_custom_call.1} parent=1 // pred_fallthru
      _
    // Predicated region
    $region66: #{tpu_custom_call.1} parent=1 // pred_check
      _
    $region67: #{tpu_custom_call.1} parent=1 // pred_check_branch
      %166 = sbr.rel (0) target = $region69
    $region68: #{tpu_custom_call.1} parent=1 // pred_region
      %168 = dma.done [#allocation6], 128
    $region69: #{tpu_custom_call.1} parent=1 // pred_fallthru
      _
    // Predicated region
    $region70: #{tpu_custom_call.1} parent=1 // pred_check
      _
    $region71: #{tpu_custom_call.1} parent=1 // pred_check_branch
      %170 = sbr.rel (0) target = $region73
    $region72: #{tpu_custom_call.1} parent=1 // pred_region
      %172 = dma.done [#allocation6], 384
    $region73: #{tpu_custom_call.1} parent=1 // pred_fallthru
      _
    // Predicated region
    $region74: #{tpu_custom_call.1} parent=1 // pred_check
      _
    $region75: #{tpu_custom_call.1} parent=1 // pred_check_branch
      %174 = sbr.rel (0) target = $region77
    $region76: #{tpu_custom_call.1} parent=1 // pred_region
      %176 = dma.done [#allocation9], 32
    $region77: #{tpu_custom_call.1} parent=1 // pred_fallthru
      _
    // Predicated region
    $region78: #{tpu_custom_call.1} parent=1 // pred_check
      _
    $region79: #{tpu_custom_call.1} parent=1 // pred_check_branch
      %178 = sbr.rel (0) target = $region81
    $region80: #{tpu_custom_call.1} parent=1 // pred_region
      %180 = dma.done [#allocation9], 16
    $region81: #{tpu_custom_call.1} parent=1 // pred_fallthru
      _
    // Predicated region
    $region82: #{tpu_custom_call.1} parent=1 // pred_check
      _
    $region83: #{tpu_custom_call.1} parent=1 // pred_check_branch
      %182 = sbr.rel (0) target = $region85
    $region84: #{tpu_custom_call.1} parent=1 // pred_region
      %184 = dma.done [#allocation12], 1024
    $region85: #{tpu_custom_call.1} parent=1 // pred_fallthru
      _
    // Predicated region
    $region86: #{tpu_custom_call.1} parent=1 // pred_check
      _
    $region87: #{tpu_custom_call.1} parent=1 // pred_check_branch
      %186 = sbr.rel (0) target = $region89
    $region88: #{tpu_custom_call.1} parent=1 // pred_region
      %188 = dma.done [#allocation12], 1024
    $region89: #{tpu_custom_call.1} parent=1 // pred_fallthru
      _
    // Predicated region
    $region90: #{tpu_custom_call.1} parent=1 // pred_check
      _
    $region91: #{tpu_custom_call.1} parent=1 // pred_check_branch
      %190 = sbr.rel (0) target = $region93
    $region92: #{tpu_custom_call.1} parent=1 // pred_region
      %192 = dma.done [#allocation15], 512
    $region93: #{tpu_custom_call.1} parent=1 // pred_fallthru
      _
    // Predicated region
    $region94: #{tpu_custom_call.1} parent=1 // pred_check
      _
    $region95: #{tpu_custom_call.1} parent=1 // pred_check_branch
      %194 = sbr.rel (0) target = $region97
    $region96: #{tpu_custom_call.1} parent=1 // pred_region
      %196 = dma.done [#allocation15], 1024
    $region97: #{tpu_custom_call.1} parent=1 // pred_fallthru
      _
    // Predicated region
    $region98: #{tpu_custom_call.1} parent=1 // pred_check
      _
    $region99: #{tpu_custom_call.1} parent=1 // pred_check_branch
      %198 = sbr.rel (0) target = $region101
    $region100: #{tpu_custom_call.1} parent=1 // pred_region
      %200 = dma.done [#allocation18], 512
    $region101: #{tpu_custom_call.1} parent=1 // pred_fallthru
      _
    %v202 = vlaneseq
    %v203 = vand.u32 %v202, 127
    %vm204 = vcmp.ge.s32.totalorder %v203, 0
    %vm205 = vcmp.lt.s32.totalorder %v203, 16
    %vm206 = vmand %vm204, %vm205
    %v207 = vsel %vm206, 1, 0
    %v208 = vcvt.s32.f32 %v207
    %vm209 = vcmp.ge.s32.totalorder %v203, 16
    %vm210 = vcmp.lt.s32.totalorder %v203, 32
    %vm211 = vmand %vm209, %vm210
    %v212 = vsel %vm211, 1, 0
    %v213 = vcvt.s32.f32 %v212
    %vm214 = vcmp.ge.s32.totalorder %v203, 32
    %vm215 = vcmp.lt.s32.totalorder %v203, 48
    %vm216 = vmand %vm214, %vm215
    %v217 = vsel %vm216, 1, 0
    %v218 = vcvt.s32.f32 %v217
    %vm219 = vcmp.ge.s32.totalorder %v203, 48
    %vm220 = vcmp.lt.s32.totalorder %v203, 64
    %vm221 = vmand %vm219, %vm220
    %v222 = vsel %vm221, 1, 0
    %v223 = vcvt.s32.f32 %v222
    %v224 = vld [vmem:[#allocation2] sm:$0xff]
    %v225 = vld [vmem:[#allocation2 + $0x8] sm:$0xff]
    %v226 = vld [vmem:[#allocation2 + $0x10] sm:$0xff]
    %v227 = vld [vmem:[#allocation2 + $0x18] sm:$0xff]
    %v228 = vpack.c.bf16 %v225, %v224
    %v229 = vpack.c.bf16 %v227, %v226
    %v230 = vld [vmem:[#allocation5] sm:$0xff]
    %v231 = vld [vmem:[#allocation7] sm:$0x1]
    %v232 = vld [vmem:[#allocation7 + $0x1] sm:$0x1]
    %vm233 = vcmask 523264
    %v234 = vsel %vm233, %v230, 0.0
    %235 = vadd.xlane.f32.xlu0 %v234
    %v236 = vpop.xlane.xlu0 %235
    %v237 = vrcp.pop 64.0
    %v238 = vmul.f32 64.0, %v237
    %v239 = vsub.f32 1.0, %v238
    %v240 = vmul.f32 %v237, %v239
    %v241 = vadd.f32 %v237, %v240
    %vm242 = vweird.f32 %v237
    %v243 = vsel %vm242, %v237, %v241
    %v244 = vmul.f32 %v236, %v243
    %v245 = vsub.f32 %v230, %v244
    %v246 = vmul.f32 %v245, %v245
    %v247 = vsel %vm233, %v246, 0.0
    %248 = vadd.xlane.f32.xlu0 %v247
    %v249 = vpop.xlane.xlu0 %248
    %v250 = vmul.f32 %v249, %v243
    %v251 = vadd.f32 %v250, 1e-12
    %v252 = vrsqrt.pop %v251
    %v253 = vmul.f32 %v252, %v251
    %v254 = vmul.f32 %v253, %v252
    %v255 = vmul.f32 0.5, %v254
    %v256 = vsub.f32 1.5, %v255
    %v257 = vmul.f32 %v252, %v256
    %vm258 = vweird.f32 %v251
    %vm259 = vweird.f32 %v252
    %vm260 = vmor %vm258, %vm259
    %v261 = vsel %vm260, %v252, %v257
    %v262 = vmul.f32 %v245, %v261
    %v263 = vperm.slane %v231, 0
    %v264 = vmul.f32 %v262, %v263
    %v265 = vperm.slane %v232, 0
    %v266 = vadd.f32 %v264, %v265
    %v267 = vld [vmem:[%s7] sm:$0xff]
    %v268 = vld [vmem:[%s7 + $0x8] sm:$0xff]
    %v269 = vld [vmem:[%s7 + $0x10] sm:$0xff]
    %v270 = vld [vmem:[%s7 + $0x18] sm:$0xff]
    %v271 = vld [vmem:[%s7 + $0x20] sm:$0xff]
    %v272 = vld [vmem:[%s7 + $0x28] sm:$0xff]
    %v273 = vld [vmem:[%s7 + $0x30] sm:$0xff]
    %v274 = vld [vmem:[%s7 + $0x38] sm:$0xff]
    %v275 = vld [vmem:[%s3] ss:$2 sm:$0x3]
    %v276 = vpack.c.bf16 %v266, %v266
    %v278 = vperm.slane %v275, 0
    %v279 = vperm.slane %v275, 1
    %v290 = vunpack.c.l.b16 %v267
    %v291 = vunpack.c.h.b16 %v267
    %v292 = vunpack.c.l.b16 %v268
    %v293 = vunpack.c.h.b16 %v268
    %v294 = vunpack.c.l.b16 %v269
    %v295 = vunpack.c.h.b16 %v269
    %v296 = vunpack.c.l.b16 %v270
    %v297 = vunpack.c.h.b16 %v270
    %v298 = vunpack.c.l.b16 %v271
    %v299 = vunpack.c.h.b16 %v271
    %v300 = vunpack.c.l.b16 %v272
    %v301 = vunpack.c.h.b16 %v272
    %v302 = vunpack.c.l.b16 %v273
    %v303 = vunpack.c.h.b16 %v273
    %v304 = vunpack.c.l.b16 %v274
    %v305 = vunpack.c.h.b16 %v274
    %v306 = vpack.c.b16 %v292, %v290
    %v307 = vpack.c.b16 %v293, %v291
    %v308 = vpack.c.b16 %v296, %v294
    %v309 = vpack.c.b16 %v297, %v295
    %v310 = vpack.c.b16 %v300, %v298
    %v311 = vpack.c.b16 %v301, %v299
    %v312 = vpack.c.b16 %v304, %v302
    %v313 = vpack.c.b16 %v305, %v303
    %v323 = vsel %vm233, %v276, 0
    %325 = vmatpush.bf16.msra.mxu0 0
    %326 = vmatpush.bf16.msra.mxu0 0
    %327 = vmatpush.bf16.msra.mxu0 0
    %328 = vmatpush.bf16.msra.mxu0 0
    %329 = vmatpush.bf16.msra.mxu0 %v312
    %330 = vmatpush.bf16.msra.mxu0 %v310
    %331 = vmatpush.bf16.msra.mxu0 %v308
    %332 = vmatpush.bf16.msra.mxu0 %v306
    %333 = vmatmul.bf16.gmra.mxu0 %v323
    %v334 = vpop.f32.mrf.mxu0
    %v335 = vadd.f32 %v278, %v334
    %v336 = vpop.f32.mrf.mxu0
    %v337 = vadd.f32 %v278, %v336
    %338 = vdwg.mxu0
    %339 = vmatpush.bf16.msra.mxu0 0
    %340 = vmatpush.bf16.msra.mxu0 0
    %341 = vmatpush.bf16.msra.mxu0 0
    %342 = vmatpush.bf16.msra.mxu0 0
    %343 = vmatpush.bf16.msra.mxu0 %v313
    %344 = vmatpush.bf16.msra.mxu0 %v311
    %345 = vmatpush.bf16.msra.mxu0 %v309
    %346 = vmatpush.bf16.msra.mxu0 %v307
    %347 = vmatmul.bf16.gmra.mxu0 %v323
    %v348 = vpop.f32.mrf.mxu0
    %v349 = vadd.f32 %v279, %v348
    %v350 = vpop.f32.mrf.mxu0
    %v351 = vadd.f32 %v279, %v350
    %352 = vdwg.mxu0
    %v353 = vmul.f32 %v335, 0.25
    %v354 = vmul.f32 %v353, %v208
    %356 = vrot.lane.b32.xlu0 %v335, 64
    %v357 = vpop.permute.xlu0 %356
    %v359 = vsel %vm233, %v354, 0
    %v361 = vsel %vm233, %v357, 0
    %363 = vmatpush.xpose.msra.mxu0 0.0
    %364 = vmatpush.xpose.msra.mxu0 0.0
    %365 = vmatpush.xpose.msra.mxu0 0.0
    %366 = vmatpush.xpose.msra.mxu0 0.0
    %367 = vmatpush.xpose.msra.mxu0 0.0
    %368 = vmatpush.xpose.msra.mxu0 0.0
    %369 = vmatpush.xpose.msra.mxu0 0.0
    %370 = vmatpush.xpose.msra.mxu0 0.0
    %371 = vmatpush.xpose.msra.mxu0 0.0
    %372 = vmatpush.xpose.msra.mxu0 0.0
    %373 = vmatpush.xpose.msra.mxu0 0.0
    %374 = vmatpush.xpose.msra.mxu0 0.0
    %375 = vmatpush.xpose.msra.mxu0 0.0
    %376 = vmatpush.xpose.msra.mxu0 0.0
    %377 = vmatpush.xpose.msra.mxu0 0.0
    %378 = vmatpush.xpose.msra.mxu0 %v361
    %379 = vmatmul.f32.gmra.mxu0 %v359
    %v380 = vpop.f32.mrf.mxu0
    %v381 = vadd.f32 0.0, %v380
    %382 = vdwg.mxu0
    %vm383 = vcmask 64512
    %v384 = vsel %vm383, %v381, -inf
    %385 = vmax.xlane.f32.xlu0 %v384
    %v386 = vpop.xlane.xlu0 %385
    %v387 = vsub.f32 %v381, %v386
    %v388 = vmul.f32 %v387, 1.442695
    %v389 = vpow.pop %v388
    %v390 = vsel %vm383, %v389, 0.0
    %391 = vadd.xlane.f32.xlu0 %v390
    %v392 = vpop.xlane.xlu0 %391
    %v393 = vrcp.pop %v392
    %v394 = vmul.f32 %v392, %v393
    %v395 = vsub.f32 1.0, %v394
    %v396 = vmul.f32 %v393, %v395
    %v397 = vadd.f32 %v393, %v396
    %vm398 = vweird.f32 %v392
    %vm399 = vweird.f32 %v393
    %vm400 = vmor %vm398, %vm399
    %v401 = vsel %vm400, %v393, %v397
    %v402 = vand.u32 2147483647, %v392
    %vm403 = vcmp.eq.f32.partialorder %v402, 8.507059e+37
    %v404 = vand.u32 %v392, 2147483648
    %v405 = vor.u32 1.1754944e-38, %v404
    %v406 = vsel %vm403, %v405, %v401
    %v407 = vmul.f32 %v389, %v406
    %v408 = vmul.f32 %v349, %v208
    %v409 = vmul.f32 %v353, %v213
    %v411 = vsel %vm233, %v409, 0
    %413 = vmatpush.xpose.msra.mxu0 0.0
    %414 = vmatpush.xpose.msra.mxu0 0.0
    %415 = vmatpush.xpose.msra.mxu0 0.0
    %416 = vmatpush.xpose.msra.mxu0 0.0
    %417 = vmatpush.xpose.msra.mxu0 0.0
    %418 = vmatpush.xpose.msra.mxu0 0.0
    %419 = vmatpush.xpose.msra.mxu0 0.0
    %420 = vmatpush.xpose.msra.mxu0 0.0
    %421 = vmatpush.xpose.msra.mxu0 0.0
    %422 = vmatpush.xpose.msra.mxu0 0.0
    %423 = vmatpush.xpose.msra.mxu0 0.0
    %424 = vmatpush.xpose.msra.mxu0 0.0
    %425 = vmatpush.xpose.msra.mxu0 0.0
    %426 = vmatpush.xpose.msra.mxu0 0.0
    %427 = vmatpush.xpose.msra.mxu0 0.0
    %428 = vmatpush.xpose.msra.mxu0 %v361
    %429 = vmatmul.f32.gmra.mxu0 %v411
    %v430 = vpop.f32.mrf.mxu0
    %v431 = vadd.f32 0.0, %v430
    %432 = vdwg.mxu0
    %v433 = vsel %vm383, %v431, -inf
    %434 = vmax.xlane.f32.xlu0 %v433
    %v435 = vpop.xlane.xlu0 %434
    %v436 = vsub.f32 %v431, %v435
    %v437 = vmul.f32 %v436, 1.442695
    %v438 = vpow.pop %v437
    %v439 = vsel %vm383, %v438, 0.0
    %440 = vadd.xlane.f32.xlu0 %v439
    %v441 = vpop.xlane.xlu0 %440
    %v442 = vrcp.pop %v441
    %v443 = vmul.f32 %v441, %v442
    %v444 = vsub.f32 1.0, %v443
    %v445 = vmul.f32 %v442, %v444
    %v446 = vadd.f32 %v442, %v445
    %vm447 = vweird.f32 %v441
    %vm448 = vweird.f32 %v442
    %vm449 = vmor %vm447, %vm448
    %v450 = vsel %vm449, %v442, %v446
    %v451 = vand.u32 2147483647, %v441
    %vm452 = vcmp.eq.f32.partialorder %v451, 8.507059e+37
    %v453 = vand.u32 %v441, 2147483648
    %v454 = vor.u32 1.1754944e-38, %v453
    %v455 = vsel %vm452, %v454, %v450
    %v456 = vmul.f32 %v438, %v455
    %v457 = vmul.f32 %v349, %v213
    %v459 = vsel %vm383, %v456, 0
    %461 = vmatpush.msra.mxu0 0.0
    %462 = vmatpush.msra.mxu0 0.0
    %463 = vmatpush.msra.mxu0 0.0
    %464 = vmatpush.msra.mxu0 0.0
    %465 = vmatpush.msra.mxu0 0.0
    %466 = vmatpush.msra.mxu0 0.0
    %467 = vmatpush.msra.mxu0 0.0
    %468 = vmatpush.msra.mxu0 0.0
    %469 = vmatpush.msra.mxu0 0.0
    %470 = vmatpush.msra.mxu0 0.0
    %471 = vmatpush.msra.mxu0 0.0
    %472 = vmatpush.msra.mxu0 0.0
    %473 = vmatpush.msra.mxu0 0.0
    %474 = vmatpush.msra.mxu0 0.0
    %475 = vmatpush.msra.mxu0 0.0
    %476 = vmatpush.msra.mxu0 %v457
    %477 = vmatmul.f32.gmra.mxu0 %v459
    %v478 = vpop.f32.mrf.mxu0
    %v479 = vadd.f32 0.0, %v478
    %480 = vdwg.mxu0
    %v482 = vsel %vm383, %v407, 0
    %484 = vmatpush.msra.mxu0 0.0
    %485 = vmatpush.msra.mxu0 0.0
    %486 = vmatpush.msra.mxu0 0.0
    %487 = vmatpush.msra.mxu0 0.0
    %488 = vmatpush.msra.mxu0 0.0
    %489 = vmatpush.msra.mxu0 0.0
    %490 = vmatpush.msra.mxu0 0.0
    %491 = vmatpush.msra.mxu0 0.0
    %492 = vmatpush.msra.mxu0 0.0
    %493 = vmatpush.msra.mxu0 0.0
    %494 = vmatpush.msra.mxu0 0.0
    %495 = vmatpush.msra.mxu0 0.0
    %496 = vmatpush.msra.mxu0 0.0
    %497 = vmatpush.msra.mxu0 0.0
    %498 = vmatpush.msra.mxu0 0.0
    %499 = vmatpush.msra.mxu0 %v408
    %500 = vmatmul.f32.gmra.mxu0 %v482
    %v501 = vpop.f32.mrf.mxu0
    %v502 = vadd.f32 %v479, %v501
    %503 = vdwg.mxu0
    %v504 = vmul.f32 %v353, %v218
    %v506 = vsel %vm233, %v504, 0
    %508 = vmatpush.xpose.msra.mxu0 0.0
    %509 = vmatpush.xpose.msra.mxu0 0.0
    %510 = vmatpush.xpose.msra.mxu0 0.0
    %511 = vmatpush.xpose.msra.mxu0 0.0
    %512 = vmatpush.xpose.msra.mxu0 0.0
    %513 = vmatpush.xpose.msra.mxu0 0.0
    %514 = vmatpush.xpose.msra.mxu0 0.0
    %515 = vmatpush.xpose.msra.mxu0 0.0
    %516 = vmatpush.xpose.msra.mxu0 0.0
    %517 = vmatpush.xpose.msra.mxu0 0.0
    %518 = vmatpush.xpose.msra.mxu0 0.0
    %519 = vmatpush.xpose.msra.mxu0 0.0
    %520 = vmatpush.xpose.msra.mxu0 0.0
    %521 = vmatpush.xpose.msra.mxu0 0.0
    %522 = vmatpush.xpose.msra.mxu0 0.0
    %523 = vmatpush.xpose.msra.mxu0 %v361
    %524 = vmatmul.f32.gmra.mxu0 %v506
    %v525 = vpop.f32.mrf.mxu0
    %v526 = vadd.f32 0.0, %v525
    %527 = vdwg.mxu0
    %v528 = vsel %vm383, %v526, -inf
    %529 = vmax.xlane.f32.xlu0 %v528
    %v530 = vpop.xlane.xlu0 %529
    %v531 = vsub.f32 %v526, %v530
    %v532 = vmul.f32 %v531, 1.442695
    %v533 = vpow.pop %v532
    %v534 = vsel %vm383, %v533, 0.0
    %535 = vadd.xlane.f32.xlu0 %v534
    %v536 = vpop.xlane.xlu0 %535
    %v537 = vrcp.pop %v536
    %v538 = vmul.f32 %v536, %v537
    %v539 = vsub.f32 1.0, %v538
    %v540 = vmul.f32 %v537, %v539
    %v541 = vadd.f32 %v537, %v540
    %vm542 = vweird.f32 %v536
    %vm543 = vweird.f32 %v537
    %vm544 = vmor %vm542, %vm543
    %v545 = vsel %vm544, %v537, %v541
    %v546 = vand.u32 2147483647, %v536
    %vm547 = vcmp.eq.f32.partialorder %v546, 8.507059e+37
    %v548 = vand.u32 %v536, 2147483648
    %v549 = vor.u32 1.1754944e-38, %v548
    %v550 = vsel %vm547, %v549, %v545
    %v551 = vmul.f32 %v533, %v550
    %v552 = vmul.f32 %v349, %v218
    %v554 = vsel %vm383, %v551, 0
    %556 = vmatpush.msra.mxu0 0.0
    %557 = vmatpush.msra.mxu0 0.0
    %558 = vmatpush.msra.mxu0 0.0
    %559 = vmatpush.msra.mxu0 0.0
    %560 = vmatpush.msra.mxu0 0.0
    %561 = vmatpush.msra.mxu0 0.0
    %562 = vmatpush.msra.mxu0 0.0
    %563 = vmatpush.msra.mxu0 0.0
    %564 = vmatpush.msra.mxu0 0.0
    %565 = vmatpush.msra.mxu0 0.0
    %566 = vmatpush.msra.mxu0 0.0
    %567 = vmatpush.msra.mxu0 0.0
    %568 = vmatpush.msra.mxu0 0.0
    %569 = vmatpush.msra.mxu0 0.0
    %570 = vmatpush.msra.mxu0 0.0
    %571 = vmatpush.msra.mxu0 %v552
    %572 = vmatmul.f32.gmra.mxu0 %v554
    %v573 = vpop.f32.mrf.mxu0
    %v574 = vadd.f32 0.0, %v573
    %575 = vdwg.mxu0
    %v576 = vadd.f32 %v502, %v574
    %v577 = vmul.f32 %v353, %v223
    %v579 = vsel %vm233, %v577, 0
    %581 = vmatpush.xpose.msra.mxu0 0.0
    %582 = vmatpush.xpose.msra.mxu0 0.0
    %583 = vmatpush.xpose.msra.mxu0 0.0
    %584 = vmatpush.xpose.msra.mxu0 0.0
    %585 = vmatpush.xpose.msra.mxu0 0.0
    %586 = vmatpush.xpose.msra.mxu0 0.0
    %587 = vmatpush.xpose.msra.mxu0 0.0
    %588 = vmatpush.xpose.msra.mxu0 0.0
    %589 = vmatpush.xpose.msra.mxu0 0.0
    %590 = vmatpush.xpose.msra.mxu0 0.0
    %591 = vmatpush.xpose.msra.mxu0 0.0
    %592 = vmatpush.xpose.msra.mxu0 0.0
    %593 = vmatpush.xpose.msra.mxu0 0.0
    %594 = vmatpush.xpose.msra.mxu0 0.0
    %595 = vmatpush.xpose.msra.mxu0 0.0
    %596 = vmatpush.xpose.msra.mxu0 %v361
    %597 = vmatmul.f32.gmra.mxu0 %v579
    %v598 = vpop.f32.mrf.mxu0
    %v599 = vadd.f32 0.0, %v598
    %600 = vdwg.mxu0
    %v601 = vsel %vm383, %v599, -inf
    %602 = vmax.xlane.f32.xlu0 %v601
    %v603 = vpop.xlane.xlu0 %602
    %v604 = vsub.f32 %v599, %v603
    %v605 = vmul.f32 %v604, 1.442695
    %v606 = vpow.pop %v605
    %v607 = vsel %vm383, %v606, 0.0
    %608 = vadd.xlane.f32.xlu0 %v607
    %v609 = vpop.xlane.xlu0 %608
    %v610 = vrcp.pop %v609
    %v611 = vmul.f32 %v609, %v610
    %v612 = vsub.f32 1.0, %v611
    %v613 = vmul.f32 %v610, %v612
    %v614 = vadd.f32 %v610, %v613
    %vm615 = vweird.f32 %v609
    %vm616 = vweird.f32 %v610
    %vm617 = vmor %vm615, %vm616
    %v618 = vsel %vm617, %v610, %v614
    %v619 = vand.u32 2147483647, %v609
    %vm620 = vcmp.eq.f32.partialorder %v619, 8.507059e+37
    %v621 = vand.u32 %v609, 2147483648
    %v622 = vor.u32 1.1754944e-38, %v621
    %v623 = vsel %vm620, %v622, %v618
    %v624 = vmul.f32 %v606, %v623
    %v625 = vmul.f32 %v349, %v223
    %v627 = vsel %vm383, %v624, 0
    %629 = vmatpush.msra.mxu0 0.0
    %630 = vmatpush.msra.mxu0 0.0
    %631 = vmatpush.msra.mxu0 0.0
    %632 = vmatpush.msra.mxu0 0.0
    %633 = vmatpush.msra.mxu0 0.0
    %634 = vmatpush.msra.mxu0 0.0
    %635 = vmatpush.msra.mxu0 0.0
    %636 = vmatpush.msra.mxu0 0.0
    %637 = vmatpush.msra.mxu0 0.0
    %638 = vmatpush.msra.mxu0 0.0
    %639 = vmatpush.msra.mxu0 0.0
    %640 = vmatpush.msra.mxu0 0.0
    %641 = vmatpush.msra.mxu0 0.0
    %642 = vmatpush.msra.mxu0 0.0
    %643 = vmatpush.msra.mxu0 0.0
    %644 = vmatpush.msra.mxu0 %v625
    %645 = vmatmul.f32.gmra.mxu0 %v627
    %v646 = vpop.f32.mrf.mxu0
    %v647 = vadd.f32 0.0, %v646
    %648 = vdwg.mxu0
    %v649 = vadd.f32 %v576, %v647
    %v650 = vmul.f32 %v337, 0.25
    %v651 = vmul.f32 %v650, %v208
    %653 = vrot.lane.b32.xlu0 %v337, 64
    %v654 = vpop.permute.xlu0 %653
    %v656 = vsel %vm233, %v651, 0
    %v658 = vsel %vm233, %v654, 0
    %660 = vmatpush.xpose.msra.mxu0 0.0
    %661 = vmatpush.xpose.msra.mxu0 0.0
    %662 = vmatpush.xpose.msra.mxu0 0.0
    %663 = vmatpush.xpose.msra.mxu0 0.0
    %664 = vmatpush.xpose.msra.mxu0 0.0
    %665 = vmatpush.xpose.msra.mxu0 0.0
    %666 = vmatpush.xpose.msra.mxu0 0.0
    %667 = vmatpush.xpose.msra.mxu0 0.0
    %668 = vmatpush.xpose.msra.mxu0 0.0
    %669 = vmatpush.xpose.msra.mxu0 0.0
    %670 = vmatpush.xpose.msra.mxu0 0.0
    %671 = vmatpush.xpose.msra.mxu0 0.0
    %672 = vmatpush.xpose.msra.mxu0 0.0
    %673 = vmatpush.xpose.msra.mxu0 0.0
    %674 = vmatpush.xpose.msra.mxu0 0.0
    %675 = vmatpush.xpose.msra.mxu0 %v658
    %676 = vmatmul.f32.gmra.mxu0 %v656
    %v677 = vpop.f32.mrf.mxu0
    %v678 = vadd.f32 0.0, %v677
    %679 = vdwg.mxu0
    %v680 = vsel %vm383, %v678, -inf
    %681 = vmax.xlane.f32.xlu0 %v680
    %v682 = vpop.xlane.xlu0 %681
    %v683 = vsub.f32 %v678, %v682
    %v684 = vmul.f32 %v683, 1.442695
    %v685 = vpow.pop %v684
    %v686 = vsel %vm383, %v685, 0.0
    %687 = vadd.xlane.f32.xlu0 %v686
    %v688 = vpop.xlane.xlu0 %687
    %v689 = vrcp.pop %v688
    %v690 = vmul.f32 %v688, %v689
    %v691 = vsub.f32 1.0, %v690
    %v692 = vmul.f32 %v689, %v691
    %v693 = vadd.f32 %v689, %v692
    %vm694 = vweird.f32 %v688
    %vm695 = vweird.f32 %v689
    %vm696 = vmor %vm694, %vm695
    %v697 = vsel %vm696, %v689, %v693
    %v698 = vand.u32 2147483647, %v688
    %vm699 = vcmp.eq.f32.partialorder %v698, 8.507059e+37
    %v700 = vand.u32 %v688, 2147483648
    %v701 = vor.u32 1.1754944e-38, %v700
    %v702 = vsel %vm699, %v701, %v697
    %v703 = vmul.f32 %v685, %v702
    %v704 = vmul.f32 %v351, %v208
    %v705 = vmul.f32 %v650, %v213
    %v707 = vsel %vm233, %v705, 0
    %709 = vmatpush.xpose.msra.mxu0 0.0
    %710 = vmatpush.xpose.msra.mxu0 0.0
    %711 = vmatpush.xpose.msra.mxu0 0.0
    %712 = vmatpush.xpose.msra.mxu0 0.0
    %713 = vmatpush.xpose.msra.mxu0 0.0
    %714 = vmatpush.xpose.msra.mxu0 0.0
    %715 = vmatpush.xpose.msra.mxu0 0.0
    %716 = vmatpush.xpose.msra.mxu0 0.0
    %717 = vmatpush.xpose.msra.mxu0 0.0
    %718 = vmatpush.xpose.msra.mxu0 0.0
    %719 = vmatpush.xpose.msra.mxu0 0.0
    %720 = vmatpush.xpose.msra.mxu0 0.0
    %721 = vmatpush.xpose.msra.mxu0 0.0
    %722 = vmatpush.xpose.msra.mxu0 0.0
    %723 = vmatpush.xpose.msra.mxu0 0.0
    %724 = vmatpush.xpose.msra.mxu0 %v658
    %725 = vmatmul.f32.gmra.mxu0 %v707
    %v726 = vpop.f32.mrf.mxu0
    %v727 = vadd.f32 0.0, %v726
    %728 = vdwg.mxu0
    %v729 = vsel %vm383, %v727, -inf
    %730 = vmax.xlane.f32.xlu0 %v729
    %v731 = vpop.xlane.xlu0 %730
    %v732 = vsub.f32 %v727, %v731
    %v733 = vmul.f32 %v732, 1.442695
    %v734 = vpow.pop %v733
    %v735 = vsel %vm383, %v734, 0.0
    %736 = vadd.xlane.f32.xlu0 %v735
    %v737 = vpop.xlane.xlu0 %736
    %v738 = vrcp.pop %v737
    %v739 = vmul.f32 %v737, %v738
    %v740 = vsub.f32 1.0, %v739
    %v741 = vmul.f32 %v738, %v740
    %v742 = vadd.f32 %v738, %v741
    %vm743 = vweird.f32 %v737
    %vm744 = vweird.f32 %v738
    %vm745 = vmor %vm743, %vm744
    %v746 = vsel %vm745, %v738, %v742
    %v747 = vand.u32 2147483647, %v737
    %vm748 = vcmp.eq.f32.partialorder %v747, 8.507059e+37
    %v749 = vand.u32 %v737, 2147483648
    %v750 = vor.u32 1.1754944e-38, %v749
    %v751 = vsel %vm748, %v750, %v746
    %v752 = vmul.f32 %v734, %v751
    %v753 = vmul.f32 %v351, %v213
    %v755 = vsel %vm383, %v752, 0
    %757 = vmatpush.msra.mxu0 0.0
    %758 = vmatpush.msra.mxu0 0.0
    %759 = vmatpush.msra.mxu0 0.0
    %760 = vmatpush.msra.mxu0 0.0
    %761 = vmatpush.msra.mxu0 0.0
    %762 = vmatpush.msra.mxu0 0.0
    %763 = vmatpush.msra.mxu0 0.0
    %764 = vmatpush.msra.mxu0 0.0
    %765 = vmatpush.msra.mxu0 0.0
    %766 = vmatpush.msra.mxu0 0.0
    %767 = vmatpush.msra.mxu0 0.0
    %768 = vmatpush.msra.mxu0 0.0
    %769 = vmatpush.msra.mxu0 0.0
    %770 = vmatpush.msra.mxu0 0.0
    %771 = vmatpush.msra.mxu0 0.0
    %772 = vmatpush.msra.mxu0 %v753
    %773 = vmatmul.f32.gmra.mxu0 %v755
    %v774 = vpop.f32.mrf.mxu0
    %v775 = vadd.f32 0.0, %v774
    %776 = vdwg.mxu0
    %v778 = vsel %vm383, %v703, 0
    %780 = vmatpush.msra.mxu0 0.0
    %781 = vmatpush.msra.mxu0 0.0
    %782 = vmatpush.msra.mxu0 0.0
    %783 = vmatpush.msra.mxu0 0.0
    %784 = vmatpush.msra.mxu0 0.0
    %785 = vmatpush.msra.mxu0 0.0
    %786 = vmatpush.msra.mxu0 0.0
    %787 = vmatpush.msra.mxu0 0.0
    %788 = vmatpush.msra.mxu0 0.0
    %789 = vmatpush.msra.mxu0 0.0
    %790 = vmatpush.msra.mxu0 0.0
    %791 = vmatpush.msra.mxu0 0.0
    %792 = vmatpush.msra.mxu0 0.0
    %793 = vmatpush.msra.mxu0 0.0
    %794 = vmatpush.msra.mxu0 0.0
    %795 = vmatpush.msra.mxu0 %v704
    %796 = vmatmul.f32.gmra.mxu0 %v778
    %v797 = vpop.f32.mrf.mxu0
    %v798 = vadd.f32 %v775, %v797
    %799 = vdwg.mxu0
    %v800 = vmul.f32 %v650, %v218
    %v802 = vsel %vm233, %v800, 0
    %804 = vmatpush.xpose.msra.mxu0 0.0
    %805 = vmatpush.xpose.msra.mxu0 0.0
    %806 = vmatpush.xpose.msra.mxu0 0.0
    %807 = vmatpush.xpose.msra.mxu0 0.0
    %808 = vmatpush.xpose.msra.mxu0 0.0
    %809 = vmatpush.xpose.msra.mxu0 0.0
    %810 = vmatpush.xpose.msra.mxu0 0.0
    %811 = vmatpush.xpose.msra.mxu0 0.0
    %812 = vmatpush.xpose.msra.mxu0 0.0
    %813 = vmatpush.xpose.msra.mxu0 0.0
    %814 = vmatpush.xpose.msra.mxu0 0.0
    %815 = vmatpush.xpose.msra.mxu0 0.0
    %816 = vmatpush.xpose.msra.mxu0 0.0
    %817 = vmatpush.xpose.msra.mxu0 0.0
    %818 = vmatpush.xpose.msra.mxu0 0.0
    %819 = vmatpush.xpose.msra.mxu0 %v658
    %820 = vmatmul.f32.gmra.mxu0 %v802
    %v821 = vpop.f32.mrf.mxu0
    %v822 = vadd.f32 0.0, %v821
    %823 = vdwg.mxu0
    %v824 = vsel %vm383, %v822, -inf
    %825 = vmax.xlane.f32.xlu0 %v824
    %v826 = vpop.xlane.xlu0 %825
    %v827 = vsub.f32 %v822, %v826
    %v828 = vmul.f32 %v827, 1.442695
    %v829 = vpow.pop %v828
    %v830 = vsel %vm383, %v829, 0.0
    %831 = vadd.xlane.f32.xlu0 %v830
    %v832 = vpop.xlane.xlu0 %831
    %v833 = vrcp.pop %v832
    %v834 = vmul.f32 %v832, %v833
    %v835 = vsub.f32 1.0, %v834
    %v836 = vmul.f32 %v833, %v835
    %v837 = vadd.f32 %v833, %v836
    %vm838 = vweird.f32 %v832
    %vm839 = vweird.f32 %v833
    %vm840 = vmor %vm838, %vm839
    %v841 = vsel %vm840, %v833, %v837
    %v842 = vand.u32 2147483647, %v832
    %vm843 = vcmp.eq.f32.partialorder %v842, 8.507059e+37
    %v844 = vand.u32 %v832, 2147483648
    %v845 = vor.u32 1.1754944e-38, %v844
    %v846 = vsel %vm843, %v845, %v841
    %v847 = vmul.f32 %v829, %v846
    %v848 = vmul.f32 %v351, %v218
    %v850 = vsel %vm383, %v847, 0
    %852 = vmatpush.msra.mxu0 0.0
    %853 = vmatpush.msra.mxu0 0.0
    %854 = vmatpush.msra.mxu0 0.0
    %855 = vmatpush.msra.mxu0 0.0
    %856 = vmatpush.msra.mxu0 0.0
    %857 = vmatpush.msra.mxu0 0.0
    %858 = vmatpush.msra.mxu0 0.0
    %859 = vmatpush.msra.mxu0 0.0
    %860 = vmatpush.msra.mxu0 0.0
    %861 = vmatpush.msra.mxu0 0.0
    %862 = vmatpush.msra.mxu0 0.0
    %863 = vmatpush.msra.mxu0 0.0
    %864 = vmatpush.msra.mxu0 0.0
    %865 = vmatpush.msra.mxu0 0.0
    %866 = vmatpush.msra.mxu0 0.0
    %867 = vmatpush.msra.mxu0 %v848
    %868 = vmatmul.f32.gmra.mxu0 %v850
    %v869 = vpop.f32.mrf.mxu0
    %v870 = vadd.f32 0.0, %v869
    %871 = vdwg.mxu0
    %v872 = vadd.f32 %v798, %v870
    %v873 = vmul.f32 %v650, %v223
    %v875 = vsel %vm233, %v873, 0
    %877 = vmatpush.xpose.msra.mxu0 0.0
    %878 = vmatpush.xpose.msra.mxu0 0.0
    %879 = vmatpush.xpose.msra.mxu0 0.0
    %880 = vmatpush.xpose.msra.mxu0 0.0
    %881 = vmatpush.xpose.msra.mxu0 0.0
    %882 = vmatpush.xpose.msra.mxu0 0.0
    %883 = vmatpush.xpose.msra.mxu0 0.0
    %884 = vmatpush.xpose.msra.mxu0 0.0
    %885 = vmatpush.xpose.msra.mxu0 0.0
    %886 = vmatpush.xpose.msra.mxu0 0.0
    %887 = vmatpush.xpose.msra.mxu0 0.0
    %888 = vmatpush.xpose.msra.mxu0 0.0
    %889 = vmatpush.xpose.msra.mxu0 0.0
    %890 = vmatpush.xpose.msra.mxu0 0.0
    %891 = vmatpush.xpose.msra.mxu0 0.0
    %892 = vmatpush.xpose.msra.mxu0 %v658
    %893 = vmatmul.f32.gmra.mxu0 %v875
    %v894 = vpop.f32.mrf.mxu0
    %v895 = vadd.f32 0.0, %v894
    %896 = vdwg.mxu0
    %v897 = vsel %vm383, %v895, -inf
    %898 = vmax.xlane.f32.xlu0 %v897
    %v899 = vpop.xlane.xlu0 %898
    %v900 = vsub.f32 %v895, %v899
    %v901 = vmul.f32 %v900, 1.442695
    %v902 = vpow.pop %v901
    %v903 = vsel %vm383, %v902, 0.0
    %904 = vadd.xlane.f32.xlu0 %v903
    %v905 = vpop.xlane.xlu0 %904
    %v906 = vrcp.pop %v905
    %v907 = vmul.f32 %v905, %v906
    %v908 = vsub.f32 1.0, %v907
    %v909 = vmul.f32 %v906, %v908
    %v910 = vadd.f32 %v906, %v909
    %vm911 = vweird.f32 %v905
    %vm912 = vweird.f32 %v906
    %vm913 = vmor %vm911, %vm912
    %v914 = vsel %vm913, %v906, %v910
    %v915 = vand.u32 2147483647, %v905
    %vm916 = vcmp.eq.f32.partialorder %v915, 8.507059e+37
    %v917 = vand.u32 %v905, 2147483648
    %v918 = vor.u32 1.1754944e-38, %v917
    %v919 = vsel %vm916, %v918, %v914
    %v920 = vmul.f32 %v902, %v919
    %v921 = vmul.f32 %v351, %v223
    %v923 = vsel %vm383, %v920, 0
    %925 = vmatpush.msra.mxu0 0.0
    %926 = vmatpush.msra.mxu0 0.0
    %927 = vmatpush.msra.mxu0 0.0
    %928 = vmatpush.msra.mxu0 0.0
    %929 = vmatpush.msra.mxu0 0.0
    %930 = vmatpush.msra.mxu0 0.0
    %931 = vmatpush.msra.mxu0 0.0
    %932 = vmatpush.msra.mxu0 0.0
    %933 = vmatpush.msra.mxu0 0.0
    %934 = vmatpush.msra.mxu0 0.0
    %935 = vmatpush.msra.mxu0 0.0
    %936 = vmatpush.msra.mxu0 0.0
    %937 = vmatpush.msra.mxu0 0.0
    %938 = vmatpush.msra.mxu0 0.0
    %939 = vmatpush.msra.mxu0 0.0
    %940 = vmatpush.msra.mxu0 %v921
    %941 = vmatmul.f32.gmra.mxu0 %v923
    %v942 = vpop.f32.mrf.mxu0
    %v943 = vadd.f32 0.0, %v942
    %944 = vdwg.mxu0
    %v945 = vadd.f32 %v872, %v943
    %v946 = vld [vmem:[%s8] sm:$0xf]
    %v947 = vld [vmem:[%s8 + $0x4] sm:$0xf]
    %v948 = vld [vmem:[%s8 + $0x8] sm:$0xf]
    %v949 = vld [vmem:[%s8 + $0xc] sm:$0xf]
    %v950 = vld [vmem:[%s8 + $0x10] sm:$0xf]
    %v951 = vld [vmem:[%s8 + $0x14] sm:$0xf]
    %v952 = vld [vmem:[%s8 + $0x18] sm:$0xf]
    %v953 = vld [vmem:[%s8 + $0x1c] sm:$0xf]
    %v954 = vld [vmem:[#allocation7 + $0x2] sm:$0x1]
    %v955 = vpack.c.bf16 %v945, %v649
    %v956 = vperm.slane %v954, 0
    %v965 = vunpack.c.l.b16 %v946
    %v966 = vunpack.c.l.b16 %v947
    %v967 = vunpack.c.l.b16 %v948
    %v968 = vunpack.c.l.b16 %v949
    %v969 = vunpack.c.l.b16 %v950
    %v970 = vunpack.c.l.b16 %v951
    %v971 = vunpack.c.l.b16 %v952
    %v972 = vunpack.c.l.b16 %v953
    %v973 = vpack.c.b16 %v966, %v965
    %v974 = vpack.c.b16 %v968, %v967
    %v975 = vpack.c.b16 %v970, %v969
    %v976 = vpack.c.b16 %v972, %v971
    %v982 = vsel %vm233, %v955, 0
    %984 = vmatpush.bf16.msra.mxu0 0
    %985 = vmatpush.bf16.msra.mxu0 0
    %986 = vmatpush.bf16.msra.mxu0 0
    %987 = vmatpush.bf16.msra.mxu0 0
    %988 = vmatpush.bf16.msra.mxu0 %v976
    %989 = vmatpush.bf16.msra.mxu0 %v975
    %990 = vmatpush.bf16.msra.mxu0 %v974
    %991 = vmatpush.bf16.msra.mxu0 %v973
    %992 = vmatmul.bf16.gmra.mxu0 %v982
    %v993 = vpop.f32.mrf.mxu0
    %v994 = vadd.f32 %v956, %v993
    %v995 = vpop.f32.mrf.mxu0
    %v996 = vadd.f32 %v956, %v995
    %997 = vdwg.mxu0
    %v998 = vadd.f32 %v266, %v994
    %v999 = vadd.f32 %v266, %v996
    %v1000 = vld [vmem:[#allocation7 + $0x3] sm:$0x1]
    %v1001 = vld [vmem:[#allocation7 + $0x4] sm:$0x1]
    %v1002 = vsel %vm233, %v998, 0.0
    %1003 = vadd.xlane.f32.xlu0 %v1002
    %v1004 = vpop.xlane.xlu0 %1003
    %v1005 = vsel %vm233, %v999, 0.0
    %1006 = vadd.xlane.f32.xlu0 %v1005
    %v1007 = vpop.xlane.xlu0 %1006
    %v1008 = vmul.f32 %v1004, %v243
    %v1009 = vmul.f32 %v1007, %v243
    %v1010 = vsub.f32 %v998, %v1008
    %v1011 = vsub.f32 %v999, %v1009
    %v1012 = vmul.f32 %v1010, %v1010
    %v1013 = vmul.f32 %v1011, %v1011
    %v1014 = vsel %vm233, %v1012, 0.0
    %1015 = vadd.xlane.f32.xlu0 %v1014
    %v1016 = vpop.xlane.xlu0 %1015
    %v1017 = vsel %vm233, %v1013, 0.0
    %1018 = vadd.xlane.f32.xlu0 %v1017
    %v1019 = vpop.xlane.xlu0 %1018
    %v1020 = vmul.f32 %v1016, %v243
    %v1021 = vmul.f32 %v1019, %v243
    %v1022 = vadd.f32 %v1020, 1e-12
    %v1023 = vadd.f32 %v1021, 1e-12
    %v1024 = vrsqrt.pop %v1022
    %v1025 = vmul.f32 %v1024, %v1022
    %v1026 = vmul.f32 %v1025, %v1024
    %v1027 = vmul.f32 0.5, %v1026
    %v1028 = vsub.f32 1.5, %v1027
    %v1029 = vmul.f32 %v1024, %v1028
    %vm1030 = vweird.f32 %v1022
    %vm1031 = vweird.f32 %v1024
    %vm1032 = vmor %vm1030, %vm1031
    %v1033 = vsel %vm1032, %v1024, %v1029
    %v1034 = vrsqrt.pop %v1023
    %v1035 = vmul.f32 %v1034, %v1023
    %v1036 = vmul.f32 %v1035, %v1034
    %v1037 = vmul.f32 0.5, %v1036
    %v1038 = vsub.f32 1.5, %v1037
    %v1039 = vmul.f32 %v1034, %v1038
    %vm1040 = vweird.f32 %v1023
    %vm1041 = vweird.f32 %v1034
    %vm1042 = vmor %vm1040, %vm1041
    %v1043 = vsel %vm1042, %v1034, %v1039
    %v1044 = vmul.f32 %v1010, %v1033
    %v1045 = vmul.f32 %v1011, %v1043
    %v1046 = vperm.slane %v1000, 0
    %v1047 = vmul.f32 %v1044, %v1046
    %v1048 = vmul.f32 %v1045, %v1046
    %v1049 = vperm.slane %v1001, 0
    %v1050 = vadd.f32 %v1047, %v1049
    %v1051 = vadd.f32 %v1048, %v1049
    %v1052 = vld [vmem:[#allocation13] sm:$0xf]
    %v1053 = vld [vmem:[#allocation13 + $0x4] sm:$0xf]
    %v1054 = vld [vmem:[#allocation13 + $0x8] sm:$0xf]
    %v1055 = vld [vmem:[#allocation13 + $0xc] sm:$0xf]
    %v1056 = vld [vmem:[#allocation13 + $0x10] sm:$0xf]
    %v1057 = vld [vmem:[#allocation13 + $0x14] sm:$0xf]
    %v1058 = vld [vmem:[#allocation13 + $0x18] sm:$0xf]
    %v1059 = vld [vmem:[#allocation13 + $0x1c] sm:$0xf]
    %v1060 = vld [vmem:[#allocation7 + $0x8] sm:$0x1]
    %v1061 = vpack.c.bf16 %v1051, %v1050
    %v1062 = vperm.slane %v1060, 0
    %v1071 = vunpack.c.l.b16 %v1052
    %v1072 = vunpack.c.l.b16 %v1053
    %v1073 = vunpack.c.l.b16 %v1054
    %v1074 = vunpack.c.l.b16 %v1055
    %v1075 = vunpack.c.l.b16 %v1056
    %v1076 = vunpack.c.l.b16 %v1057
    %v1077 = vunpack.c.l.b16 %v1058
    %v1078 = vunpack.c.l.b16 %v1059
    %v1079 = vpack.c.b16 %v1072, %v1071
    %v1080 = vpack.c.b16 %v1074, %v1073
    %v1081 = vpack.c.b16 %v1076, %v1075
    %v1082 = vpack.c.b16 %v1078, %v1077
    %v1088 = vsel %vm233, %v1061, 0
    %1090 = vmatpush.bf16.msra.mxu0 0
    %1091 = vmatpush.bf16.msra.mxu0 0
    %1092 = vmatpush.bf16.msra.mxu0 0
    %1093 = vmatpush.bf16.msra.mxu0 0
    %1094 = vmatpush.bf16.msra.mxu0 %v1082
    %1095 = vmatpush.bf16.msra.mxu0 %v1081
    %1096 = vmatpush.bf16.msra.mxu0 %v1080
    %1097 = vmatpush.bf16.msra.mxu0 %v1079
    %1098 = vmatmul.bf16.gmra.mxu0 %v1088
    %v1099 = vpop.f32.mrf.mxu0
    %v1100 = vadd.f32 %v1062, %v1099
    %v1101 = vpop.f32.mrf.mxu0
    %v1102 = vadd.f32 %v1062, %v1101
    %1103 = vdwg.mxu0
    %v1104 = vld [vmem:[#allocation14] sm:$0xf]
    %v1105 = vld [vmem:[#allocation14 + $0x4] sm:$0xf]
    %v1106 = vld [vmem:[#allocation14 + $0x8] sm:$0xf]
    %v1107 = vld [vmem:[#allocation14 + $0xc] sm:$0xf]
    %v1108 = vld [vmem:[#allocation8] sm:$0x1]
    %v1109 = vperm.slane %v1108, 0
    %v1114 = vunpack.c.l.b16 %v1104
    %v1115 = vunpack.c.l.b16 %v1105
    %v1116 = vunpack.c.l.b16 %v1106
    %v1117 = vunpack.c.l.b16 %v1107
    %v1118 = vpack.c.b16 %v1115, %v1114
    %v1119 = vpack.c.b16 %v1117, %v1116
    %vm1122 = vcmask 261120
    %v1124 = vsel %vm1122, %v228, 0
    %v1127 = vsel %vm1122, %v229, 0
    %1129 = vmatpush.bf16.msra.mxu0 0
    %1130 = vmatpush.bf16.msra.mxu0 0
    %1131 = vmatpush.bf16.msra.mxu0 0
    %1132 = vmatpush.bf16.msra.mxu0 0
    %1133 = vmatpush.bf16.msra.mxu0 0
    %1134 = vmatpush.bf16.msra.mxu0 0
    %1135 = vmatpush.bf16.msra.mxu0 %v1119
    %1136 = vmatpush.bf16.msra.mxu0 %v1118
    %1137 = vmatmul.bf16.gmra.mxu0 %v1124
    %v1138 = vpop.f32.mrf.mxu0
    %v1139 = vadd.f32 %v1109, %v1138
    %v1140 = vpop.f32.mrf.mxu0
    %v1141 = vadd.f32 %v1109, %v1140
    %1142 = vmatmul.bf16.gmra.mxu0 %v1127
    %v1143 = vpop.f32.mrf.mxu0
    %v1144 = vadd.f32 %v1109, %v1143
    %v1145 = vpop.f32.mrf.mxu0
    %v1146 = vadd.f32 %v1109, %v1145
    %1147 = vdwg.mxu0
    %v1148 = vmul.f32 %v1100, 0.25
    %v1149 = vmul.f32 %v1148, %v208
    %v1151 = vsel %vm233, %v1149, 0
    %v1154 = vsel %vm233, %v1139, 0
    %v1157 = vsel %vm233, %v1141, 0
    %1159 = vmatpush.xpose.msra.mxu0 0.0
    %1160 = vmatpush.xpose.msra.mxu0 0.0
    %1161 = vmatpush.xpose.msra.mxu0 0.0
    %1162 = vmatpush.xpose.msra.mxu0 0.0
    %1163 = vmatpush.xpose.msra.mxu0 0.0
    %1164 = vmatpush.xpose.msra.mxu0 0.0
    %1165 = vmatpush.xpose.msra.mxu0 0.0
    %1166 = vmatpush.xpose.msra.mxu0 0.0
    %1167 = vmatpush.xpose.msra.mxu0 0.0
    %1168 = vmatpush.xpose.msra.mxu0 0.0
    %1169 = vmatpush.xpose.msra.mxu0 0.0
    %1170 = vmatpush.xpose.msra.mxu0 0.0
    %1171 = vmatpush.xpose.msra.mxu0 0.0
    %1172 = vmatpush.xpose.msra.mxu0 0.0
    %1173 = vmatpush.xpose.msra.mxu0 %v1157
    %1174 = vmatpush.xpose.msra.mxu0 %v1154
    %1175 = vmatmul.f32.gmra.mxu0 %v1151
    %v1176 = vpop.f32.mrf.mxu0
    %v1177 = vadd.f32 0.0, %v1176
    %1178 = vdwg.mxu0
    %vm1179 = vcmask 130048
    %v1180 = vsel %vm1179, %v1177, -inf
    %1181 = vmax.xlane.f32.xlu0 %v1180
    %v1182 = vpop.xlane.xlu0 %1181
    %v1183 = vsub.f32 %v1177, %v1182
    %v1184 = vmul.f32 %v1183, 1.442695
    %v1185 = vpow.pop %v1184
    %v1186 = vsel %vm1179, %v1185, 0.0
    %1187 = vadd.xlane.f32.xlu0 %v1186
    %v1188 = vpop.xlane.xlu0 %1187
    %v1189 = vrcp.pop %v1188
    %v1190 = vmul.f32 %v1188, %v1189
    %v1191 = vsub.f32 1.0, %v1190
    %v1192 = vmul.f32 %v1189, %v1191
    %v1193 = vadd.f32 %v1189, %v1192
    %vm1194 = vweird.f32 %v1188
    %vm1195 = vweird.f32 %v1189
    %vm1196 = vmor %vm1194, %vm1195
    %v1197 = vsel %vm1196, %v1189, %v1193
    %v1198 = vand.u32 2147483647, %v1188
    %vm1199 = vcmp.eq.f32.partialorder %v1198, 8.507059e+37
    %v1200 = vand.u32 %v1188, 2147483648
    %v1201 = vor.u32 1.1754944e-38, %v1200
    %v1202 = vsel %vm1199, %v1201, %v1197
    %v1203 = vmul.f32 %v1185, %v1202
    %1205 = vrot.lane.b32.xlu0 %v208, 64
    %v1206 = vpop.permute.xlu0 %1205
    %v1208 = vmul.f32 %v1139, %v1206
    %v1209 = vmul.f32 %v1141, %v1206
    %v1210 = vmul.f32 %v1148, %v213
    %v1212 = vsel %vm233, %v1210, 0
    %1214 = vmatpush.xpose.msra.mxu0 0.0
    %1215 = vmatpush.xpose.msra.mxu0 0.0
    %1216 = vmatpush.xpose.msra.mxu0 0.0
    %1217 = vmatpush.xpose.msra.mxu0 0.0
    %1218 = vmatpush.xpose.msra.mxu0 0.0
    %1219 = vmatpush.xpose.msra.mxu0 0.0
    %1220 = vmatpush.xpose.msra.mxu0 0.0
    %1221 = vmatpush.xpose.msra.mxu0 0.0
    %1222 = vmatpush.xpose.msra.mxu0 0.0
    %1223 = vmatpush.xpose.msra.mxu0 0.0
    %1224 = vmatpush.xpose.msra.mxu0 0.0
    %1225 = vmatpush.xpose.msra.mxu0 0.0
    %1226 = vmatpush.xpose.msra.mxu0 0.0
    %1227 = vmatpush.xpose.msra.mxu0 0.0
    %1228 = vmatpush.xpose.msra.mxu0 %v1157
    %1229 = vmatpush.xpose.msra.mxu0 %v1154
    %1230 = vmatmul.f32.gmra.mxu0 %v1212
    %v1231 = vpop.f32.mrf.mxu0
    %v1232 = vadd.f32 0.0, %v1231
    %1233 = vdwg.mxu0
    %v1234 = vsel %vm1179, %v1232, -inf
    %1235 = vmax.xlane.f32.xlu0 %v1234
    %v1236 = vpop.xlane.xlu0 %1235
    %v1237 = vsub.f32 %v1232, %v1236
    %v1238 = vmul.f32 %v1237, 1.442695
    %v1239 = vpow.pop %v1238
    %v1240 = vsel %vm1179, %v1239, 0.0
    %1241 = vadd.xlane.f32.xlu0 %v1240
    %v1242 = vpop.xlane.xlu0 %1241
    %v1243 = vrcp.pop %v1242
    %v1244 = vmul.f32 %v1242, %v1243
    %v1245 = vsub.f32 1.0, %v1244
    %v1246 = vmul.f32 %v1243, %v1245
    %v1247 = vadd.f32 %v1243, %v1246
    %vm1248 = vweird.f32 %v1242
    %vm1249 = vweird.f32 %v1243
    %vm1250 = vmor %vm1248, %vm1249
    %v1251 = vsel %vm1250, %v1243, %v1247
    %v1252 = vand.u32 2147483647, %v1242
    %vm1253 = vcmp.eq.f32.partialorder %v1252, 8.507059e+37
    %v1254 = vand.u32 %v1242, 2147483648
    %v1255 = vor.u32 1.1754944e-38, %v1254
    %v1256 = vsel %vm1253, %v1255, %v1251
    %v1257 = vmul.f32 %v1239, %v1256
    %1259 = vrot.lane.b32.xlu0 %v213, 64
    %v1260 = vpop.permute.xlu0 %1259
    %v1262 = vmul.f32 %v1139, %v1260
    %v1263 = vmul.f32 %v1141, %v1260
    %1266 = vrot.lane.b32.xlu0 %v1262, 64
    %v1267 = vpop.permute.xlu0 %1266
    %1268 = vrot.lane.b32.xlu0 %v1263, 64
    %v1269 = vpop.permute.xlu0 %1268
    %v1273 = vsel %vm1179, %v1257, 0
    %1275 = vmatpush.msra.mxu0 0.0
    %1276 = vmatpush.msra.mxu0 0.0
    %1277 = vmatpush.msra.mxu0 0.0
    %1278 = vmatpush.msra.mxu0 0.0
    %1279 = vmatpush.msra.mxu0 0.0
    %1280 = vmatpush.msra.mxu0 0.0
    %1281 = vmatpush.msra.mxu0 0.0
    %1282 = vmatpush.msra.mxu0 0.0
    %1283 = vmatpush.msra.mxu0 0.0
    %1284 = vmatpush.msra.mxu0 0.0
    %1285 = vmatpush.msra.mxu0 0.0
    %1286 = vmatpush.msra.mxu0 0.0
    %1287 = vmatpush.msra.mxu0 0.0
    %1288 = vmatpush.msra.mxu0 0.0
    %1289 = vmatpush.msra.mxu0 %v1269
    %1290 = vmatpush.msra.mxu0 %v1267
    %1291 = vmatmul.f32.gmra.mxu0 %v1273
    %v1292 = vpop.f32.mrf.mxu0
    %v1293 = vadd.f32 0.0, %v1292
    %1294 = vdwg.mxu0
    %1297 = vrot.lane.b32.xlu0 %v1208, 64
    %v1298 = vpop.permute.xlu0 %1297
    %1299 = vrot.lane.b32.xlu0 %v1209, 64
    %v1300 = vpop.permute.xlu0 %1299
    %v1304 = vsel %vm1179, %v1203, 0
    %1306 = vmatpush.msra.mxu0 0.0
    %1307 = vmatpush.msra.mxu0 0.0
    %1308 = vmatpush.msra.mxu0 0.0
    %1309 = vmatpush.msra.mxu0 0.0
    %1310 = vmatpush.msra.mxu0 0.0
    %1311 = vmatpush.msra.mxu0 0.0
    %1312 = vmatpush.msra.mxu0 0.0
    %1313 = vmatpush.msra.mxu0 0.0
    %1314 = vmatpush.msra.mxu0 0.0
    %1315 = vmatpush.msra.mxu0 0.0
    %1316 = vmatpush.msra.mxu0 0.0
    %1317 = vmatpush.msra.mxu0 0.0
    %1318 = vmatpush.msra.mxu0 0.0
    %1319 = vmatpush.msra.mxu0 0.0
    %1320 = vmatpush.msra.mxu0 %v1300
    %1321 = vmatpush.msra.mxu0 %v1298
    %1322 = vmatmul.f32.gmra.mxu0 %v1304
    %v1323 = vpop.f32.mrf.mxu0
    %v1324 = vadd.f32 %v1293, %v1323
    %1325 = vdwg.mxu0
    %v1326 = vmul.f32 %v1148, %v218
    %v1328 = vsel %vm233, %v1326, 0
    %1330 = vmatpush.xpose.msra.mxu0 0.0
    %1331 = vmatpush.xpose.msra.mxu0 0.0
    %1332 = vmatpush.xpose.msra.mxu0 0.0
    %1333 = vmatpush.xpose.msra.mxu0 0.0
    %1334 = vmatpush.xpose.msra.mxu0 0.0
    %1335 = vmatpush.xpose.msra.mxu0 0.0
    %1336 = vmatpush.xpose.msra.mxu0 0.0
    %1337 = vmatpush.xpose.msra.mxu0 0.0
    %1338 = vmatpush.xpose.msra.mxu0 0.0
    %1339 = vmatpush.xpose.msra.mxu0 0.0
    %1340 = vmatpush.xpose.msra.mxu0 0.0
    %1341 = vmatpush.xpose.msra.mxu0 0.0
    %1342 = vmatpush.xpose.msra.mxu0 0.0
    %1343 = vmatpush.xpose.msra.mxu0 0.0
    %1344 = vmatpush.xpose.msra.mxu0 %v1157
    %1345 = vmatpush.xpose.msra.mxu0 %v1154
    %1346 = vmatmul.f32.gmra.mxu0 %v1328
    %v1347 = vpop.f32.mrf.mxu0
    %v1348 = vadd.f32 0.0, %v1347
    %1349 = vdwg.mxu0
    %v1350 = vsel %vm1179, %v1348, -inf
    %1351 = vmax.xlane.f32.xlu0 %v1350
    %v1352 = vpop.xlane.xlu0 %1351
    %v1353 = vsub.f32 %v1348, %v1352
    %v1354 = vmul.f32 %v1353, 1.442695
    %v1355 = vpow.pop %v1354
    %v1356 = vsel %vm1179, %v1355, 0.0
    %1357 = vadd.xlane.f32.xlu0 %v1356
    %v1358 = vpop.xlane.xlu0 %1357
    %v1359 = vrcp.pop %v1358
    %v1360 = vmul.f32 %v1358, %v1359
    %v1361 = vsub.f32 1.0, %v1360
    %v1362 = vmul.f32 %v1359, %v1361
    %v1363 = vadd.f32 %v1359, %v1362
    %vm1364 = vweird.f32 %v1358
    %vm1365 = vweird.f32 %v1359
    %vm1366 = vmor %vm1364, %vm1365
    %v1367 = vsel %vm1366, %v1359, %v1363
    %v1368 = vand.u32 2147483647, %v1358
    %vm1369 = vcmp.eq.f32.partialorder %v1368, 8.507059e+37
    %v1370 = vand.u32 %v1358, 2147483648
    %v1371 = vor.u32 1.1754944e-38, %v1370
    %v1372 = vsel %vm1369, %v1371, %v1367
    %v1373 = vmul.f32 %v1355, %v1372
    %1375 = vrot.lane.b32.xlu0 %v218, 64
    %v1376 = vpop.permute.xlu0 %1375
    %v1378 = vmul.f32 %v1139, %v1376
    %v1379 = vmul.f32 %v1141, %v1376
    %1382 = vrot.lane.b32.xlu0 %v1378, 64
    %v1383 = vpop.permute.xlu0 %1382
    %1384 = vrot.lane.b32.xlu0 %v1379, 64
    %v1385 = vpop.permute.xlu0 %1384
    %v1389 = vsel %vm1179, %v1373, 0
    %1391 = vmatpush.msra.mxu0 0.0
    %1392 = vmatpush.msra.mxu0 0.0
    %1393 = vmatpush.msra.mxu0 0.0
    %1394 = vmatpush.msra.mxu0 0.0
    %1395 = vmatpush.msra.mxu0 0.0
    %1396 = vmatpush.msra.mxu0 0.0
    %1397 = vmatpush.msra.mxu0 0.0
    %1398 = vmatpush.msra.mxu0 0.0
    %1399 = vmatpush.msra.mxu0 0.0
    %1400 = vmatpush.msra.mxu0 0.0
    %1401 = vmatpush.msra.mxu0 0.0
    %1402 = vmatpush.msra.mxu0 0.0
    %1403 = vmatpush.msra.mxu0 0.0
    %1404 = vmatpush.msra.mxu0 0.0
    %1405 = vmatpush.msra.mxu0 %v1385
    %1406 = vmatpush.msra.mxu0 %v1383
    %1407 = vmatmul.f32.gmra.mxu0 %v1389
    %v1408 = vpop.f32.mrf.mxu0
    %v1409 = vadd.f32 0.0, %v1408
    %1410 = vdwg.mxu0
    %v1411 = vadd.f32 %v1324, %v1409
    %v1412 = vmul.f32 %v1148, %v223
    %v1414 = vsel %vm233, %v1412, 0
    %1416 = vmatpush.xpose.msra.mxu0 0.0
    %1417 = vmatpush.xpose.msra.mxu0 0.0
    %1418 = vmatpush.xpose.msra.mxu0 0.0
    %1419 = vmatpush.xpose.msra.mxu0 0.0
    %1420 = vmatpush.xpose.msra.mxu0 0.0
    %1421 = vmatpush.xpose.msra.mxu0 0.0
    %1422 = vmatpush.xpose.msra.mxu0 0.0
    %1423 = vmatpush.xpose.msra.mxu0 0.0
    %1424 = vmatpush.xpose.msra.mxu0 0.0
    %1425 = vmatpush.xpose.msra.mxu0 0.0
    %1426 = vmatpush.xpose.msra.mxu0 0.0
    %1427 = vmatpush.xpose.msra.mxu0 0.0
    %1428 = vmatpush.xpose.msra.mxu0 0.0
    %1429 = vmatpush.xpose.msra.mxu0 0.0
    %1430 = vmatpush.xpose.msra.mxu0 %v1157
    %1431 = vmatpush.xpose.msra.mxu0 %v1154
    %1432 = vmatmul.f32.gmra.mxu0 %v1414
    %v1433 = vpop.f32.mrf.mxu0
    %v1434 = vadd.f32 0.0, %v1433
    %1435 = vdwg.mxu0
    %v1436 = vsel %vm1179, %v1434, -inf
    %1437 = vmax.xlane.f32.xlu0 %v1436
    %v1438 = vpop.xlane.xlu0 %1437
    %v1439 = vsub.f32 %v1434, %v1438
    %v1440 = vmul.f32 %v1439, 1.442695
    %v1441 = vpow.pop %v1440
    %v1442 = vsel %vm1179, %v1441, 0.0
    %1443 = vadd.xlane.f32.xlu0 %v1442
    %v1444 = vpop.xlane.xlu0 %1443
    %v1445 = vrcp.pop %v1444
    %v1446 = vmul.f32 %v1444, %v1445
    %v1447 = vsub.f32 1.0, %v1446
    %v1448 = vmul.f32 %v1445, %v1447
    %v1449 = vadd.f32 %v1445, %v1448
    %vm1450 = vweird.f32 %v1444
    %vm1451 = vweird.f32 %v1445
    %vm1452 = vmor %vm1450, %vm1451
    %v1453 = vsel %vm1452, %v1445, %v1449
    %v1454 = vand.u32 2147483647, %v1444
    %vm1455 = vcmp.eq.f32.partialorder %v1454, 8.507059e+37
    %v1456 = vand.u32 %v1444, 2147483648
    %v1457 = vor.u32 1.1754944e-38, %v1456
    %v1458 = vsel %vm1455, %v1457, %v1453
    %v1459 = vmul.f32 %v1441, %v1458
    %1461 = vrot.lane.b32.xlu0 %v223, 64
    %v1462 = vpop.permute.xlu0 %1461
    %v1464 = vmul.f32 %v1139, %v1462
    %v1465 = vmul.f32 %v1141, %v1462
    %1468 = vrot.lane.b32.xlu0 %v1464, 64
    %v1469 = vpop.permute.xlu0 %1468
    %1470 = vrot.lane.b32.xlu0 %v1465, 64
    %v1471 = vpop.permute.xlu0 %1470
    %v1475 = vsel %vm1179, %v1459, 0
    %1477 = vmatpush.msra.mxu0 0.0
    %1478 = vmatpush.msra.mxu0 0.0
    %1479 = vmatpush.msra.mxu0 0.0
    %1480 = vmatpush.msra.mxu0 0.0
    %1481 = vmatpush.msra.mxu0 0.0
    %1482 = vmatpush.msra.mxu0 0.0
    %1483 = vmatpush.msra.mxu0 0.0
    %1484 = vmatpush.msra.mxu0 0.0
    %1485 = vmatpush.msra.mxu0 0.0
    %1486 = vmatpush.msra.mxu0 0.0
    %1487 = vmatpush.msra.mxu0 0.0
    %1488 = vmatpush.msra.mxu0 0.0
    %1489 = vmatpush.msra.mxu0 0.0
    %1490 = vmatpush.msra.mxu0 0.0
    %1491 = vmatpush.msra.mxu0 %v1471
    %1492 = vmatpush.msra.mxu0 %v1469
    %1493 = vmatmul.f32.gmra.mxu0 %v1475
    %v1494 = vpop.f32.mrf.mxu0
    %v1495 = vadd.f32 0.0, %v1494
    %1496 = vdwg.mxu0
    %v1497 = vadd.f32 %v1411, %v1495
    %v1498 = vmul.f32 %v1102, 0.25
    %v1499 = vmul.f32 %v1498, %v208
    %v1501 = vsel %vm233, %v1499, 0
    %v1504 = vsel %vm233, %v1144, 0
    %v1507 = vsel %vm233, %v1146, 0
    %1509 = vmatpush.xpose.msra.mxu0 0.0
    %1510 = vmatpush.xpose.msra.mxu0 0.0
    %1511 = vmatpush.xpose.msra.mxu0 0.0
    %1512 = vmatpush.xpose.msra.mxu0 0.0
    %1513 = vmatpush.xpose.msra.mxu0 0.0
    %1514 = vmatpush.xpose.msra.mxu0 0.0
    %1515 = vmatpush.xpose.msra.mxu0 0.0
    %1516 = vmatpush.xpose.msra.mxu0 0.0
    %1517 = vmatpush.xpose.msra.mxu0 0.0
    %1518 = vmatpush.xpose.msra.mxu0 0.0
    %1519 = vmatpush.xpose.msra.mxu0 0.0
    %1520 = vmatpush.xpose.msra.mxu0 0.0
    %1521 = vmatpush.xpose.msra.mxu0 0.0
    %1522 = vmatpush.xpose.msra.mxu0 0.0
    %1523 = vmatpush.xpose.msra.mxu0 %v1507
    %1524 = vmatpush.xpose.msra.mxu0 %v1504
    %1525 = vmatmul.f32.gmra.mxu0 %v1501
    %v1526 = vpop.f32.mrf.mxu0
    %v1527 = vadd.f32 0.0, %v1526
    %1528 = vdwg.mxu0
    %v1529 = vsel %vm1179, %v1527, -inf
    %1530 = vmax.xlane.f32.xlu0 %v1529
    %v1531 = vpop.xlane.xlu0 %1530
    %v1532 = vsub.f32 %v1527, %v1531
    %v1533 = vmul.f32 %v1532, 1.442695
    %v1534 = vpow.pop %v1533
    %v1535 = vsel %vm1179, %v1534, 0.0
    %1536 = vadd.xlane.f32.xlu0 %v1535
    %v1537 = vpop.xlane.xlu0 %1536
    %v1538 = vrcp.pop %v1537
    %v1539 = vmul.f32 %v1537, %v1538
    %v1540 = vsub.f32 1.0, %v1539
    %v1541 = vmul.f32 %v1538, %v1540
    %v1542 = vadd.f32 %v1538, %v1541
    %vm1543 = vweird.f32 %v1537
    %vm1544 = vweird.f32 %v1538
    %vm1545 = vmor %vm1543, %vm1544
    %v1546 = vsel %vm1545, %v1538, %v1542
    %v1547 = vand.u32 2147483647, %v1537
    %vm1548 = vcmp.eq.f32.partialorder %v1547, 8.507059e+37
    %v1549 = vand.u32 %v1537, 2147483648
    %v1550 = vor.u32 1.1754944e-38, %v1549
    %v1551 = vsel %vm1548, %v1550, %v1546
    %v1552 = vmul.f32 %v1534, %v1551
    %v1553 = vmul.f32 %v1144, %v1206
    %v1554 = vmul.f32 %v1146, %v1206
    %v1555 = vmul.f32 %v1498, %v213
    %v1557 = vsel %vm233, %v1555, 0
    %1559 = vmatpush.xpose.msra.mxu0 0.0
    %1560 = vmatpush.xpose.msra.mxu0 0.0
    %1561 = vmatpush.xpose.msra.mxu0 0.0
    %1562 = vmatpush.xpose.msra.mxu0 0.0
    %1563 = vmatpush.xpose.msra.mxu0 0.0
    %1564 = vmatpush.xpose.msra.mxu0 0.0
    %1565 = vmatpush.xpose.msra.mxu0 0.0
    %1566 = vmatpush.xpose.msra.mxu0 0.0
    %1567 = vmatpush.xpose.msra.mxu0 0.0
    %1568 = vmatpush.xpose.msra.mxu0 0.0
    %1569 = vmatpush.xpose.msra.mxu0 0.0
    %1570 = vmatpush.xpose.msra.mxu0 0.0
    %1571 = vmatpush.xpose.msra.mxu0 0.0
    %1572 = vmatpush.xpose.msra.mxu0 0.0
    %1573 = vmatpush.xpose.msra.mxu0 %v1507
    %1574 = vmatpush.xpose.msra.mxu0 %v1504
    %1575 = vmatmul.f32.gmra.mxu0 %v1557
    %v1576 = vpop.f32.mrf.mxu0
    %v1577 = vadd.f32 0.0, %v1576
    %1578 = vdwg.mxu0
    %v1579 = vsel %vm1179, %v1577, -inf
    %1580 = vmax.xlane.f32.xlu0 %v1579
    %v1581 = vpop.xlane.xlu0 %1580
    %v1582 = vsub.f32 %v1577, %v1581
    %v1583 = vmul.f32 %v1582, 1.442695
    %v1584 = vpow.pop %v1583
    %v1585 = vsel %vm1179, %v1584, 0.0
    %1586 = vadd.xlane.f32.xlu0 %v1585
    %v1587 = vpop.xlane.xlu0 %1586
    %v1588 = vrcp.pop %v1587
    %v1589 = vmul.f32 %v1587, %v1588
    %v1590 = vsub.f32 1.0, %v1589
    %v1591 = vmul.f32 %v1588, %v1590
    %v1592 = vadd.f32 %v1588, %v1591
    %vm1593 = vweird.f32 %v1587
    %vm1594 = vweird.f32 %v1588
    %vm1595 = vmor %vm1593, %vm1594
    %v1596 = vsel %vm1595, %v1588, %v1592
    %v1597 = vand.u32 2147483647, %v1587
    %vm1598 = vcmp.eq.f32.partialorder %v1597, 8.507059e+37
    %v1599 = vand.u32 %v1587, 2147483648
    %v1600 = vor.u32 1.1754944e-38, %v1599
    %v1601 = vsel %vm1598, %v1600, %v1596
    %v1602 = vmul.f32 %v1584, %v1601
    %v1603 = vmul.f32 %v1144, %v1260
    %v1604 = vmul.f32 %v1146, %v1260
    %1607 = vrot.lane.b32.xlu0 %v1603, 64
    %v1608 = vpop.permute.xlu0 %1607
    %1609 = vrot.lane.b32.xlu0 %v1604, 64
    %v1610 = vpop.permute.xlu0 %1609
    %v1614 = vsel %vm1179, %v1602, 0
    %1616 = vmatpush.msra.mxu0 0.0
    %1617 = vmatpush.msra.mxu0 0.0
    %1618 = vmatpush.msra.mxu0 0.0
    %1619 = vmatpush.msra.mxu0 0.0
    %1620 = vmatpush.msra.mxu0 0.0
    %1621 = vmatpush.msra.mxu0 0.0
    %1622 = vmatpush.msra.mxu0 0.0
    %1623 = vmatpush.msra.mxu0 0.0
    %1624 = vmatpush.msra.mxu0 0.0
    %1625 = vmatpush.msra.mxu0 0.0
    %1626 = vmatpush.msra.mxu0 0.0
    %1627 = vmatpush.msra.mxu0 0.0
    %1628 = vmatpush.msra.mxu0 0.0
    %1629 = vmatpush.msra.mxu0 0.0
    %1630 = vmatpush.msra.mxu0 %v1610
    %1631 = vmatpush.msra.mxu0 %v1608
    %1632 = vmatmul.f32.gmra.mxu0 %v1614
    %v1633 = vpop.f32.mrf.mxu0
    %v1634 = vadd.f32 0.0, %v1633
    %1635 = vdwg.mxu0
    %1638 = vrot.lane.b32.xlu0 %v1553, 64
    %v1639 = vpop.permute.xlu0 %1638
    %1640 = vrot.lane.b32.xlu0 %v1554, 64
    %v1641 = vpop.permute.xlu0 %1640
    %v1645 = vsel %vm1179, %v1552, 0
    %1647 = vmatpush.msra.mxu0 0.0
    %1648 = vmatpush.msra.mxu0 0.0
    %1649 = vmatpush.msra.mxu0 0.0
    %1650 = vmatpush.msra.mxu0 0.0
    %1651 = vmatpush.msra.mxu0 0.0
    %1652 = vmatpush.msra.mxu0 0.0
    %1653 = vmatpush.msra.mxu0 0.0
    %1654 = vmatpush.msra.mxu0 0.0
    %1655 = vmatpush.msra.mxu0 0.0
    %1656 = vmatpush.msra.mxu0 0.0
    %1657 = vmatpush.msra.mxu0 0.0
    %1658 = vmatpush.msra.mxu0 0.0
    %1659 = vmatpush.msra.mxu0 0.0
    %1660 = vmatpush.msra.mxu0 0.0
    %1661 = vmatpush.msra.mxu0 %v1641
    %1662 = vmatpush.msra.mxu0 %v1639
    %1663 = vmatmul.f32.gmra.mxu0 %v1645
    %v1664 = vpop.f32.mrf.mxu0
    %v1665 = vadd.f32 %v1634, %v1664
    %1666 = vdwg.mxu0
    %v1667 = vmul.f32 %v1498, %v218
    %v1669 = vsel %vm233, %v1667, 0
    %1671 = vmatpush.xpose.msra.mxu0 0.0
    %1672 = vmatpush.xpose.msra.mxu0 0.0
    %1673 = vmatpush.xpose.msra.mxu0 0.0
    %1674 = vmatpush.xpose.msra.mxu0 0.0
    %1675 = vmatpush.xpose.msra.mxu0 0.0
    %1676 = vmatpush.xpose.msra.mxu0 0.0
    %1677 = vmatpush.xpose.msra.mxu0 0.0
    %1678 = vmatpush.xpose.msra.mxu0 0.0
    %1679 = vmatpush.xpose.msra.mxu0 0.0
    %1680 = vmatpush.xpose.msra.mxu0 0.0
    %1681 = vmatpush.xpose.msra.mxu0 0.0
    %1682 = vmatpush.xpose.msra.mxu0 0.0
    %1683 = vmatpush.xpose.msra.mxu0 0.0
    %1684 = vmatpush.xpose.msra.mxu0 0.0
    %1685 = vmatpush.xpose.msra.mxu0 %v1507
    %1686 = vmatpush.xpose.msra.mxu0 %v1504
    %1687 = vmatmul.f32.gmra.mxu0 %v1669
    %v1688 = vpop.f32.mrf.mxu0
    %v1689 = vadd.f32 0.0, %v1688
    %1690 = vdwg.mxu0
    %v1691 = vsel %vm1179, %v1689, -inf
    %1692 = vmax.xlane.f32.xlu0 %v1691
    %v1693 = vpop.xlane.xlu0 %1692
    %v1694 = vsub.f32 %v1689, %v1693
    %v1695 = vmul.f32 %v1694, 1.442695
    %v1696 = vpow.pop %v1695
    %v1697 = vsel %vm1179, %v1696, 0.0
    %1698 = vadd.xlane.f32.xlu0 %v1697
    %v1699 = vpop.xlane.xlu0 %1698
    %v1700 = vrcp.pop %v1699
    %v1701 = vmul.f32 %v1699, %v1700
    %v1702 = vsub.f32 1.0, %v1701
    %v1703 = vmul.f32 %v1700, %v1702
    %v1704 = vadd.f32 %v1700, %v1703
    %vm1705 = vweird.f32 %v1699
    %vm1706 = vweird.f32 %v1700
    %vm1707 = vmor %vm1705, %vm1706
    %v1708 = vsel %vm1707, %v1700, %v1704
    %v1709 = vand.u32 2147483647, %v1699
    %vm1710 = vcmp.eq.f32.partialorder %v1709, 8.507059e+37
    %v1711 = vand.u32 %v1699, 2147483648
    %v1712 = vor.u32 1.1754944e-38, %v1711
    %v1713 = vsel %vm1710, %v1712, %v1708
    %v1714 = vmul.f32 %v1696, %v1713
    %v1715 = vmul.f32 %v1144, %v1376
    %v1716 = vmul.f32 %v1146, %v1376
    %1719 = vrot.lane.b32.xlu0 %v1715, 64
    %v1720 = vpop.permute.xlu0 %1719
    %1721 = vrot.lane.b32.xlu0 %v1716, 64
    %v1722 = vpop.permute.xlu0 %1721
    %v1726 = vsel %vm1179, %v1714, 0
    %1728 = vmatpush.msra.mxu0 0.0
    %1729 = vmatpush.msra.mxu0 0.0
    %1730 = vmatpush.msra.mxu0 0.0
    %1731 = vmatpush.msra.mxu0 0.0
    %1732 = vmatpush.msra.mxu0 0.0
    %1733 = vmatpush.msra.mxu0 0.0
    %1734 = vmatpush.msra.mxu0 0.0
    %1735 = vmatpush.msra.mxu0 0.0
    %1736 = vmatpush.msra.mxu0 0.0
    %1737 = vmatpush.msra.mxu0 0.0
    %1738 = vmatpush.msra.mxu0 0.0
    %1739 = vmatpush.msra.mxu0 0.0
    %1740 = vmatpush.msra.mxu0 0.0
    %1741 = vmatpush.msra.mxu0 0.0
    %1742 = vmatpush.msra.mxu0 %v1722
    %1743 = vmatpush.msra.mxu0 %v1720
    %1744 = vmatmul.f32.gmra.mxu0 %v1726
    %v1745 = vpop.f32.mrf.mxu0
    %v1746 = vadd.f32 0.0, %v1745
    %1747 = vdwg.mxu0
    %v1748 = vadd.f32 %v1665, %v1746
    %v1749 = vmul.f32 %v1498, %v223
    %v1751 = vsel %vm233, %v1749, 0
    %1753 = vmatpush.xpose.msra.mxu0 0.0
    %1754 = vmatpush.xpose.msra.mxu0 0.0
    %1755 = vmatpush.xpose.msra.mxu0 0.0
    %1756 = vmatpush.xpose.msra.mxu0 0.0
    %1757 = vmatpush.xpose.msra.mxu0 0.0
    %1758 = vmatpush.xpose.msra.mxu0 0.0
    %1759 = vmatpush.xpose.msra.mxu0 0.0
    %1760 = vmatpush.xpose.msra.mxu0 0.0
    %1761 = vmatpush.xpose.msra.mxu0 0.0
    %1762 = vmatpush.xpose.msra.mxu0 0.0
    %1763 = vmatpush.xpose.msra.mxu0 0.0
    %1764 = vmatpush.xpose.msra.mxu0 0.0
    %1765 = vmatpush.xpose.msra.mxu0 0.0
    %1766 = vmatpush.xpose.msra.mxu0 0.0
    %1767 = vmatpush.xpose.msra.mxu0 %v1507
    %1768 = vmatpush.xpose.msra.mxu0 %v1504
    %1769 = vmatmul.f32.gmra.mxu0 %v1751
    %v1770 = vpop.f32.mrf.mxu0
    %v1771 = vadd.f32 0.0, %v1770
    %1772 = vdwg.mxu0
    %v1773 = vsel %vm1179, %v1771, -inf
    %1774 = vmax.xlane.f32.xlu0 %v1773
    %v1775 = vpop.xlane.xlu0 %1774
    %v1776 = vsub.f32 %v1771, %v1775
    %v1777 = vmul.f32 %v1776, 1.442695
    %v1778 = vpow.pop %v1777
    %v1779 = vsel %vm1179, %v1778, 0.0
    %1780 = vadd.xlane.f32.xlu0 %v1779
    %v1781 = vpop.xlane.xlu0 %1780
    %v1782 = vrcp.pop %v1781
    %v1783 = vmul.f32 %v1781, %v1782
    %v1784 = vsub.f32 1.0, %v1783
    %v1785 = vmul.f32 %v1782, %v1784
    %v1786 = vadd.f32 %v1782, %v1785
    %vm1787 = vweird.f32 %v1781
    %vm1788 = vweird.f32 %v1782
    %vm1789 = vmor %vm1787, %vm1788
    %v1790 = vsel %vm1789, %v1782, %v1786
    %v1791 = vand.u32 2147483647, %v1781
    %vm1792 = vcmp.eq.f32.partialorder %v1791, 8.507059e+37
    %v1793 = vand.u32 %v1781, 2147483648
    %v1794 = vor.u32 1.1754944e-38, %v1793
    %v1795 = vsel %vm1792, %v1794, %v1790
    %v1796 = vmul.f32 %v1778, %v1795
    %v1797 = vmul.f32 %v1144, %v1462
    %v1798 = vmul.f32 %v1146, %v1462
    %1801 = vrot.lane.b32.xlu0 %v1797, 64
    %v1802 = vpop.permute.xlu0 %1801
    %1803 = vrot.lane.b32.xlu0 %v1798, 64
    %v1804 = vpop.permute.xlu0 %1803
    %v1808 = vsel %vm1179, %v1796, 0
    %1810 = vmatpush.msra.mxu0 0.0
    %1811 = vmatpush.msra.mxu0 0.0
    %1812 = vmatpush.msra.mxu0 0.0
    %1813 = vmatpush.msra.mxu0 0.0
    %1814 = vmatpush.msra.mxu0 0.0
    %1815 = vmatpush.msra.mxu0 0.0
    %1816 = vmatpush.msra.mxu0 0.0
    %1817 = vmatpush.msra.mxu0 0.0
    %1818 = vmatpush.msra.mxu0 0.0
    %1819 = vmatpush.msra.mxu0 0.0
    %1820 = vmatpush.msra.mxu0 0.0
    %1821 = vmatpush.msra.mxu0 0.0
    %1822 = vmatpush.msra.mxu0 0.0
    %1823 = vmatpush.msra.mxu0 0.0
    %1824 = vmatpush.msra.mxu0 %v1804
    %1825 = vmatpush.msra.mxu0 %v1802
    %1826 = vmatmul.f32.gmra.mxu0 %v1808
    %v1827 = vpop.f32.mrf.mxu0
    %v1828 = vadd.f32 0.0, %v1827
    %1829 = vdwg.mxu0
    %v1830 = vadd.f32 %v1748, %v1828
    %v1831 = vld [vmem:[#allocation16] sm:$0xf]
    %v1832 = vld [vmem:[#allocation16 + $0x4] sm:$0xf]
    %v1833 = vld [vmem:[#allocation16 + $0x8] sm:$0xf]
    %v1834 = vld [vmem:[#allocation16 + $0xc] sm:$0xf]
    %v1835 = vld [vmem:[#allocation16 + $0x10] sm:$0xf]
    %v1836 = vld [vmem:[#allocation16 + $0x14] sm:$0xf]
    %v1837 = vld [vmem:[#allocation16 + $0x18] sm:$0xf]
    %v1838 = vld [vmem:[#allocation16 + $0x1c] sm:$0xf]
    %v1839 = vld [vmem:[#allocation7 + $0x9] sm:$0x1]
    %v1840 = vpack.c.bf16 %v1830, %v1497
    %v1841 = vperm.slane %v1839, 0
    %v1850 = vunpack.c.l.b16 %v1831
    %v1851 = vunpack.c.l.b16 %v1832
    %v1852 = vunpack.c.l.b16 %v1833
    %v1853 = vunpack.c.l.b16 %v1834
    %v1854 = vunpack.c.l.b16 %v1835
    %v1855 = vunpack.c.l.b16 %v1836
    %v1856 = vunpack.c.l.b16 %v1837
    %v1857 = vunpack.c.l.b16 %v1838
    %v1858 = vpack.c.b16 %v1851, %v1850
    %v1859 = vpack.c.b16 %v1853, %v1852
    %v1860 = vpack.c.b16 %v1855, %v1854
    %v1861 = vpack.c.b16 %v1857, %v1856
    %v1867 = vsel %vm233, %v1840, 0
    %1869 = vmatpush.bf16.msra.mxu0 0
    %1870 = vmatpush.bf16.msra.mxu0 0
    %1871 = vmatpush.bf16.msra.mxu0 0
    %1872 = vmatpush.bf16.msra.mxu0 0
    %1873 = vmatpush.bf16.msra.mxu0 %v1861
    %1874 = vmatpush.bf16.msra.mxu0 %v1860
    %1875 = vmatpush.bf16.msra.mxu0 %v1859
    %1876 = vmatpush.bf16.msra.mxu0 %v1858
    %1877 = vmatmul.bf16.gmra.mxu0 %v1867
    %v1878 = vpop.f32.mrf.mxu0
    %v1879 = vadd.f32 %v1841, %v1878
    %v1880 = vpop.f32.mrf.mxu0
    %v1881 = vadd.f32 %v1841, %v1880
    %1882 = vdwg.mxu0
    %v1883 = vadd.f32 %v1050, %v1879
    %v1884 = vadd.f32 %v1051, %v1881
    %v1885 = vld [vmem:[#allocation7 + $0xa] sm:$0x1]
    %v1886 = vld [vmem:[#allocation7 + $0xb] sm:$0x1]
    %v1887 = vsel %vm233, %v1883, 0.0
    %1888 = vadd.xlane.f32.xlu0 %v1887
    %v1889 = vpop.xlane.xlu0 %1888
    %v1890 = vsel %vm233, %v1884, 0.0
    %1891 = vadd.xlane.f32.xlu0 %v1890
    %v1892 = vpop.xlane.xlu0 %1891
    %v1893 = vmul.f32 %v1889, %v243
    %v1894 = vmul.f32 %v1892, %v243
    %v1895 = vsub.f32 %v1883, %v1893
    %v1896 = vsub.f32 %v1884, %v1894
    %v1897 = vmul.f32 %v1895, %v1895
    %v1898 = vmul.f32 %v1896, %v1896
    %v1899 = vsel %vm233, %v1897, 0.0
    %1900 = vadd.xlane.f32.xlu0 %v1899
    %v1901 = vpop.xlane.xlu0 %1900
    %v1902 = vsel %vm233, %v1898, 0.0
    %1903 = vadd.xlane.f32.xlu0 %v1902
    %v1904 = vpop.xlane.xlu0 %1903
    %v1905 = vmul.f32 %v1901, %v243
    %v1906 = vmul.f32 %v1904, %v243
    %v1907 = vadd.f32 %v1905, 1e-12
    %v1908 = vadd.f32 %v1906, 1e-12
    %v1909 = vrsqrt.pop %v1907
    %v1910 = vmul.f32 %v1909, %v1907
    %v1911 = vmul.f32 %v1910, %v1909
    %v1912 = vmul.f32 0.5, %v1911
    %v1913 = vsub.f32 1.5, %v1912
    %v1914 = vmul.f32 %v1909, %v1913
    %vm1915 = vweird.f32 %v1907
    %vm1916 = vweird.f32 %v1909
    %vm1917 = vmor %vm1915, %vm1916
    %v1918 = vsel %vm1917, %v1909, %v1914
    %v1919 = vrsqrt.pop %v1908
    %v1920 = vmul.f32 %v1919, %v1908
    %v1921 = vmul.f32 %v1920, %v1919
    %v1922 = vmul.f32 0.5, %v1921
    %v1923 = vsub.f32 1.5, %v1922
    %v1924 = vmul.f32 %v1919, %v1923
    %vm1925 = vweird.f32 %v1908
    %vm1926 = vweird.f32 %v1919
    %vm1927 = vmor %vm1925, %vm1926
    %v1928 = vsel %vm1927, %v1919, %v1924
    %v1929 = vmul.f32 %v1895, %v1918
    %v1930 = vmul.f32 %v1896, %v1928
    %v1931 = vperm.slane %v1885, 0
    %v1932 = vmul.f32 %v1929, %v1931
    %v1933 = vmul.f32 %v1930, %v1931
    %v1934 = vperm.slane %v1886, 0
    %v1935 = vadd.f32 %v1932, %v1934
    %v1936 = vadd.f32 %v1933, %v1934
    %v1937 = vld [vmem:[#allocation11] sm:$0xf]
    %v1938 = vld [vmem:[#allocation11 + $0x4] sm:$0xf]
    %v1939 = vld [vmem:[#allocation11 + $0x8] sm:$0xf]
    %v1940 = vld [vmem:[#allocation11 + $0xc] sm:$0xf]
    %v1941 = vld [vmem:[#allocation11 + $0x10] sm:$0xf]
    %v1942 = vld [vmem:[#allocation11 + $0x14] sm:$0xf]
    %v1943 = vld [vmem:[#allocation11 + $0x18] sm:$0xf]
    %v1944 = vld [vmem:[#allocation11 + $0x1c] sm:$0xf]
    %v1945 = vld [vmem:[%s4] sm:$0x1]
    %v1946 = vpack.c.bf16 %v1936, %v1935
    %v1947 = vperm.slane %v1945, 0
    %v1956 = vunpack.c.l.b16 %v1937
    %v1957 = vunpack.c.l.b16 %v1938
    %v1958 = vunpack.c.l.b16 %v1939
    %v1959 = vunpack.c.l.b16 %v1940
    %v1960 = vunpack.c.l.b16 %v1941
    %v1961 = vunpack.c.l.b16 %v1942
    %v1962 = vunpack.c.l.b16 %v1943
    %v1963 = vunpack.c.l.b16 %v1944
    %v1964 = vpack.c.b16 %v1957, %v1956
    %v1965 = vpack.c.b16 %v1959, %v1958
    %v1966 = vpack.c.b16 %v1961, %v1960
    %v1967 = vpack.c.b16 %v1963, %v1962
    %v1973 = vsel %vm233, %v1946, 0
    %1975 = vmatpush.bf16.msra.mxu0 0
    %1976 = vmatpush.bf16.msra.mxu0 0
    %1977 = vmatpush.bf16.msra.mxu0 0
    %1978 = vmatpush.bf16.msra.mxu0 0
    %1979 = vmatpush.bf16.msra.mxu0 %v1967
    %1980 = vmatpush.bf16.msra.mxu0 %v1966
    %1981 = vmatpush.bf16.msra.mxu0 %v1965
    %1982 = vmatpush.bf16.msra.mxu0 %v1964
    %1983 = vmatmul.bf16.gmra.mxu0 %v1973
    %v1984 = vpop.f32.mrf.mxu0
    %v1985 = vadd.f32 %v1947, %v1984
    %v1986 = vpop.f32.mrf.mxu0
    %v1987 = vadd.f32 %v1947, %v1986
    %1988 = vdwg.mxu0
    %v1989 = vmul.f32 %v1985, 0.5
    %v1990 = vmul.f32 %v1987, 0.5
    %v1991 = vmul.f32 %v1985, 0.70710677
    %v1992 = vmul.f32 %v1987, 0.70710677
    %v1993 = vmul.f32 %v1991, %v1991
    %v1994 = vmin.f32 16.0, %v1993
    %v1995 = vmul.f32 %v1994, 2.1237322e-06
    %v1996 = vadd.f32 %v1995, 0.00028619796
    %v1997 = vmul.f32 %v1994, %v1996
    %v1998 = vadd.f32 %v1997, 0.0036580483
    %v1999 = vmul.f32 %v1994, %v1998
    %v2000 = vadd.f32 %v1999, 0.05243302
    %v2001 = vmul.f32 %v1994, %v2000
    %v2002 = vadd.f32 %v2001, 0.18741608
    %v2003 = vmul.f32 %v1994, %v2002
    %v2004 = vadd.f32 %v2003, 1.1283791
    %v2005 = vmul.f32 %v1991, %v2004
    %v2006 = vmul.f32 %v1994, 3.8918573e-05
    %v2007 = vadd.f32 %v2006, 0.001143296
    %v2008 = vmul.f32 %v1994, %v2007
    %v2009 = vadd.f32 %v2008, 0.014752088
    %v2010 = vmul.f32 %v1994, %v2009
    %v2011 = vadd.f32 %v2010, 0.112945676
    %v2012 = vmul.f32 %v1994, %v2011
    %v2013 = vadd.f32 %v2012, 0.4994258
    %v2014 = vmul.f32 %v1994, %v2013
    %v2015 = vadd.f32 %v2014, 1.0
    %v2016 = vrcp.pop %v2015
    %v2017 = vmul.f32 %v2015, %v2016
    %v2018 = vsub.f32 1.0, %v2017
    %v2019 = vmul.f32 %v2016, %v2018
    %v2020 = vadd.f32 %v2016, %v2019
    %vm2021 = vweird.f32 %v2015
    %vm2022 = vweird.f32 %v2016
    %vm2023 = vmor %vm2021, %vm2022
    %v2024 = vsel %vm2023, %v2016, %v2020
    %v2025 = vand.u32 2147483647, %v2015
    %vm2026 = vcmp.eq.f32.partialorder %v2025, 8.507059e+37
    %v2027 = vand.u32 %v2015, 2147483648
    %v2028 = vor.u32 1.1754944e-38, %v2027
    %v2029 = vsel %vm2026, %v2028, %v2024
    %v2030 = vmul.f32 %v2005, %v2029
    %v2031 = vmin.f32 %v2030, 1.0
    %v2032 = vmax.f32 %v2031, -1.0
    %v2033 = vmul.f32 %v1992, %v1992
    %v2034 = vmin.f32 16.0, %v2033
    %v2035 = vmul.f32 %v2034, 2.1237322e-06
    %v2036 = vadd.f32 %v2035, 0.00028619796
    %v2037 = vmul.f32 %v2034, %v2036
    %v2038 = vadd.f32 %v2037, 0.0036580483
    %v2039 = vmul.f32 %v2034, %v2038
    %v2040 = vadd.f32 %v2039, 0.05243302
    %v2041 = vmul.f32 %v2034, %v2040
    %v2042 = vadd.f32 %v2041, 0.18741608
    %v2043 = vmul.f32 %v2034, %v2042
    %v2044 = vadd.f32 %v2043, 1.1283791
    %v2045 = vmul.f32 %v1992, %v2044
    %v2046 = vmul.f32 %v2034, 3.8918573e-05
    %v2047 = vadd.f32 %v2046, 0.001143296
    %v2048 = vmul.f32 %v2034, %v2047
    %v2049 = vadd.f32 %v2048, 0.014752088
    %v2050 = vmul.f32 %v2034, %v2049
    %v2051 = vadd.f32 %v2050, 0.112945676
    %v2052 = vmul.f32 %v2034, %v2051
    %v2053 = vadd.f32 %v2052, 0.4994258
    %v2054 = vmul.f32 %v2034, %v2053
    %v2055 = vadd.f32 %v2054, 1.0
    %v2056 = vrcp.pop %v2055
    %v2057 = vmul.f32 %v2055, %v2056
    %v2058 = vsub.f32 1.0, %v2057
    %v2059 = vmul.f32 %v2056, %v2058
    %v2060 = vadd.f32 %v2056, %v2059
    %vm2061 = vweird.f32 %v2055
    %vm2062 = vweird.f32 %v2056
    %vm2063 = vmor %vm2061, %vm2062
    %v2064 = vsel %vm2063, %v2056, %v2060
    %v2065 = vand.u32 2147483647, %v2055
    %vm2066 = vcmp.eq.f32.partialorder %v2065, 8.507059e+37
    %v2067 = vand.u32 %v2055, 2147483648
    %v2068 = vor.u32 1.1754944e-38, %v2067
    %v2069 = vsel %vm2066, %v2068, %v2064
    %v2070 = vmul.f32 %v2045, %v2069
    %v2071 = vmin.f32 %v2070, 1.0
    %v2072 = vmax.f32 %v2071, -1.0
    %v2073 = vadd.f32 %v2032, 1.0
    %v2074 = vadd.f32 %v2072, 1.0
    %v2075 = vmul.f32 %v1989, %v2073
    %v2076 = vmul.f32 %v1990, %v2074
    %v2077 = vld [vmem:[%s10] sm:$0xf]
    %v2078 = vld [vmem:[%s10 + $0x4] sm:$0xf]
    %v2079 = vld [vmem:[%s10 + $0x8] sm:$0xf]
    %v2080 = vld [vmem:[%s10 + $0xc] sm:$0xf]
    %v2081 = vld [vmem:[%s10 + $0x10] sm:$0xf]
    %v2082 = vld [vmem:[%s10 + $0x14] sm:$0xf]
    %v2083 = vld [vmem:[%s10 + $0x18] sm:$0xf]
    %v2084 = vld [vmem:[%s10 + $0x1c] sm:$0xf]
    %v2085 = vld [vmem:[%s10 + $0x20] sm:$0xf]
    %v2086 = vld [vmem:[%s10 + $0x24] sm:$0xf]
    %v2087 = vld [vmem:[%s10 + $0x28] sm:$0xf]
    %v2088 = vld [vmem:[%s10 + $0x2c] sm:$0xf]
    %v2089 = vld [vmem:[%s10 + $0x30] sm:$0xf]
    %v2090 = vld [vmem:[%s10 + $0x34] sm:$0xf]
    %v2091 = vld [vmem:[%s10 + $0x38] sm:$0xf]
    %v2092 = vld [vmem:[%s10 + $0x3c] sm:$0xf]
    %v2093 = vld [vmem:[#allocation7 + $0x5] sm:$0x1]
    %v2094 = vpack.c.bf16 %v2076, %v2075
    %v2095 = vperm.slane %v2093, 0
    %v2112 = vunpack.c.l.b16 %v2077
    %v2113 = vunpack.c.l.b16 %v2078
    %v2114 = vunpack.c.l.b16 %v2079
    %v2115 = vunpack.c.l.b16 %v2080
    %v2116 = vunpack.c.l.b16 %v2081
    %v2117 = vunpack.c.l.b16 %v2082
    %v2118 = vunpack.c.l.b16 %v2083
    %v2119 = vunpack.c.l.b16 %v2084
    %v2120 = vunpack.c.l.b16 %v2085
    %v2121 = vunpack.c.l.b16 %v2086
    %v2122 = vunpack.c.l.b16 %v2087
    %v2123 = vunpack.c.l.b16 %v2088
    %v2124 = vunpack.c.l.b16 %v2089
    %v2125 = vunpack.c.l.b16 %v2090
    %v2126 = vunpack.c.l.b16 %v2091
    %v2127 = vunpack.c.l.b16 %v2092
    %v2128 = vpack.c.b16 %v2113, %v2112
    %v2129 = vpack.c.b16 %v2115, %v2114
    %v2130 = vpack.c.b16 %v2117, %v2116
    %v2131 = vpack.c.b16 %v2119, %v2118
    %v2132 = vpack.c.b16 %v2121, %v2120
    %v2133 = vpack.c.b16 %v2123, %v2122
    %v2134 = vpack.c.b16 %v2125, %v2124
    %v2135 = vpack.c.b16 %v2127, %v2126
    %2144 = vmatpush.bf16.msra.mxu0 %v2135
    %2145 = vmatpush.bf16.msra.mxu0 %v2134
    %2146 = vmatpush.bf16.msra.mxu0 %v2133
    %2147 = vmatpush.bf16.msra.mxu0 %v2132
    %2148 = vmatpush.bf16.msra.mxu0 %v2131
    %2149 = vmatpush.bf16.msra.mxu0 %v2130
    %2150 = vmatpush.bf16.msra.mxu0 %v2129
    %2151 = vmatpush.bf16.msra.mxu0 %v2128
    %2152 = vmatmul.bf16.gmra.mxu0 %v2094
    %v2153 = vpop.f32.mrf.mxu0
    %v2154 = vadd.f32 %v2095, %v2153
    %v2155 = vpop.f32.mrf.mxu0
    %v2156 = vadd.f32 %v2095, %v2155
    %2157 = vdwg.mxu0
    %v2158 = vadd.f32 %v1935, %v2154
    %v2159 = vadd.f32 %v1936, %v2156
    %v2160 = vld [vmem:[#allocation7 + $0x6] sm:$0x1]
    %v2161 = vld [vmem:[#allocation7 + $0x7] sm:$0x1]
    %v2162 = vsel %vm233, %v2158, 0.0
    %2163 = vadd.xlane.f32.xlu0 %v2162
    %v2164 = vpop.xlane.xlu0 %2163
    %v2165 = vsel %vm233, %v2159, 0.0
    %2166 = vadd.xlane.f32.xlu0 %v2165
    %v2167 = vpop.xlane.xlu0 %2166
    %v2168 = vmul.f32 %v2164, %v243
    %v2169 = vmul.f32 %v2167, %v243
    %v2170 = vsub.f32 %v2158, %v2168
    %v2171 = vsub.f32 %v2159, %v2169
    %v2172 = vmul.f32 %v2170, %v2170
    %v2173 = vmul.f32 %v2171, %v2171
    %v2174 = vsel %vm233, %v2172, 0.0
    %2175 = vadd.xlane.f32.xlu0 %v2174
    %v2176 = vpop.xlane.xlu0 %2175
    %v2177 = vsel %vm233, %v2173, 0.0
    %2178 = vadd.xlane.f32.xlu0 %v2177
    %v2179 = vpop.xlane.xlu0 %2178
    %v2180 = vmul.f32 %v2176, %v243
    %v2181 = vmul.f32 %v2179, %v243
    %v2182 = vadd.f32 %v2180, 1e-12
    %v2183 = vadd.f32 %v2181, 1e-12
    %v2184 = vrsqrt.pop %v2182
    %v2185 = vmul.f32 %v2184, %v2182
    %v2186 = vmul.f32 %v2185, %v2184
    %v2187 = vmul.f32 0.5, %v2186
    %v2188 = vsub.f32 1.5, %v2187
    %v2189 = vmul.f32 %v2184, %v2188
    %vm2190 = vweird.f32 %v2182
    %vm2191 = vweird.f32 %v2184
    %vm2192 = vmor %vm2190, %vm2191
    %v2193 = vsel %vm2192, %v2184, %v2189
    %v2194 = vrsqrt.pop %v2183
    %v2195 = vmul.f32 %v2194, %v2183
    %v2196 = vmul.f32 %v2195, %v2194
    %v2197 = vmul.f32 0.5, %v2196
    %v2198 = vsub.f32 1.5, %v2197
    %v2199 = vmul.f32 %v2194, %v2198
    %vm2200 = vweird.f32 %v2183
    %vm2201 = vweird.f32 %v2194
    %vm2202 = vmor %vm2200, %vm2201
    %v2203 = vsel %vm2202, %v2194, %v2199
    %v2204 = vmul.f32 %v2170, %v2193
    %v2205 = vmul.f32 %v2171, %v2203
    %v2206 = vperm.slane %v2160, 0
    %v2207 = vmul.f32 %v2204, %v2206
    %v2208 = vmul.f32 %v2205, %v2206
    %v2209 = vperm.slane %v2161, 0
    %v2210 = vadd.f32 %v2207, %v2209
    %v2211 = vadd.f32 %v2208, %v2209
    %s2212 = scalar_lea.vmem %s7, 64
    %v2213 = vld [vmem:[%s2212] sm:$0xff]
    %v2214 = vld [vmem:[%s2212 + $0x8] sm:$0xff]
    %v2215 = vld [vmem:[%s2212 + $0x10] sm:$0xff]
    %v2216 = vld [vmem:[%s2212 + $0x18] sm:$0xff]
    %v2217 = vld [vmem:[%s2212 + $0x20] sm:$0xff]
    %v2218 = vld [vmem:[%s2212 + $0x28] sm:$0xff]
    %v2219 = vld [vmem:[%s2212 + $0x30] sm:$0xff]
    %v2220 = vld [vmem:[%s2212 + $0x38] sm:$0xff]
    %s2221 = scalar_lea.vmem %s3, 1
    %v2222 = vld [vmem:[%s2221] ss:$2 sm:$0x3]
    %v2223 = vpack.c.bf16 %v2211, %v2210
    %v2225 = vperm.slane %v2222, 0
    %v2226 = vperm.slane %v2222, 1
    %v2237 = vunpack.c.l.b16 %v2213
    %v2238 = vunpack.c.h.b16 %v2213
    %v2239 = vunpack.c.l.b16 %v2214
    %v2240 = vunpack.c.h.b16 %v2214
    %v2241 = vunpack.c.l.b16 %v2215
    %v2242 = vunpack.c.h.b16 %v2215
    %v2243 = vunpack.c.l.b16 %v2216
    %v2244 = vunpack.c.h.b16 %v2216
    %v2245 = vunpack.c.l.b16 %v2217
    %v2246 = vunpack.c.h.b16 %v2217
    %v2247 = vunpack.c.l.b16 %v2218
    %v2248 = vunpack.c.h.b16 %v2218
    %v2249 = vunpack.c.l.b16 %v2219
    %v2250 = vunpack.c.h.b16 %v2219
    %v2251 = vunpack.c.l.b16 %v2220
    %v2252 = vunpack.c.h.b16 %v2220
    %v2253 = vpack.c.b16 %v2239, %v2237
    %v2254 = vpack.c.b16 %v2240, %v2238
    %v2255 = vpack.c.b16 %v2243, %v2241
    %v2256 = vpack.c.b16 %v2244, %v2242
    %v2257 = vpack.c.b16 %v2247, %v2245
    %v2258 = vpack.c.b16 %v2248, %v2246
    %v2259 = vpack.c.b16 %v2251, %v2249
    %v2260 = vpack.c.b16 %v2252, %v2250
    %v2270 = vsel %vm233, %v2223, 0
    %2272 = vmatpush.bf16.msra.mxu0 0
    %2273 = vmatpush.bf16.msra.mxu0 0
    %2274 = vmatpush.bf16.msra.mxu0 0
    %2275 = vmatpush.bf16.msra.mxu0 0
    %2276 = vmatpush.bf16.msra.mxu0 %v2259
    %2277 = vmatpush.bf16.msra.mxu0 %v2257
    %2278 = vmatpush.bf16.msra.mxu0 %v2255
    %2279 = vmatpush.bf16.msra.mxu0 %v2253
    %2280 = vmatmul.bf16.gmra.mxu0 %v2270
    %v2281 = vpop.f32.mrf.mxu0
    %v2282 = vadd.f32 %v2225, %v2281
    %v2283 = vpop.f32.mrf.mxu0
    %v2284 = vadd.f32 %v2225, %v2283
    %2285 = vdwg.mxu0
    %2286 = vmatpush.bf16.msra.mxu0 0
    %2287 = vmatpush.bf16.msra.mxu0 0
    %2288 = vmatpush.bf16.msra.mxu0 0
    %2289 = vmatpush.bf16.msra.mxu0 0
    %2290 = vmatpush.bf16.msra.mxu0 %v2260
    %2291 = vmatpush.bf16.msra.mxu0 %v2258
    %2292 = vmatpush.bf16.msra.mxu0 %v2256
    %2293 = vmatpush.bf16.msra.mxu0 %v2254
    %2294 = vmatmul.bf16.gmra.mxu0 %v2270
    %v2295 = vpop.f32.mrf.mxu0
    %v2296 = vadd.f32 %v2226, %v2295
    %v2297 = vpop.f32.mrf.mxu0
    %v2298 = vadd.f32 %v2226, %v2297
    %2299 = vdwg.mxu0
    %v2300 = vmul.f32 %v2282, 0.25
    %v2301 = vmul.f32 %v2300, %v208
    %2303 = vrot.lane.b32.xlu0 %v2282, 64
    %v2304 = vpop.permute.xlu0 %2303
    %v2306 = vsel %vm233, %v2301, 0
    %v2308 = vsel %vm233, %v2304, 0
    %2310 = vmatpush.xpose.msra.mxu0 0.0
    %2311 = vmatpush.xpose.msra.mxu0 0.0
    %2312 = vmatpush.xpose.msra.mxu0 0.0
    %2313 = vmatpush.xpose.msra.mxu0 0.0
    %2314 = vmatpush.xpose.msra.mxu0 0.0
    %2315 = vmatpush.xpose.msra.mxu0 0.0
    %2316 = vmatpush.xpose.msra.mxu0 0.0
    %2317 = vmatpush.xpose.msra.mxu0 0.0
    %2318 = vmatpush.xpose.msra.mxu0 0.0
    %2319 = vmatpush.xpose.msra.mxu0 0.0
    %2320 = vmatpush.xpose.msra.mxu0 0.0
    %2321 = vmatpush.xpose.msra.mxu0 0.0
    %2322 = vmatpush.xpose.msra.mxu0 0.0
    %2323 = vmatpush.xpose.msra.mxu0 0.0
    %2324 = vmatpush.xpose.msra.mxu0 0.0
    %2325 = vmatpush.xpose.msra.mxu0 %v2308
    %2326 = vmatmul.f32.gmra.mxu0 %v2306
    %v2327 = vpop.f32.mrf.mxu0
    %v2328 = vadd.f32 0.0, %v2327
    %2329 = vdwg.mxu0
    %v2330 = vsel %vm383, %v2328, -inf
    %2331 = vmax.xlane.f32.xlu0 %v2330
    %v2332 = vpop.xlane.xlu0 %2331
    %v2333 = vsub.f32 %v2328, %v2332
    %v2334 = vmul.f32 %v2333, 1.442695
    %v2335 = vpow.pop %v2334
    %v2336 = vsel %vm383, %v2335, 0.0
    %2337 = vadd.xlane.f32.xlu0 %v2336
    %v2338 = vpop.xlane.xlu0 %2337
    %v2339 = vrcp.pop %v2338
    %v2340 = vmul.f32 %v2338, %v2339
    %v2341 = vsub.f32 1.0, %v2340
    %v2342 = vmul.f32 %v2339, %v2341
    %v2343 = vadd.f32 %v2339, %v2342
    %vm2344 = vweird.f32 %v2338
    %vm2345 = vweird.f32 %v2339
    %vm2346 = vmor %vm2344, %vm2345
    %v2347 = vsel %vm2346, %v2339, %v2343
    %v2348 = vand.u32 2147483647, %v2338
    %vm2349 = vcmp.eq.f32.partialorder %v2348, 8.507059e+37
    %v2350 = vand.u32 %v2338, 2147483648
    %v2351 = vor.u32 1.1754944e-38, %v2350
    %v2352 = vsel %vm2349, %v2351, %v2347
    %v2353 = vmul.f32 %v2335, %v2352
    %v2354 = vmul.f32 %v2296, %v208
    %v2355 = vmul.f32 %v2300, %v213
    %v2357 = vsel %vm233, %v2355, 0
    %2359 = vmatpush.xpose.msra.mxu0 0.0
    %2360 = vmatpush.xpose.msra.mxu0 0.0
    %2361 = vmatpush.xpose.msra.mxu0 0.0
    %2362 = vmatpush.xpose.msra.mxu0 0.0
    %2363 = vmatpush.xpose.msra.mxu0 0.0
    %2364 = vmatpush.xpose.msra.mxu0 0.0
    %2365 = vmatpush.xpose.msra.mxu0 0.0
    %2366 = vmatpush.xpose.msra.mxu0 0.0
    %2367 = vmatpush.xpose.msra.mxu0 0.0
    %2368 = vmatpush.xpose.msra.mxu0 0.0
    %2369 = vmatpush.xpose.msra.mxu0 0.0
    %2370 = vmatpush.xpose.msra.mxu0 0.0
    %2371 = vmatpush.xpose.msra.mxu0 0.0
    %2372 = vmatpush.xpose.msra.mxu0 0.0
    %2373 = vmatpush.xpose.msra.mxu0 0.0
    %2374 = vmatpush.xpose.msra.mxu0 %v2308
    %2375 = vmatmul.f32.gmra.mxu0 %v2357
    %v2376 = vpop.f32.mrf.mxu0
    %v2377 = vadd.f32 0.0, %v2376
    %2378 = vdwg.mxu0
    %v2379 = vsel %vm383, %v2377, -inf
    %2380 = vmax.xlane.f32.xlu0 %v2379
    %v2381 = vpop.xlane.xlu0 %2380
    %v2382 = vsub.f32 %v2377, %v2381
    %v2383 = vmul.f32 %v2382, 1.442695
    %v2384 = vpow.pop %v2383
    %v2385 = vsel %vm383, %v2384, 0.0
    %2386 = vadd.xlane.f32.xlu0 %v2385
    %v2387 = vpop.xlane.xlu0 %2386
    %v2388 = vrcp.pop %v2387
    %v2389 = vmul.f32 %v2387, %v2388
    %v2390 = vsub.f32 1.0, %v2389
    %v2391 = vmul.f32 %v2388, %v2390
    %v2392 = vadd.f32 %v2388, %v2391
    %vm2393 = vweird.f32 %v2387
    %vm2394 = vweird.f32 %v2388
    %vm2395 = vmor %vm2393, %vm2394
    %v2396 = vsel %vm2395, %v2388, %v2392
    %v2397 = vand.u32 2147483647, %v2387
    %vm2398 = vcmp.eq.f32.partialorder %v2397, 8.507059e+37
    %v2399 = vand.u32 %v2387, 2147483648
    %v2400 = vor.u32 1.1754944e-38, %v2399
    %v2401 = vsel %vm2398, %v2400, %v2396
    %v2402 = vmul.f32 %v2384, %v2401
    %v2403 = vmul.f32 %v2296, %v213
    %v2405 = vsel %vm383, %v2402, 0
    %2407 = vmatpush.msra.mxu0 0.0
    %2408 = vmatpush.msra.mxu0 0.0
    %2409 = vmatpush.msra.mxu0 0.0
    %2410 = vmatpush.msra.mxu0 0.0
    %2411 = vmatpush.msra.mxu0 0.0
    %2412 = vmatpush.msra.mxu0 0.0
    %2413 = vmatpush.msra.mxu0 0.0
    %2414 = vmatpush.msra.mxu0 0.0
    %2415 = vmatpush.msra.mxu0 0.0
    %2416 = vmatpush.msra.mxu0 0.0
    %2417 = vmatpush.msra.mxu0 0.0
    %2418 = vmatpush.msra.mxu0 0.0
    %2419 = vmatpush.msra.mxu0 0.0
    %2420 = vmatpush.msra.mxu0 0.0
    %2421 = vmatpush.msra.mxu0 0.0
    %2422 = vmatpush.msra.mxu0 %v2403
    %2423 = vmatmul.f32.gmra.mxu0 %v2405
    %v2424 = vpop.f32.mrf.mxu0
    %v2425 = vadd.f32 0.0, %v2424
    %2426 = vdwg.mxu0
    %v2428 = vsel %vm383, %v2353, 0
    %2430 = vmatpush.msra.mxu0 0.0
    %2431 = vmatpush.msra.mxu0 0.0
    %2432 = vmatpush.msra.mxu0 0.0
    %2433 = vmatpush.msra.mxu0 0.0
    %2434 = vmatpush.msra.mxu0 0.0
    %2435 = vmatpush.msra.mxu0 0.0
    %2436 = vmatpush.msra.mxu0 0.0
    %2437 = vmatpush.msra.mxu0 0.0
    %2438 = vmatpush.msra.mxu0 0.0
    %2439 = vmatpush.msra.mxu0 0.0
    %2440 = vmatpush.msra.mxu0 0.0
    %2441 = vmatpush.msra.mxu0 0.0
    %2442 = vmatpush.msra.mxu0 0.0
    %2443 = vmatpush.msra.mxu0 0.0
    %2444 = vmatpush.msra.mxu0 0.0
    %2445 = vmatpush.msra.mxu0 %v2354
    %2446 = vmatmul.f32.gmra.mxu0 %v2428
    %v2447 = vpop.f32.mrf.mxu0
    %v2448 = vadd.f32 %v2425, %v2447
    %2449 = vdwg.mxu0
    %v2450 = vmul.f32 %v2300, %v218
    %v2452 = vsel %vm233, %v2450, 0
    %2454 = vmatpush.xpose.msra.mxu0 0.0
    %2455 = vmatpush.xpose.msra.mxu0 0.0
    %2456 = vmatpush.xpose.msra.mxu0 0.0
    %2457 = vmatpush.xpose.msra.mxu0 0.0
    %2458 = vmatpush.xpose.msra.mxu0 0.0
    %2459 = vmatpush.xpose.msra.mxu0 0.0
    %2460 = vmatpush.xpose.msra.mxu0 0.0
    %2461 = vmatpush.xpose.msra.mxu0 0.0
    %2462 = vmatpush.xpose.msra.mxu0 0.0
    %2463 = vmatpush.xpose.msra.mxu0 0.0
    %2464 = vmatpush.xpose.msra.mxu0 0.0
    %2465 = vmatpush.xpose.msra.mxu0 0.0
    %2466 = vmatpush.xpose.msra.mxu0 0.0
    %2467 = vmatpush.xpose.msra.mxu0 0.0
    %2468 = vmatpush.xpose.msra.mxu0 0.0
    %2469 = vmatpush.xpose.msra.mxu0 %v2308
    %2470 = vmatmul.f32.gmra.mxu0 %v2452
    %v2471 = vpop.f32.mrf.mxu0
    %v2472 = vadd.f32 0.0, %v2471
    %2473 = vdwg.mxu0
    %v2474 = vsel %vm383, %v2472, -inf
    %2475 = vmax.xlane.f32.xlu0 %v2474
    %v2476 = vpop.xlane.xlu0 %2475
    %v2477 = vsub.f32 %v2472, %v2476
    %v2478 = vmul.f32 %v2477, 1.442695
    %v2479 = vpow.pop %v2478
    %v2480 = vsel %vm383, %v2479, 0.0
    %2481 = vadd.xlane.f32.xlu0 %v2480
    %v2482 = vpop.xlane.xlu0 %2481
    %v2483 = vrcp.pop %v2482
    %v2484 = vmul.f32 %v2482, %v2483
    %v2485 = vsub.f32 1.0, %v2484
    %v2486 = vmul.f32 %v2483, %v2485
    %v2487 = vadd.f32 %v2483, %v2486
    %vm2488 = vweird.f32 %v2482
    %vm2489 = vweird.f32 %v2483
    %vm2490 = vmor %vm2488, %vm2489
    %v2491 = vsel %vm2490, %v2483, %v2487
    %v2492 = vand.u32 2147483647, %v2482
    %vm2493 = vcmp.eq.f32.partialorder %v2492, 8.507059e+37
    %v2494 = vand.u32 %v2482, 2147483648
    %v2495 = vor.u32 1.1754944e-38, %v2494
    %v2496 = vsel %vm2493, %v2495, %v2491
    %v2497 = vmul.f32 %v2479, %v2496
    %v2498 = vmul.f32 %v2296, %v218
    %v2500 = vsel %vm383, %v2497, 0
    %2502 = vmatpush.msra.mxu0 0.0
    %2503 = vmatpush.msra.mxu0 0.0
    %2504 = vmatpush.msra.mxu0 0.0
    %2505 = vmatpush.msra.mxu0 0.0
    %2506 = vmatpush.msra.mxu0 0.0
    %2507 = vmatpush.msra.mxu0 0.0
    %2508 = vmatpush.msra.mxu0 0.0
    %2509 = vmatpush.msra.mxu0 0.0
    %2510 = vmatpush.msra.mxu0 0.0
    %2511 = vmatpush.msra.mxu0 0.0
    %2512 = vmatpush.msra.mxu0 0.0
    %2513 = vmatpush.msra.mxu0 0.0
    %2514 = vmatpush.msra.mxu0 0.0
    %2515 = vmatpush.msra.mxu0 0.0
    %2516 = vmatpush.msra.mxu0 0.0
    %2517 = vmatpush.msra.mxu0 %v2498
    %2518 = vmatmul.f32.gmra.mxu0 %v2500
    %v2519 = vpop.f32.mrf.mxu0
    %v2520 = vadd.f32 0.0, %v2519
    %2521 = vdwg.mxu0
    %v2522 = vadd.f32 %v2448, %v2520
    %v2523 = vmul.f32 %v2300, %v223
    %v2525 = vsel %vm233, %v2523, 0
    %2527 = vmatpush.xpose.msra.mxu0 0.0
    %2528 = vmatpush.xpose.msra.mxu0 0.0
    %2529 = vmatpush.xpose.msra.mxu0 0.0
    %2530 = vmatpush.xpose.msra.mxu0 0.0
    %2531 = vmatpush.xpose.msra.mxu0 0.0
    %2532 = vmatpush.xpose.msra.mxu0 0.0
    %2533 = vmatpush.xpose.msra.mxu0 0.0
    %2534 = vmatpush.xpose.msra.mxu0 0.0
    %2535 = vmatpush.xpose.msra.mxu0 0.0
    %2536 = vmatpush.xpose.msra.mxu0 0.0
    %2537 = vmatpush.xpose.msra.mxu0 0.0
    %2538 = vmatpush.xpose.msra.mxu0 0.0
    %2539 = vmatpush.xpose.msra.mxu0 0.0
    %2540 = vmatpush.xpose.msra.mxu0 0.0
    %2541 = vmatpush.xpose.msra.mxu0 0.0
    %2542 = vmatpush.xpose.msra.mxu0 %v2308
    %2543 = vmatmul.f32.gmra.mxu0 %v2525
    %v2544 = vpop.f32.mrf.mxu0
    %v2545 = vadd.f32 0.0, %v2544
    %2546 = vdwg.mxu0
    %v2547 = vsel %vm383, %v2545, -inf
    %2548 = vmax.xlane.f32.xlu0 %v2547
    %v2549 = vpop.xlane.xlu0 %2548
    %v2550 = vsub.f32 %v2545, %v2549
    %v2551 = vmul.f32 %v2550, 1.442695
    %v2552 = vpow.pop %v2551
    %v2553 = vsel %vm383, %v2552, 0.0
    %2554 = vadd.xlane.f32.xlu0 %v2553
    %v2555 = vpop.xlane.xlu0 %2554
    %v2556 = vrcp.pop %v2555
    %v2557 = vmul.f32 %v2555, %v2556
    %v2558 = vsub.f32 1.0, %v2557
    %v2559 = vmul.f32 %v2556, %v2558
    %v2560 = vadd.f32 %v2556, %v2559
    %vm2561 = vweird.f32 %v2555
    %vm2562 = vweird.f32 %v2556
    %vm2563 = vmor %vm2561, %vm2562
    %v2564 = vsel %vm2563, %v2556, %v2560
    %v2565 = vand.u32 2147483647, %v2555
    %vm2566 = vcmp.eq.f32.partialorder %v2565, 8.507059e+37
    %v2567 = vand.u32 %v2555, 2147483648
    %v2568 = vor.u32 1.1754944e-38, %v2567
    %v2569 = vsel %vm2566, %v2568, %v2564
    %v2570 = vmul.f32 %v2552, %v2569
    %v2571 = vmul.f32 %v2296, %v223
    %v2573 = vsel %vm383, %v2570, 0
    %2575 = vmatpush.msra.mxu0 0.0
    %2576 = vmatpush.msra.mxu0 0.0
    %2577 = vmatpush.msra.mxu0 0.0
    %2578 = vmatpush.msra.mxu0 0.0
    %2579 = vmatpush.msra.mxu0 0.0
    %2580 = vmatpush.msra.mxu0 0.0
    %2581 = vmatpush.msra.mxu0 0.0
    %2582 = vmatpush.msra.mxu0 0.0
    %2583 = vmatpush.msra.mxu0 0.0
    %2584 = vmatpush.msra.mxu0 0.0
    %2585 = vmatpush.msra.mxu0 0.0
    %2586 = vmatpush.msra.mxu0 0.0
    %2587 = vmatpush.msra.mxu0 0.0
    %2588 = vmatpush.msra.mxu0 0.0
    %2589 = vmatpush.msra.mxu0 0.0
    %2590 = vmatpush.msra.mxu0 %v2571
    %2591 = vmatmul.f32.gmra.mxu0 %v2573
    %v2592 = vpop.f32.mrf.mxu0
    %v2593 = vadd.f32 0.0, %v2592
    %2594 = vdwg.mxu0
    %v2595 = vadd.f32 %v2522, %v2593
    %v2596 = vmul.f32 %v2284, 0.25
    %v2597 = vmul.f32 %v2596, %v208
    %2599 = vrot.lane.b32.xlu0 %v2284, 64
    %v2600 = vpop.permute.xlu0 %2599
    %v2602 = vsel %vm233, %v2597, 0
    %v2604 = vsel %vm233, %v2600, 0
    %2606 = vmatpush.xpose.msra.mxu0 0.0
    %2607 = vmatpush.xpose.msra.mxu0 0.0
    %2608 = vmatpush.xpose.msra.mxu0 0.0
    %2609 = vmatpush.xpose.msra.mxu0 0.0
    %2610 = vmatpush.xpose.msra.mxu0 0.0
    %2611 = vmatpush.xpose.msra.mxu0 0.0
    %2612 = vmatpush.xpose.msra.mxu0 0.0
    %2613 = vmatpush.xpose.msra.mxu0 0.0
    %2614 = vmatpush.xpose.msra.mxu0 0.0
    %2615 = vmatpush.xpose.msra.mxu0 0.0
    %2616 = vmatpush.xpose.msra.mxu0 0.0
    %2617 = vmatpush.xpose.msra.mxu0 0.0
    %2618 = vmatpush.xpose.msra.mxu0 0.0
    %2619 = vmatpush.xpose.msra.mxu0 0.0
    %2620 = vmatpush.xpose.msra.mxu0 0.0
    %2621 = vmatpush.xpose.msra.mxu0 %v2604
    %2622 = vmatmul.f32.gmra.mxu0 %v2602
    %v2623 = vpop.f32.mrf.mxu0
    %v2624 = vadd.f32 0.0, %v2623
    %2625 = vdwg.mxu0
    %v2626 = vsel %vm383, %v2624, -inf
    %2627 = vmax.xlane.f32.xlu0 %v2626
    %v2628 = vpop.xlane.xlu0 %2627
    %v2629 = vsub.f32 %v2624, %v2628
    %v2630 = vmul.f32 %v2629, 1.442695
    %v2631 = vpow.pop %v2630
    %v2632 = vsel %vm383, %v2631, 0.0
    %2633 = vadd.xlane.f32.xlu0 %v2632
    %v2634 = vpop.xlane.xlu0 %2633
    %v2635 = vrcp.pop %v2634
    %v2636 = vmul.f32 %v2634, %v2635
    %v2637 = vsub.f32 1.0, %v2636
    %v2638 = vmul.f32 %v2635, %v2637
    %v2639 = vadd.f32 %v2635, %v2638
    %vm2640 = vweird.f32 %v2634
    %vm2641 = vweird.f32 %v2635
    %vm2642 = vmor %vm2640, %vm2641
    %v2643 = vsel %vm2642, %v2635, %v2639
    %v2644 = vand.u32 2147483647, %v2634
    %vm2645 = vcmp.eq.f32.partialorder %v2644, 8.507059e+37
    %v2646 = vand.u32 %v2634, 2147483648
    %v2647 = vor.u32 1.1754944e-38, %v2646
    %v2648 = vsel %vm2645, %v2647, %v2643
    %v2649 = vmul.f32 %v2631, %v2648
    %v2650 = vmul.f32 %v2298, %v208
    %v2651 = vmul.f32 %v2596, %v213
    %v2653 = vsel %vm233, %v2651, 0
    %2655 = vmatpush.xpose.msra.mxu0 0.0
    %2656 = vmatpush.xpose.msra.mxu0 0.0
    %2657 = vmatpush.xpose.msra.mxu0 0.0
    %2658 = vmatpush.xpose.msra.mxu0 0.0
    %2659 = vmatpush.xpose.msra.mxu0 0.0
    %2660 = vmatpush.xpose.msra.mxu0 0.0
    %2661 = vmatpush.xpose.msra.mxu0 0.0
    %2662 = vmatpush.xpose.msra.mxu0 0.0
    %2663 = vmatpush.xpose.msra.mxu0 0.0
    %2664 = vmatpush.xpose.msra.mxu0 0.0
    %2665 = vmatpush.xpose.msra.mxu0 0.0
    %2666 = vmatpush.xpose.msra.mxu0 0.0
    %2667 = vmatpush.xpose.msra.mxu0 0.0
    %2668 = vmatpush.xpose.msra.mxu0 0.0
    %2669 = vmatpush.xpose.msra.mxu0 0.0
    %2670 = vmatpush.xpose.msra.mxu0 %v2604
    %2671 = vmatmul.f32.gmra.mxu0 %v2653
    %v2672 = vpop.f32.mrf.mxu0
    %v2673 = vadd.f32 0.0, %v2672
    %2674 = vdwg.mxu0
    %v2675 = vsel %vm383, %v2673, -inf
    %2676 = vmax.xlane.f32.xlu0 %v2675
    %v2677 = vpop.xlane.xlu0 %2676
    %v2678 = vsub.f32 %v2673, %v2677
    %v2679 = vmul.f32 %v2678, 1.442695
    %v2680 = vpow.pop %v2679
    %v2681 = vsel %vm383, %v2680, 0.0
    %2682 = vadd.xlane.f32.xlu0 %v2681
    %v2683 = vpop.xlane.xlu0 %2682
    %v2684 = vrcp.pop %v2683
    %v2685 = vmul.f32 %v2683, %v2684
    %v2686 = vsub.f32 1.0, %v2685
    %v2687 = vmul.f32 %v2684, %v2686
    %v2688 = vadd.f32 %v2684, %v2687
    %vm2689 = vweird.f32 %v2683
    %vm2690 = vweird.f32 %v2684
    %vm2691 = vmor %vm2689, %vm2690
    %v2692 = vsel %vm2691, %v2684, %v2688
    %v2693 = vand.u32 2147483647, %v2683
    %vm2694 = vcmp.eq.f32.partialorder %v2693, 8.507059e+37
    %v2695 = vand.u32 %v2683, 2147483648
    %v2696 = vor.u32 1.1754944e-38, %v2695
    %v2697 = vsel %vm2694, %v2696, %v2692
    %v2698 = vmul.f32 %v2680, %v2697
    %v2699 = vmul.f32 %v2298, %v213
    %v2701 = vsel %vm383, %v2698, 0
    %2703 = vmatpush.msra.mxu0 0.0
    %2704 = vmatpush.msra.mxu0 0.0
    %2705 = vmatpush.msra.mxu0 0.0
    %2706 = vmatpush.msra.mxu0 0.0
    %2707 = vmatpush.msra.mxu0 0.0
    %2708 = vmatpush.msra.mxu0 0.0
    %2709 = vmatpush.msra.mxu0 0.0
    %2710 = vmatpush.msra.mxu0 0.0
    %2711 = vmatpush.msra.mxu0 0.0
    %2712 = vmatpush.msra.mxu0 0.0
    %2713 = vmatpush.msra.mxu0 0.0
    %2714 = vmatpush.msra.mxu0 0.0
    %2715 = vmatpush.msra.mxu0 0.0
    %2716 = vmatpush.msra.mxu0 0.0
    %2717 = vmatpush.msra.mxu0 0.0
    %2718 = vmatpush.msra.mxu0 %v2699
    %2719 = vmatmul.f32.gmra.mxu0 %v2701
    %v2720 = vpop.f32.mrf.mxu0
    %v2721 = vadd.f32 0.0, %v2720
    %2722 = vdwg.mxu0
    %v2724 = vsel %vm383, %v2649, 0
    %2726 = vmatpush.msra.mxu0 0.0
    %2727 = vmatpush.msra.mxu0 0.0
    %2728 = vmatpush.msra.mxu0 0.0
    %2729 = vmatpush.msra.mxu0 0.0
    %2730 = vmatpush.msra.mxu0 0.0
    %2731 = vmatpush.msra.mxu0 0.0
    %2732 = vmatpush.msra.mxu0 0.0
    %2733 = vmatpush.msra.mxu0 0.0
    %2734 = vmatpush.msra.mxu0 0.0
    %2735 = vmatpush.msra.mxu0 0.0
    %2736 = vmatpush.msra.mxu0 0.0
    %2737 = vmatpush.msra.mxu0 0.0
    %2738 = vmatpush.msra.mxu0 0.0
    %2739 = vmatpush.msra.mxu0 0.0
    %2740 = vmatpush.msra.mxu0 0.0
    %2741 = vmatpush.msra.mxu0 %v2650
    %2742 = vmatmul.f32.gmra.mxu0 %v2724
    %v2743 = vpop.f32.mrf.mxu0
    %v2744 = vadd.f32 %v2721, %v2743
    %2745 = vdwg.mxu0
    %v2746 = vmul.f32 %v2596, %v218
    %v2748 = vsel %vm233, %v2746, 0
    %2750 = vmatpush.xpose.msra.mxu0 0.0
    %2751 = vmatpush.xpose.msra.mxu0 0.0
    %2752 = vmatpush.xpose.msra.mxu0 0.0
    %2753 = vmatpush.xpose.msra.mxu0 0.0
    %2754 = vmatpush.xpose.msra.mxu0 0.0
    %2755 = vmatpush.xpose.msra.mxu0 0.0
    %2756 = vmatpush.xpose.msra.mxu0 0.0
    %2757 = vmatpush.xpose.msra.mxu0 0.0
    %2758 = vmatpush.xpose.msra.mxu0 0.0
    %2759 = vmatpush.xpose.msra.mxu0 0.0
    %2760 = vmatpush.xpose.msra.mxu0 0.0
    %2761 = vmatpush.xpose.msra.mxu0 0.0
    %2762 = vmatpush.xpose.msra.mxu0 0.0
    %2763 = vmatpush.xpose.msra.mxu0 0.0
    %2764 = vmatpush.xpose.msra.mxu0 0.0
    %2765 = vmatpush.xpose.msra.mxu0 %v2604
    %2766 = vmatmul.f32.gmra.mxu0 %v2748
    %v2767 = vpop.f32.mrf.mxu0
    %v2768 = vadd.f32 0.0, %v2767
    %2769 = vdwg.mxu0
    %v2770 = vsel %vm383, %v2768, -inf
    %2771 = vmax.xlane.f32.xlu0 %v2770
    %v2772 = vpop.xlane.xlu0 %2771
    %v2773 = vsub.f32 %v2768, %v2772
    %v2774 = vmul.f32 %v2773, 1.442695
    %v2775 = vpow.pop %v2774
    %v2776 = vsel %vm383, %v2775, 0.0
    %2777 = vadd.xlane.f32.xlu0 %v2776
    %v2778 = vpop.xlane.xlu0 %2777
    %v2779 = vrcp.pop %v2778
    %v2780 = vmul.f32 %v2778, %v2779
    %v2781 = vsub.f32 1.0, %v2780
    %v2782 = vmul.f32 %v2779, %v2781
    %v2783 = vadd.f32 %v2779, %v2782
    %vm2784 = vweird.f32 %v2778
    %vm2785 = vweird.f32 %v2779
    %vm2786 = vmor %vm2784, %vm2785
    %v2787 = vsel %vm2786, %v2779, %v2783
    %v2788 = vand.u32 2147483647, %v2778
    %vm2789 = vcmp.eq.f32.partialorder %v2788, 8.507059e+37
    %v2790 = vand.u32 %v2778, 2147483648
    %v2791 = vor.u32 1.1754944e-38, %v2790
    %v2792 = vsel %vm2789, %v2791, %v2787
    %v2793 = vmul.f32 %v2775, %v2792
    %v2794 = vmul.f32 %v2298, %v218
    %v2796 = vsel %vm383, %v2793, 0
    %2798 = vmatpush.msra.mxu0 0.0
    %2799 = vmatpush.msra.mxu0 0.0
    %2800 = vmatpush.msra.mxu0 0.0
    %2801 = vmatpush.msra.mxu0 0.0
    %2802 = vmatpush.msra.mxu0 0.0
    %2803 = vmatpush.msra.mxu0 0.0
    %2804 = vmatpush.msra.mxu0 0.0
    %2805 = vmatpush.msra.mxu0 0.0
    %2806 = vmatpush.msra.mxu0 0.0
    %2807 = vmatpush.msra.mxu0 0.0
    %2808 = vmatpush.msra.mxu0 0.0
    %2809 = vmatpush.msra.mxu0 0.0
    %2810 = vmatpush.msra.mxu0 0.0
    %2811 = vmatpush.msra.mxu0 0.0
    %2812 = vmatpush.msra.mxu0 0.0
    %2813 = vmatpush.msra.mxu0 %v2794
    %2814 = vmatmul.f32.gmra.mxu0 %v2796
    %v2815 = vpop.f32.mrf.mxu0
    %v2816 = vadd.f32 0.0, %v2815
    %2817 = vdwg.mxu0
    %v2818 = vadd.f32 %v2744, %v2816
    %v2819 = vmul.f32 %v2596, %v223
    %v2821 = vsel %vm233, %v2819, 0
    %2823 = vmatpush.xpose.msra.mxu0 0.0
    %2824 = vmatpush.xpose.msra.mxu0 0.0
    %2825 = vmatpush.xpose.msra.mxu0 0.0
    %2826 = vmatpush.xpose.msra.mxu0 0.0
    %2827 = vmatpush.xpose.msra.mxu0 0.0
    %2828 = vmatpush.xpose.msra.mxu0 0.0
    %2829 = vmatpush.xpose.msra.mxu0 0.0
    %2830 = vmatpush.xpose.msra.mxu0 0.0
    %2831 = vmatpush.xpose.msra.mxu0 0.0
    %2832 = vmatpush.xpose.msra.mxu0 0.0
    %2833 = vmatpush.xpose.msra.mxu0 0.0
    %2834 = vmatpush.xpose.msra.mxu0 0.0
    %2835 = vmatpush.xpose.msra.mxu0 0.0
    %2836 = vmatpush.xpose.msra.mxu0 0.0
    %2837 = vmatpush.xpose.msra.mxu0 0.0
    %2838 = vmatpush.xpose.msra.mxu0 %v2604
    %2839 = vmatmul.f32.gmra.mxu0 %v2821
    %v2840 = vpop.f32.mrf.mxu0
    %v2841 = vadd.f32 0.0, %v2840
    %2842 = vdwg.mxu0
    %v2843 = vsel %vm383, %v2841, -inf
    %2844 = vmax.xlane.f32.xlu0 %v2843
    %v2845 = vpop.xlane.xlu0 %2844
    %v2846 = vsub.f32 %v2841, %v2845
    %v2847 = vmul.f32 %v2846, 1.442695
    %v2848 = vpow.pop %v2847
    %v2849 = vsel %vm383, %v2848, 0.0
    %2850 = vadd.xlane.f32.xlu0 %v2849
    %v2851 = vpop.xlane.xlu0 %2850
    %v2852 = vrcp.pop %v2851
    %v2853 = vmul.f32 %v2851, %v2852
    %v2854 = vsub.f32 1.0, %v2853
    %v2855 = vmul.f32 %v2852, %v2854
    %v2856 = vadd.f32 %v2852, %v2855
    %vm2857 = vweird.f32 %v2851
    %vm2858 = vweird.f32 %v2852
    %vm2859 = vmor %vm2857, %vm2858
    %v2860 = vsel %vm2859, %v2852, %v2856
    %v2861 = vand.u32 2147483647, %v2851
    %vm2862 = vcmp.eq.f32.partialorder %v2861, 8.507059e+37
    %v2863 = vand.u32 %v2851, 2147483648
    %v2864 = vor.u32 1.1754944e-38, %v2863
    %v2865 = vsel %vm2862, %v2864, %v2860
    %v2866 = vmul.f32 %v2848, %v2865
    %v2867 = vmul.f32 %v2298, %v223
    %v2869 = vsel %vm383, %v2866, 0
    %2871 = vmatpush.msra.mxu0 0.0
    %2872 = vmatpush.msra.mxu0 0.0
    %2873 = vmatpush.msra.mxu0 0.0
    %2874 = vmatpush.msra.mxu0 0.0
    %2875 = vmatpush.msra.mxu0 0.0
    %2876 = vmatpush.msra.mxu0 0.0
    %2877 = vmatpush.msra.mxu0 0.0
    %2878 = vmatpush.msra.mxu0 0.0
    %2879 = vmatpush.msra.mxu0 0.0
    %2880 = vmatpush.msra.mxu0 0.0
    %2881 = vmatpush.msra.mxu0 0.0
    %2882 = vmatpush.msra.mxu0 0.0
    %2883 = vmatpush.msra.mxu0 0.0
    %2884 = vmatpush.msra.mxu0 0.0
    %2885 = vmatpush.msra.mxu0 0.0
    %2886 = vmatpush.msra.mxu0 %v2867
    %2887 = vmatmul.f32.gmra.mxu0 %v2869
    %v2888 = vpop.f32.mrf.mxu0
    %v2889 = vadd.f32 0.0, %v2888
    %2890 = vdwg.mxu0
    %v2891 = vadd.f32 %v2818, %v2889
    %s2892 = scalar_lea.vmem %s8, 32
    %v2893 = vld [vmem:[%s2892] sm:$0xf]
    %v2894 = vld [vmem:[%s2892 + $0x4] sm:$0xf]
    %v2895 = vld [vmem:[%s2892 + $0x8] sm:$0xf]
    %v2896 = vld [vmem:[%s2892 + $0xc] sm:$0xf]
    %v2897 = vld [vmem:[%s2892 + $0x10] sm:$0xf]
    %v2898 = vld [vmem:[%s2892 + $0x14] sm:$0xf]
    %v2899 = vld [vmem:[%s2892 + $0x18] sm:$0xf]
    %v2900 = vld [vmem:[%s2892 + $0x1c] sm:$0xf]
    %v2901 = vld [vmem:[#allocation7 + $0xc] sm:$0x1]
    %v2902 = vpack.c.bf16 %v2891, %v2595
    %v2903 = vperm.slane %v2901, 0
    %v2912 = vunpack.c.l.b16 %v2893
    %v2913 = vunpack.c.l.b16 %v2894
    %v2914 = vunpack.c.l.b16 %v2895
    %v2915 = vunpack.c.l.b16 %v2896
    %v2916 = vunpack.c.l.b16 %v2897
    %v2917 = vunpack.c.l.b16 %v2898
    %v2918 = vunpack.c.l.b16 %v2899
    %v2919 = vunpack.c.l.b16 %v2900
    %v2920 = vpack.c.b16 %v2913, %v2912
    %v2921 = vpack.c.b16 %v2915, %v2914
    %v2922 = vpack.c.b16 %v2917, %v2916
    %v2923 = vpack.c.b16 %v2919, %v2918
    %v2929 = vsel %vm233, %v2902, 0
    %2931 = vmatpush.bf16.msra.mxu0 0
    %2932 = vmatpush.bf16.msra.mxu0 0
    %2933 = vmatpush.bf16.msra.mxu0 0
    %2934 = vmatpush.bf16.msra.mxu0 0
    %2935 = vmatpush.bf16.msra.mxu0 %v2923
    %2936 = vmatpush.bf16.msra.mxu0 %v2922
    %2937 = vmatpush.bf16.msra.mxu0 %v2921
    %2938 = vmatpush.bf16.msra.mxu0 %v2920
    %2939 = vmatmul.bf16.gmra.mxu0 %v2929
    %v2940 = vpop.f32.mrf.mxu0
    %v2941 = vadd.f32 %v2903, %v2940
    %v2942 = vpop.f32.mrf.mxu0
    %v2943 = vadd.f32 %v2903, %v2942
    %2944 = vdwg.mxu0
    %v2945 = vadd.f32 %v2210, %v2941
    %v2946 = vadd.f32 %v2211, %v2943
    %v2947 = vld [vmem:[#allocation7 + $0xd] sm:$0x1]
    %v2948 = vld [vmem:[#allocation7 + $0xe] sm:$0x1]
    %v2949 = vsel %vm233, %v2945, 0.0
    %2950 = vadd.xlane.f32.xlu0 %v2949
    %v2951 = vpop.xlane.xlu0 %2950
    %v2952 = vsel %vm233, %v2946, 0.0
    %2953 = vadd.xlane.f32.xlu0 %v2952
    %v2954 = vpop.xlane.xlu0 %2953
    %v2955 = vmul.f32 %v2951, %v243
    %v2956 = vmul.f32 %v2954, %v243
    %v2957 = vsub.f32 %v2945, %v2955
    %v2958 = vsub.f32 %v2946, %v2956
    %v2959 = vmul.f32 %v2957, %v2957
    %v2960 = vmul.f32 %v2958, %v2958
    %v2961 = vsel %vm233, %v2959, 0.0
    %2962 = vadd.xlane.f32.xlu0 %v2961
    %v2963 = vpop.xlane.xlu0 %2962
    %v2964 = vsel %vm233, %v2960, 0.0
    %2965 = vadd.xlane.f32.xlu0 %v2964
    %v2966 = vpop.xlane.xlu0 %2965
    %v2967 = vmul.f32 %v2963, %v243
    %v2968 = vmul.f32 %v2966, %v243
    %v2969 = vadd.f32 %v2967, 1e-12
    %v2970 = vadd.f32 %v2968, 1e-12
    %v2971 = vrsqrt.pop %v2969
    %v2972 = vmul.f32 %v2971, %v2969
    %v2973 = vmul.f32 %v2972, %v2971
    %v2974 = vmul.f32 0.5, %v2973
    %v2975 = vsub.f32 1.5, %v2974
    %v2976 = vmul.f32 %v2971, %v2975
    %vm2977 = vweird.f32 %v2969
    %vm2978 = vweird.f32 %v2971
    %vm2979 = vmor %vm2977, %vm2978
    %v2980 = vsel %vm2979, %v2971, %v2976
    %v2981 = vrsqrt.pop %v2970
    %v2982 = vmul.f32 %v2981, %v2970
    %v2983 = vmul.f32 %v2982, %v2981
    %v2984 = vmul.f32 0.5, %v2983
    %v2985 = vsub.f32 1.5, %v2984
    %v2986 = vmul.f32 %v2981, %v2985
    %vm2987 = vweird.f32 %v2970
    %vm2988 = vweird.f32 %v2981
    %vm2989 = vmor %vm2987, %vm2988
    %v2990 = vsel %vm2989, %v2981, %v2986
    %v2991 = vmul.f32 %v2957, %v2980
    %v2992 = vmul.f32 %v2958, %v2990
    %v2993 = vperm.slane %v2947, 0
    %v2994 = vmul.f32 %v2991, %v2993
    %v2995 = vmul.f32 %v2992, %v2993
    %v2996 = vperm.slane %v2948, 0
    %v2997 = vadd.f32 %v2994, %v2996
    %v2998 = vadd.f32 %v2995, %v2996
    %s2999 = scalar_lea.vmem [#allocation13], 32
    %v3000 = vld [vmem:[%s2999] sm:$0xf]
    %v3001 = vld [vmem:[%s2999 + $0x4] sm:$0xf]
    %v3002 = vld [vmem:[%s2999 + $0x8] sm:$0xf]
    %v3003 = vld [vmem:[%s2999 + $0xc] sm:$0xf]
    %v3004 = vld [vmem:[%s2999 + $0x10] sm:$0xf]
    %v3005 = vld [vmem:[%s2999 + $0x14] sm:$0xf]
    %v3006 = vld [vmem:[%s2999 + $0x18] sm:$0xf]
    %v3007 = vld [vmem:[%s2999 + $0x1c] sm:$0xf]
    %v3008 = vld [vmem:[#allocation7 + $0x12] sm:$0x1]
    %v3009 = vpack.c.bf16 %v2998, %v2997
    %v3010 = vperm.slane %v3008, 0
    %v3019 = vunpack.c.l.b16 %v3000
    %v3020 = vunpack.c.l.b16 %v3001
    %v3021 = vunpack.c.l.b16 %v3002
    %v3022 = vunpack.c.l.b16 %v3003
    %v3023 = vunpack.c.l.b16 %v3004
    %v3024 = vunpack.c.l.b16 %v3005
    %v3025 = vunpack.c.l.b16 %v3006
    %v3026 = vunpack.c.l.b16 %v3007
    %v3027 = vpack.c.b16 %v3020, %v3019
    %v3028 = vpack.c.b16 %v3022, %v3021
    %v3029 = vpack.c.b16 %v3024, %v3023
    %v3030 = vpack.c.b16 %v3026, %v3025
    %v3036 = vsel %vm233, %v3009, 0
    %3038 = vmatpush.bf16.msra.mxu0 0
    %3039 = vmatpush.bf16.msra.mxu0 0
    %3040 = vmatpush.bf16.msra.mxu0 0
    %3041 = vmatpush.bf16.msra.mxu0 0
    %3042 = vmatpush.bf16.msra.mxu0 %v3030
    %3043 = vmatpush.bf16.msra.mxu0 %v3029
    %3044 = vmatpush.bf16.msra.mxu0 %v3028
    %3045 = vmatpush.bf16.msra.mxu0 %v3027
    %3046 = vmatmul.bf16.gmra.mxu0 %v3036
    %v3047 = vpop.f32.mrf.mxu0
    %v3048 = vadd.f32 %v3010, %v3047
    %v3049 = vpop.f32.mrf.mxu0
    %v3050 = vadd.f32 %v3010, %v3049
    %3051 = vdwg.mxu0
    %s3052 = scalar_lea.vmem [#allocation14], 16
    %v3053 = vld [vmem:[%s3052] sm:$0xf]
    %v3054 = vld [vmem:[%s3052 + $0x4] sm:$0xf]
    %v3055 = vld [vmem:[%s3052 + $0x8] sm:$0xf]
    %v3056 = vld [vmem:[%s3052 + $0xc] sm:$0xf]
    %v3057 = vld [vmem:[#allocation8 + $0x1] sm:$0x1]
    %v3058 = vperm.slane %v3057, 0
    %v3063 = vunpack.c.l.b16 %v3053
    %v3064 = vunpack.c.l.b16 %v3054
    %v3065 = vunpack.c.l.b16 %v3055
    %v3066 = vunpack.c.l.b16 %v3056
    %v3067 = vpack.c.b16 %v3064, %v3063
    %v3068 = vpack.c.b16 %v3066, %v3065
    %3071 = vmatpush.bf16.msra.mxu0 0
    %3072 = vmatpush.bf16.msra.mxu0 0
    %3073 = vmatpush.bf16.msra.mxu0 0
    %3074 = vmatpush.bf16.msra.mxu0 0
    %3075 = vmatpush.bf16.msra.mxu0 0
    %3076 = vmatpush.bf16.msra.mxu0 0
    %3077 = vmatpush.bf16.msra.mxu0 %v3068
    %3078 = vmatpush.bf16.msra.mxu0 %v3067
    %3079 = vmatmul.bf16.gmra.mxu0 %v1124
    %v3080 = vpop.f32.mrf.mxu0
    %v3081 = vadd.f32 %v3058, %v3080
    %v3082 = vpop.f32.mrf.mxu0
    %v3083 = vadd.f32 %v3058, %v3082
    %3084 = vmatmul.bf16.gmra.mxu0 %v1127
    %v3085 = vpop.f32.mrf.mxu0
    %v3086 = vadd.f32 %v3058, %v3085
    %v3087 = vpop.f32.mrf.mxu0
    %v3088 = vadd.f32 %v3058, %v3087
    %3089 = vdwg.mxu0
    %v3090 = vmul.f32 %v3048, 0.25
    %v3091 = vmul.f32 %v3090, %v208
    %v3093 = vsel %vm233, %v3091, 0
    %v3096 = vsel %vm233, %v3081, 0
    %v3099 = vsel %vm233, %v3083, 0
    %3101 = vmatpush.xpose.msra.mxu0 0.0
    %3102 = vmatpush.xpose.msra.mxu0 0.0
    %3103 = vmatpush.xpose.msra.mxu0 0.0
    %3104 = vmatpush.xpose.msra.mxu0 0.0
    %3105 = vmatpush.xpose.msra.mxu0 0.0
    %3106 = vmatpush.xpose.msra.mxu0 0.0
    %3107 = vmatpush.xpose.msra.mxu0 0.0
    %3108 = vmatpush.xpose.msra.mxu0 0.0
    %3109 = vmatpush.xpose.msra.mxu0 0.0
    %3110 = vmatpush.xpose.msra.mxu0 0.0
    %3111 = vmatpush.xpose.msra.mxu0 0.0
    %3112 = vmatpush.xpose.msra.mxu0 0.0
    %3113 = vmatpush.xpose.msra.mxu0 0.0
    %3114 = vmatpush.xpose.msra.mxu0 0.0
    %3115 = vmatpush.xpose.msra.mxu0 %v3099
    %3116 = vmatpush.xpose.msra.mxu0 %v3096
    %3117 = vmatmul.f32.gmra.mxu0 %v3093
    %v3118 = vpop.f32.mrf.mxu0
    %v3119 = vadd.f32 0.0, %v3118
    %3120 = vdwg.mxu0
    %v3121 = vsel %vm1179, %v3119, -inf
    %3122 = vmax.xlane.f32.xlu0 %v3121
    %v3123 = vpop.xlane.xlu0 %3122
    %v3124 = vsub.f32 %v3119, %v3123
    %v3125 = vmul.f32 %v3124, 1.442695
    %v3126 = vpow.pop %v3125
    %v3127 = vsel %vm1179, %v3126, 0.0
    %3128 = vadd.xlane.f32.xlu0 %v3127
    %v3129 = vpop.xlane.xlu0 %3128
    %v3130 = vrcp.pop %v3129
    %v3131 = vmul.f32 %v3129, %v3130
    %v3132 = vsub.f32 1.0, %v3131
    %v3133 = vmul.f32 %v3130, %v3132
    %v3134 = vadd.f32 %v3130, %v3133
    %vm3135 = vweird.f32 %v3129
    %vm3136 = vweird.f32 %v3130
    %vm3137 = vmor %vm3135, %vm3136
    %v3138 = vsel %vm3137, %v3130, %v3134
    %v3139 = vand.u32 2147483647, %v3129
    %vm3140 = vcmp.eq.f32.partialorder %v3139, 8.507059e+37
    %v3141 = vand.u32 %v3129, 2147483648
    %v3142 = vor.u32 1.1754944e-38, %v3141
    %v3143 = vsel %vm3140, %v3142, %v3138
    %v3144 = vmul.f32 %v3126, %v3143
    %v3145 = vmul.f32 %v3081, %v1206
    %v3146 = vmul.f32 %v3083, %v1206
    %v3147 = vmul.f32 %v3090, %v213
    %v3149 = vsel %vm233, %v3147, 0
    %3151 = vmatpush.xpose.msra.mxu0 0.0
    %3152 = vmatpush.xpose.msra.mxu0 0.0
    %3153 = vmatpush.xpose.msra.mxu0 0.0
    %3154 = vmatpush.xpose.msra.mxu0 0.0
    %3155 = vmatpush.xpose.msra.mxu0 0.0
    %3156 = vmatpush.xpose.msra.mxu0 0.0
    %3157 = vmatpush.xpose.msra.mxu0 0.0
    %3158 = vmatpush.xpose.msra.mxu0 0.0
    %3159 = vmatpush.xpose.msra.mxu0 0.0
    %3160 = vmatpush.xpose.msra.mxu0 0.0
    %3161 = vmatpush.xpose.msra.mxu0 0.0
    %3162 = vmatpush.xpose.msra.mxu0 0.0
    %3163 = vmatpush.xpose.msra.mxu0 0.0
    %3164 = vmatpush.xpose.msra.mxu0 0.0
    %3165 = vmatpush.xpose.msra.mxu0 %v3099
    %3166 = vmatpush.xpose.msra.mxu0 %v3096
    %3167 = vmatmul.f32.gmra.mxu0 %v3149
    %v3168 = vpop.f32.mrf.mxu0
    %v3169 = vadd.f32 0.0, %v3168
    %3170 = vdwg.mxu0
    %v3171 = vsel %vm1179, %v3169, -inf
    %3172 = vmax.xlane.f32.xlu0 %v3171
    %v3173 = vpop.xlane.xlu0 %3172
    %v3174 = vsub.f32 %v3169, %v3173
    %v3175 = vmul.f32 %v3174, 1.442695
    %v3176 = vpow.pop %v3175
    %v3177 = vsel %vm1179, %v3176, 0.0
    %3178 = vadd.xlane.f32.xlu0 %v3177
    %v3179 = vpop.xlane.xlu0 %3178
    %v3180 = vrcp.pop %v3179
    %v3181 = vmul.f32 %v3179, %v3180
    %v3182 = vsub.f32 1.0, %v3181
    %v3183 = vmul.f32 %v3180, %v3182
    %v3184 = vadd.f32 %v3180, %v3183
    %vm3185 = vweird.f32 %v3179
    %vm3186 = vweird.f32 %v3180
    %vm3187 = vmor %vm3185, %vm3186
    %v3188 = vsel %vm3187, %v3180, %v3184
    %v3189 = vand.u32 2147483647, %v3179
    %vm3190 = vcmp.eq.f32.partialorder %v3189, 8.507059e+37
    %v3191 = vand.u32 %v3179, 2147483648
    %v3192 = vor.u32 1.1754944e-38, %v3191
    %v3193 = vsel %vm3190, %v3192, %v3188
    %v3194 = vmul.f32 %v3176, %v3193
    %v3195 = vmul.f32 %v3081, %v1260
    %v3196 = vmul.f32 %v3083, %v1260
    %3199 = vrot.lane.b32.xlu0 %v3195, 64
    %v3200 = vpop.permute.xlu0 %3199
    %3201 = vrot.lane.b32.xlu0 %v3196, 64
    %v3202 = vpop.permute.xlu0 %3201
    %v3206 = vsel %vm1179, %v3194, 0
    %3208 = vmatpush.msra.mxu0 0.0
    %3209 = vmatpush.msra.mxu0 0.0
    %3210 = vmatpush.msra.mxu0 0.0
    %3211 = vmatpush.msra.mxu0 0.0
    %3212 = vmatpush.msra.mxu0 0.0
    %3213 = vmatpush.msra.mxu0 0.0
    %3214 = vmatpush.msra.mxu0 0.0
    %3215 = vmatpush.msra.mxu0 0.0
    %3216 = vmatpush.msra.mxu0 0.0
    %3217 = vmatpush.msra.mxu0 0.0
    %3218 = vmatpush.msra.mxu0 0.0
    %3219 = vmatpush.msra.mxu0 0.0
    %3220 = vmatpush.msra.mxu0 0.0
    %3221 = vmatpush.msra.mxu0 0.0
    %3222 = vmatpush.msra.mxu0 %v3202
    %3223 = vmatpush.msra.mxu0 %v3200
    %3224 = vmatmul.f32.gmra.mxu0 %v3206
    %v3225 = vpop.f32.mrf.mxu0
    %v3226 = vadd.f32 0.0, %v3225
    %3227 = vdwg.mxu0
    %3230 = vrot.lane.b32.xlu0 %v3145, 64
    %v3231 = vpop.permute.xlu0 %3230
    %3232 = vrot.lane.b32.xlu0 %v3146, 64
    %v3233 = vpop.permute.xlu0 %3232
    %v3237 = vsel %vm1179, %v3144, 0
    %3239 = vmatpush.msra.mxu0 0.0
    %3240 = vmatpush.msra.mxu0 0.0
    %3241 = vmatpush.msra.mxu0 0.0
    %3242 = vmatpush.msra.mxu0 0.0
    %3243 = vmatpush.msra.mxu0 0.0
    %3244 = vmatpush.msra.mxu0 0.0
    %3245 = vmatpush.msra.mxu0 0.0
    %3246 = vmatpush.msra.mxu0 0.0
    %3247 = vmatpush.msra.mxu0 0.0
    %3248 = vmatpush.msra.mxu0 0.0
    %3249 = vmatpush.msra.mxu0 0.0
    %3250 = vmatpush.msra.mxu0 0.0
    %3251 = vmatpush.msra.mxu0 0.0
    %3252 = vmatpush.msra.mxu0 0.0
    %3253 = vmatpush.msra.mxu0 %v3233
    %3254 = vmatpush.msra.mxu0 %v3231
    %3255 = vmatmul.f32.gmra.mxu0 %v3237
    %v3256 = vpop.f32.mrf.mxu0
    %v3257 = vadd.f32 %v3226, %v3256
    %3258 = vdwg.mxu0
    %v3259 = vmul.f32 %v3090, %v218
    %v3261 = vsel %vm233, %v3259, 0
    %3263 = vmatpush.xpose.msra.mxu0 0.0
    %3264 = vmatpush.xpose.msra.mxu0 0.0
    %3265 = vmatpush.xpose.msra.mxu0 0.0
    %3266 = vmatpush.xpose.msra.mxu0 0.0
    %3267 = vmatpush.xpose.msra.mxu0 0.0
    %3268 = vmatpush.xpose.msra.mxu0 0.0
    %3269 = vmatpush.xpose.msra.mxu0 0.0
    %3270 = vmatpush.xpose.msra.mxu0 0.0
    %3271 = vmatpush.xpose.msra.mxu0 0.0
    %3272 = vmatpush.xpose.msra.mxu0 0.0
    %3273 = vmatpush.xpose.msra.mxu0 0.0
    %3274 = vmatpush.xpose.msra.mxu0 0.0
    %3275 = vmatpush.xpose.msra.mxu0 0.0
    %3276 = vmatpush.xpose.msra.mxu0 0.0
    %3277 = vmatpush.xpose.msra.mxu0 %v3099
    %3278 = vmatpush.xpose.msra.mxu0 %v3096
    %3279 = vmatmul.f32.gmra.mxu0 %v3261
    %v3280 = vpop.f32.mrf.mxu0
    %v3281 = vadd.f32 0.0, %v3280
    %3282 = vdwg.mxu0
    %v3283 = vsel %vm1179, %v3281, -inf
    %3284 = vmax.xlane.f32.xlu0 %v3283
    %v3285 = vpop.xlane.xlu0 %3284
    %v3286 = vsub.f32 %v3281, %v3285
    %v3287 = vmul.f32 %v3286, 1.442695
    %v3288 = vpow.pop %v3287
    %v3289 = vsel %vm1179, %v3288, 0.0
    %3290 = vadd.xlane.f32.xlu0 %v3289
    %v3291 = vpop.xlane.xlu0 %3290
    %v3292 = vrcp.pop %v3291
    %v3293 = vmul.f32 %v3291, %v3292
    %v3294 = vsub.f32 1.0, %v3293
    %v3295 = vmul.f32 %v3292, %v3294
    %v3296 = vadd.f32 %v3292, %v3295
    %vm3297 = vweird.f32 %v3291
    %vm3298 = vweird.f32 %v3292
    %vm3299 = vmor %vm3297, %vm3298
    %v3300 = vsel %vm3299, %v3292, %v3296
    %v3301 = vand.u32 2147483647, %v3291
    %vm3302 = vcmp.eq.f32.partialorder %v3301, 8.507059e+37
    %v3303 = vand.u32 %v3291, 2147483648
    %v3304 = vor.u32 1.1754944e-38, %v3303
    %v3305 = vsel %vm3302, %v3304, %v3300
    %v3306 = vmul.f32 %v3288, %v3305
    %v3307 = vmul.f32 %v3081, %v1376
    %v3308 = vmul.f32 %v3083, %v1376
    %3311 = vrot.lane.b32.xlu0 %v3307, 64
    %v3312 = vpop.permute.xlu0 %3311
    %3313 = vrot.lane.b32.xlu0 %v3308, 64
    %v3314 = vpop.permute.xlu0 %3313
    %v3318 = vsel %vm1179, %v3306, 0
    %3320 = vmatpush.msra.mxu0 0.0
    %3321 = vmatpush.msra.mxu0 0.0
    %3322 = vmatpush.msra.mxu0 0.0
    %3323 = vmatpush.msra.mxu0 0.0
    %3324 = vmatpush.msra.mxu0 0.0
    %3325 = vmatpush.msra.mxu0 0.0
    %3326 = vmatpush.msra.mxu0 0.0
    %3327 = vmatpush.msra.mxu0 0.0
    %3328 = vmatpush.msra.mxu0 0.0
    %3329 = vmatpush.msra.mxu0 0.0
    %3330 = vmatpush.msra.mxu0 0.0
    %3331 = vmatpush.msra.mxu0 0.0
    %3332 = vmatpush.msra.mxu0 0.0
    %3333 = vmatpush.msra.mxu0 0.0
    %3334 = vmatpush.msra.mxu0 %v3314
    %3335 = vmatpush.msra.mxu0 %v3312
    %3336 = vmatmul.f32.gmra.mxu0 %v3318
    %v3337 = vpop.f32.mrf.mxu0
    %v3338 = vadd.f32 0.0, %v3337
    %3339 = vdwg.mxu0
    %v3340 = vadd.f32 %v3257, %v3338
    %v3341 = vmul.f32 %v3090, %v223
    %v3343 = vsel %vm233, %v3341, 0
    %3345 = vmatpush.xpose.msra.mxu0 0.0
    %3346 = vmatpush.xpose.msra.mxu0 0.0
    %3347 = vmatpush.xpose.msra.mxu0 0.0
    %3348 = vmatpush.xpose.msra.mxu0 0.0
    %3349 = vmatpush.xpose.msra.mxu0 0.0
    %3350 = vmatpush.xpose.msra.mxu0 0.0
    %3351 = vmatpush.xpose.msra.mxu0 0.0
    %3352 = vmatpush.xpose.msra.mxu0 0.0
    %3353 = vmatpush.xpose.msra.mxu0 0.0
    %3354 = vmatpush.xpose.msra.mxu0 0.0
    %3355 = vmatpush.xpose.msra.mxu0 0.0
    %3356 = vmatpush.xpose.msra.mxu0 0.0
    %3357 = vmatpush.xpose.msra.mxu0 0.0
    %3358 = vmatpush.xpose.msra.mxu0 0.0
    %3359 = vmatpush.xpose.msra.mxu0 %v3099
    %3360 = vmatpush.xpose.msra.mxu0 %v3096
    %3361 = vmatmul.f32.gmra.mxu0 %v3343
    %v3362 = vpop.f32.mrf.mxu0
    %v3363 = vadd.f32 0.0, %v3362
    %3364 = vdwg.mxu0
    %v3365 = vsel %vm1179, %v3363, -inf
    %3366 = vmax.xlane.f32.xlu0 %v3365
    %v3367 = vpop.xlane.xlu0 %3366
    %v3368 = vsub.f32 %v3363, %v3367
    %v3369 = vmul.f32 %v3368, 1.442695
    %v3370 = vpow.pop %v3369
    %v3371 = vsel %vm1179, %v3370, 0.0
    %3372 = vadd.xlane.f32.xlu0 %v3371
    %v3373 = vpop.xlane.xlu0 %3372
    %v3374 = vrcp.pop %v3373
    %v3375 = vmul.f32 %v3373, %v3374
    %v3376 = vsub.f32 1.0, %v3375
    %v3377 = vmul.f32 %v3374, %v3376
    %v3378 = vadd.f32 %v3374, %v3377
    %vm3379 = vweird.f32 %v3373
    %vm3380 = vweird.f32 %v3374
    %vm3381 = vmor %vm3379, %vm3380
    %v3382 = vsel %vm3381, %v3374, %v3378
    %v3383 = vand.u32 2147483647, %v3373
    %vm3384 = vcmp.eq.f32.partialorder %v3383, 8.507059e+37
    %v3385 = vand.u32 %v3373, 2147483648
    %v3386 = vor.u32 1.1754944e-38, %v3385
    %v3387 = vsel %vm3384, %v3386, %v3382
    %v3388 = vmul.f32 %v3370, %v3387
    %v3389 = vmul.f32 %v3081, %v1462
    %v3390 = vmul.f32 %v3083, %v1462
    %3393 = vrot.lane.b32.xlu0 %v3389, 64
    %v3394 = vpop.permute.xlu0 %3393
    %3395 = vrot.lane.b32.xlu0 %v3390, 64
    %v3396 = vpop.permute.xlu0 %3395
    %v3400 = vsel %vm1179, %v3388, 0
    %3402 = vmatpush.msra.mxu0 0.0
    %3403 = vmatpush.msra.mxu0 0.0
    %3404 = vmatpush.msra.mxu0 0.0
    %3405 = vmatpush.msra.mxu0 0.0
    %3406 = vmatpush.msra.mxu0 0.0
    %3407 = vmatpush.msra.mxu0 0.0
    %3408 = vmatpush.msra.mxu0 0.0
    %3409 = vmatpush.msra.mxu0 0.0
    %3410 = vmatpush.msra.mxu0 0.0
    %3411 = vmatpush.msra.mxu0 0.0
    %3412 = vmatpush.msra.mxu0 0.0
    %3413 = vmatpush.msra.mxu0 0.0
    %3414 = vmatpush.msra.mxu0 0.0
    %3415 = vmatpush.msra.mxu0 0.0
    %3416 = vmatpush.msra.mxu0 %v3396
    %3417 = vmatpush.msra.mxu0 %v3394
    %3418 = vmatmul.f32.gmra.mxu0 %v3400
    %v3419 = vpop.f32.mrf.mxu0
    %v3420 = vadd.f32 0.0, %v3419
    %3421 = vdwg.mxu0
    %v3422 = vadd.f32 %v3340, %v3420
    %v3423 = vmul.f32 %v3050, 0.25
    %v3424 = vmul.f32 %v3423, %v208
    %v3426 = vsel %vm233, %v3424, 0
    %v3429 = vsel %vm233, %v3086, 0
    %v3432 = vsel %vm233, %v3088, 0
    %3434 = vmatpush.xpose.msra.mxu0 0.0
    %3435 = vmatpush.xpose.msra.mxu0 0.0
    %3436 = vmatpush.xpose.msra.mxu0 0.0
    %3437 = vmatpush.xpose.msra.mxu0 0.0
    %3438 = vmatpush.xpose.msra.mxu0 0.0
    %3439 = vmatpush.xpose.msra.mxu0 0.0
    %3440 = vmatpush.xpose.msra.mxu0 0.0
    %3441 = vmatpush.xpose.msra.mxu0 0.0
    %3442 = vmatpush.xpose.msra.mxu0 0.0
    %3443 = vmatpush.xpose.msra.mxu0 0.0
    %3444 = vmatpush.xpose.msra.mxu0 0.0
    %3445 = vmatpush.xpose.msra.mxu0 0.0
    %3446 = vmatpush.xpose.msra.mxu0 0.0
    %3447 = vmatpush.xpose.msra.mxu0 0.0
    %3448 = vmatpush.xpose.msra.mxu0 %v3432
    %3449 = vmatpush.xpose.msra.mxu0 %v3429
    %3450 = vmatmul.f32.gmra.mxu0 %v3426
    %v3451 = vpop.f32.mrf.mxu0
    %v3452 = vadd.f32 0.0, %v3451
    %3453 = vdwg.mxu0
    %v3454 = vsel %vm1179, %v3452, -inf
    %3455 = vmax.xlane.f32.xlu0 %v3454
    %v3456 = vpop.xlane.xlu0 %3455
    %v3457 = vsub.f32 %v3452, %v3456
    %v3458 = vmul.f32 %v3457, 1.442695
    %v3459 = vpow.pop %v3458
    %v3460 = vsel %vm1179, %v3459, 0.0
    %3461 = vadd.xlane.f32.xlu0 %v3460
    %v3462 = vpop.xlane.xlu0 %3461
    %v3463 = vrcp.pop %v3462
    %v3464 = vmul.f32 %v3462, %v3463
    %v3465 = vsub.f32 1.0, %v3464
    %v3466 = vmul.f32 %v3463, %v3465
    %v3467 = vadd.f32 %v3463, %v3466
    %vm3468 = vweird.f32 %v3462
    %vm3469 = vweird.f32 %v3463
    %vm3470 = vmor %vm3468, %vm3469
    %v3471 = vsel %vm3470, %v3463, %v3467
    %v3472 = vand.u32 2147483647, %v3462
    %vm3473 = vcmp.eq.f32.partialorder %v3472, 8.507059e+37
    %v3474 = vand.u32 %v3462, 2147483648
    %v3475 = vor.u32 1.1754944e-38, %v3474
    %v3476 = vsel %vm3473, %v3475, %v3471
    %v3477 = vmul.f32 %v3459, %v3476
    %v3478 = vmul.f32 %v3086, %v1206
    %v3479 = vmul.f32 %v3088, %v1206
    %v3480 = vmul.f32 %v3423, %v213
    %v3482 = vsel %vm233, %v3480, 0
    %3484 = vmatpush.xpose.msra.mxu0 0.0
    %3485 = vmatpush.xpose.msra.mxu0 0.0
    %3486 = vmatpush.xpose.msra.mxu0 0.0
    %3487 = vmatpush.xpose.msra.mxu0 0.0
    %3488 = vmatpush.xpose.msra.mxu0 0.0
    %3489 = vmatpush.xpose.msra.mxu0 0.0
    %3490 = vmatpush.xpose.msra.mxu0 0.0
    %3491 = vmatpush.xpose.msra.mxu0 0.0
    %3492 = vmatpush.xpose.msra.mxu0 0.0
    %3493 = vmatpush.xpose.msra.mxu0 0.0
    %3494 = vmatpush.xpose.msra.mxu0 0.0
    %3495 = vmatpush.xpose.msra.mxu0 0.0
    %3496 = vmatpush.xpose.msra.mxu0 0.0
    %3497 = vmatpush.xpose.msra.mxu0 0.0
    %3498 = vmatpush.xpose.msra.mxu0 %v3432
    %3499 = vmatpush.xpose.msra.mxu0 %v3429
    %3500 = vmatmul.f32.gmra.mxu0 %v3482
    %v3501 = vpop.f32.mrf.mxu0
    %v3502 = vadd.f32 0.0, %v3501
    %3503 = vdwg.mxu0
    %v3504 = vsel %vm1179, %v3502, -inf
    %3505 = vmax.xlane.f32.xlu0 %v3504
    %v3506 = vpop.xlane.xlu0 %3505
    %v3507 = vsub.f32 %v3502, %v3506
    %v3508 = vmul.f32 %v3507, 1.442695
    %v3509 = vpow.pop %v3508
    %v3510 = vsel %vm1179, %v3509, 0.0
    %3511 = vadd.xlane.f32.xlu0 %v3510
    %v3512 = vpop.xlane.xlu0 %3511
    %v3513 = vrcp.pop %v3512
    %v3514 = vmul.f32 %v3512, %v3513
    %v3515 = vsub.f32 1.0, %v3514
    %v3516 = vmul.f32 %v3513, %v3515
    %v3517 = vadd.f32 %v3513, %v3516
    %vm3518 = vweird.f32 %v3512
    %vm3519 = vweird.f32 %v3513
    %vm3520 = vmor %vm3518, %vm3519
    %v3521 = vsel %vm3520, %v3513, %v3517
    %v3522 = vand.u32 2147483647, %v3512
    %vm3523 = vcmp.eq.f32.partialorder %v3522, 8.507059e+37
    %v3524 = vand.u32 %v3512, 2147483648
    %v3525 = vor.u32 1.1754944e-38, %v3524
    %v3526 = vsel %vm3523, %v3525, %v3521
    %v3527 = vmul.f32 %v3509, %v3526
    %v3528 = vmul.f32 %v3086, %v1260
    %v3529 = vmul.f32 %v3088, %v1260
    %3532 = vrot.lane.b32.xlu0 %v3528, 64
    %v3533 = vpop.permute.xlu0 %3532
    %3534 = vrot.lane.b32.xlu0 %v3529, 64
    %v3535 = vpop.permute.xlu0 %3534
    %v3539 = vsel %vm1179, %v3527, 0
    %3541 = vmatpush.msra.mxu0 0.0
    %3542 = vmatpush.msra.mxu0 0.0
    %3543 = vmatpush.msra.mxu0 0.0
    %3544 = vmatpush.msra.mxu0 0.0
    %3545 = vmatpush.msra.mxu0 0.0
    %3546 = vmatpush.msra.mxu0 0.0
    %3547 = vmatpush.msra.mxu0 0.0
    %3548 = vmatpush.msra.mxu0 0.0
    %3549 = vmatpush.msra.mxu0 0.0
    %3550 = vmatpush.msra.mxu0 0.0
    %3551 = vmatpush.msra.mxu0 0.0
    %3552 = vmatpush.msra.mxu0 0.0
    %3553 = vmatpush.msra.mxu0 0.0
    %3554 = vmatpush.msra.mxu0 0.0
    %3555 = vmatpush.msra.mxu0 %v3535
    %3556 = vmatpush.msra.mxu0 %v3533
    %3557 = vmatmul.f32.gmra.mxu0 %v3539
    %v3558 = vpop.f32.mrf.mxu0
    %v3559 = vadd.f32 0.0, %v3558
    %3560 = vdwg.mxu0
    %3563 = vrot.lane.b32.xlu0 %v3478, 64
    %v3564 = vpop.permute.xlu0 %3563
    %3565 = vrot.lane.b32.xlu0 %v3479, 64
    %v3566 = vpop.permute.xlu0 %3565
    %v3570 = vsel %vm1179, %v3477, 0
    %3572 = vmatpush.msra.mxu0 0.0
    %3573 = vmatpush.msra.mxu0 0.0
    %3574 = vmatpush.msra.mxu0 0.0
    %3575 = vmatpush.msra.mxu0 0.0
    %3576 = vmatpush.msra.mxu0 0.0
    %3577 = vmatpush.msra.mxu0 0.0
    %3578 = vmatpush.msra.mxu0 0.0
    %3579 = vmatpush.msra.mxu0 0.0
    %3580 = vmatpush.msra.mxu0 0.0
    %3581 = vmatpush.msra.mxu0 0.0
    %3582 = vmatpush.msra.mxu0 0.0
    %3583 = vmatpush.msra.mxu0 0.0
    %3584 = vmatpush.msra.mxu0 0.0
    %3585 = vmatpush.msra.mxu0 0.0
    %3586 = vmatpush.msra.mxu0 %v3566
    %3587 = vmatpush.msra.mxu0 %v3564
    %3588 = vmatmul.f32.gmra.mxu0 %v3570
    %v3589 = vpop.f32.mrf.mxu0
    %v3590 = vadd.f32 %v3559, %v3589
    %3591 = vdwg.mxu0
    %v3592 = vmul.f32 %v3423, %v218
    %v3594 = vsel %vm233, %v3592, 0
    %3596 = vmatpush.xpose.msra.mxu0 0.0
    %3597 = vmatpush.xpose.msra.mxu0 0.0
    %3598 = vmatpush.xpose.msra.mxu0 0.0
    %3599 = vmatpush.xpose.msra.mxu0 0.0
    %3600 = vmatpush.xpose.msra.mxu0 0.0
    %3601 = vmatpush.xpose.msra.mxu0 0.0
    %3602 = vmatpush.xpose.msra.mxu0 0.0
    %3603 = vmatpush.xpose.msra.mxu0 0.0
    %3604 = vmatpush.xpose.msra.mxu0 0.0
    %3605 = vmatpush.xpose.msra.mxu0 0.0
    %3606 = vmatpush.xpose.msra.mxu0 0.0
    %3607 = vmatpush.xpose.msra.mxu0 0.0
    %3608 = vmatpush.xpose.msra.mxu0 0.0
    %3609 = vmatpush.xpose.msra.mxu0 0.0
    %3610 = vmatpush.xpose.msra.mxu0 %v3432
    %3611 = vmatpush.xpose.msra.mxu0 %v3429
    %3612 = vmatmul.f32.gmra.mxu0 %v3594
    %v3613 = vpop.f32.mrf.mxu0
    %v3614 = vadd.f32 0.0, %v3613
    %3615 = vdwg.mxu0
    %v3616 = vsel %vm1179, %v3614, -inf
    %3617 = vmax.xlane.f32.xlu0 %v3616
    %v3618 = vpop.xlane.xlu0 %3617
    %v3619 = vsub.f32 %v3614, %v3618
    %v3620 = vmul.f32 %v3619, 1.442695
    %v3621 = vpow.pop %v3620
    %v3622 = vsel %vm1179, %v3621, 0.0
    %3623 = vadd.xlane.f32.xlu0 %v3622
    %v3624 = vpop.xlane.xlu0 %3623
    %v3625 = vrcp.pop %v3624
    %v3626 = vmul.f32 %v3624, %v3625
    %v3627 = vsub.f32 1.0, %v3626
    %v3628 = vmul.f32 %v3625, %v3627
    %v3629 = vadd.f32 %v3625, %v3628
    %vm3630 = vweird.f32 %v3624
    %vm3631 = vweird.f32 %v3625
    %vm3632 = vmor %vm3630, %vm3631
    %v3633 = vsel %vm3632, %v3625, %v3629
    %v3634 = vand.u32 2147483647, %v3624
    %vm3635 = vcmp.eq.f32.partialorder %v3634, 8.507059e+37
    %v3636 = vand.u32 %v3624, 2147483648
    %v3637 = vor.u32 1.1754944e-38, %v3636
    %v3638 = vsel %vm3635, %v3637, %v3633
    %v3639 = vmul.f32 %v3621, %v3638
    %v3640 = vmul.f32 %v3086, %v1376
    %v3641 = vmul.f32 %v3088, %v1376
    %3644 = vrot.lane.b32.xlu0 %v3640, 64
    %v3645 = vpop.permute.xlu0 %3644
    %3646 = vrot.lane.b32.xlu0 %v3641, 64
    %v3647 = vpop.permute.xlu0 %3646
    %v3651 = vsel %vm1179, %v3639, 0
    %3653 = vmatpush.msra.mxu0 0.0
    %3654 = vmatpush.msra.mxu0 0.0
    %3655 = vmatpush.msra.mxu0 0.0
    %3656 = vmatpush.msra.mxu0 0.0
    %3657 = vmatpush.msra.mxu0 0.0
    %3658 = vmatpush.msra.mxu0 0.0
    %3659 = vmatpush.msra.mxu0 0.0
    %3660 = vmatpush.msra.mxu0 0.0
    %3661 = vmatpush.msra.mxu0 0.0
    %3662 = vmatpush.msra.mxu0 0.0
    %3663 = vmatpush.msra.mxu0 0.0
    %3664 = vmatpush.msra.mxu0 0.0
    %3665 = vmatpush.msra.mxu0 0.0
    %3666 = vmatpush.msra.mxu0 0.0
    %3667 = vmatpush.msra.mxu0 %v3647
    %3668 = vmatpush.msra.mxu0 %v3645
    %3669 = vmatmul.f32.gmra.mxu0 %v3651
    %v3670 = vpop.f32.mrf.mxu0
    %v3671 = vadd.f32 0.0, %v3670
    %3672 = vdwg.mxu0
    %v3673 = vadd.f32 %v3590, %v3671
    %v3674 = vmul.f32 %v3423, %v223
    %v3676 = vsel %vm233, %v3674, 0
    %3678 = vmatpush.xpose.msra.mxu0 0.0
    %3679 = vmatpush.xpose.msra.mxu0 0.0
    %3680 = vmatpush.xpose.msra.mxu0 0.0
    %3681 = vmatpush.xpose.msra.mxu0 0.0
    %3682 = vmatpush.xpose.msra.mxu0 0.0
    %3683 = vmatpush.xpose.msra.mxu0 0.0
    %3684 = vmatpush.xpose.msra.mxu0 0.0
    %3685 = vmatpush.xpose.msra.mxu0 0.0
    %3686 = vmatpush.xpose.msra.mxu0 0.0
    %3687 = vmatpush.xpose.msra.mxu0 0.0
    %3688 = vmatpush.xpose.msra.mxu0 0.0
    %3689 = vmatpush.xpose.msra.mxu0 0.0
    %3690 = vmatpush.xpose.msra.mxu0 0.0
    %3691 = vmatpush.xpose.msra.mxu0 0.0
    %3692 = vmatpush.xpose.msra.mxu0 %v3432
    %3693 = vmatpush.xpose.msra.mxu0 %v3429
    %3694 = vmatmul.f32.gmra.mxu0 %v3676
    %v3695 = vpop.f32.mrf.mxu0
    %v3696 = vadd.f32 0.0, %v3695
    %3697 = vdwg.mxu0
    %v3698 = vsel %vm1179, %v3696, -inf
    %3699 = vmax.xlane.f32.xlu0 %v3698
    %v3700 = vpop.xlane.xlu0 %3699
    %v3701 = vsub.f32 %v3696, %v3700
    %v3702 = vmul.f32 %v3701, 1.442695
    %v3703 = vpow.pop %v3702
    %v3704 = vsel %vm1179, %v3703, 0.0
    %3705 = vadd.xlane.f32.xlu0 %v3704
    %v3706 = vpop.xlane.xlu0 %3705
    %v3707 = vrcp.pop %v3706
    %v3708 = vmul.f32 %v3706, %v3707
    %v3709 = vsub.f32 1.0, %v3708
    %v3710 = vmul.f32 %v3707, %v3709
    %v3711 = vadd.f32 %v3707, %v3710
    %vm3712 = vweird.f32 %v3706
    %vm3713 = vweird.f32 %v3707
    %vm3714 = vmor %vm3712, %vm3713
    %v3715 = vsel %vm3714, %v3707, %v3711
    %v3716 = vand.u32 2147483647, %v3706
    %vm3717 = vcmp.eq.f32.partialorder %v3716, 8.507059e+37
    %v3718 = vand.u32 %v3706, 2147483648
    %v3719 = vor.u32 1.1754944e-38, %v3718
    %v3720 = vsel %vm3717, %v3719, %v3715
    %v3721 = vmul.f32 %v3703, %v3720
    %v3722 = vmul.f32 %v3086, %v1462
    %v3723 = vmul.f32 %v3088, %v1462
    %3726 = vrot.lane.b32.xlu0 %v3722, 64
    %v3727 = vpop.permute.xlu0 %3726
    %3728 = vrot.lane.b32.xlu0 %v3723, 64
    %v3729 = vpop.permute.xlu0 %3728
    %v3733 = vsel %vm1179, %v3721, 0
    %3735 = vmatpush.msra.mxu0 0.0
    %3736 = vmatpush.msra.mxu0 0.0
    %3737 = vmatpush.msra.mxu0 0.0
    %3738 = vmatpush.msra.mxu0 0.0
    %3739 = vmatpush.msra.mxu0 0.0
    %3740 = vmatpush.msra.mxu0 0.0
    %3741 = vmatpush.msra.mxu0 0.0
    %3742 = vmatpush.msra.mxu0 0.0
    %3743 = vmatpush.msra.mxu0 0.0
    %3744 = vmatpush.msra.mxu0 0.0
    %3745 = vmatpush.msra.mxu0 0.0
    %3746 = vmatpush.msra.mxu0 0.0
    %3747 = vmatpush.msra.mxu0 0.0
    %3748 = vmatpush.msra.mxu0 0.0
    %3749 = vmatpush.msra.mxu0 %v3729
    %3750 = vmatpush.msra.mxu0 %v3727
    %3751 = vmatmul.f32.gmra.mxu0 %v3733
    %v3752 = vpop.f32.mrf.mxu0
    %v3753 = vadd.f32 0.0, %v3752
    %3754 = vdwg.mxu0
    %v3755 = vadd.f32 %v3673, %v3753
    %s3756 = scalar_lea.vmem [#allocation16], 32
    %v3757 = vld [vmem:[%s3756] sm:$0xf]
    %v3758 = vld [vmem:[%s3756 + $0x4] sm:$0xf]
    %v3759 = vld [vmem:[%s3756 + $0x8] sm:$0xf]
    %v3760 = vld [vmem:[%s3756 + $0xc] sm:$0xf]
    %v3761 = vld [vmem:[%s3756 + $0x10] sm:$0xf]
    %v3762 = vld [vmem:[%s3756 + $0x14] sm:$0xf]
    %v3763 = vld [vmem:[%s3756 + $0x18] sm:$0xf]
    %v3764 = vld [vmem:[%s3756 + $0x1c] sm:$0xf]
    %v3765 = vld [vmem:[#allocation7 + $0x13] sm:$0x1]
    %v3766 = vpack.c.bf16 %v3755, %v3422
    %v3767 = vperm.slane %v3765, 0
    %v3776 = vunpack.c.l.b16 %v3757
    %v3777 = vunpack.c.l.b16 %v3758
    %v3778 = vunpack.c.l.b16 %v3759
    %v3779 = vunpack.c.l.b16 %v3760
    %v3780 = vunpack.c.l.b16 %v3761
    %v3781 = vunpack.c.l.b16 %v3762
    %v3782 = vunpack.c.l.b16 %v3763
    %v3783 = vunpack.c.l.b16 %v3764
    %v3784 = vpack.c.b16 %v3777, %v3776
    %v3785 = vpack.c.b16 %v3779, %v3778
    %v3786 = vpack.c.b16 %v3781, %v3780
    %v3787 = vpack.c.b16 %v3783, %v3782
    %v3793 = vsel %vm233, %v3766, 0
    %3795 = vmatpush.bf16.msra.mxu0 0
    %3796 = vmatpush.bf16.msra.mxu0 0
    %3797 = vmatpush.bf16.msra.mxu0 0
    %3798 = vmatpush.bf16.msra.mxu0 0
    %3799 = vmatpush.bf16.msra.mxu0 %v3787
    %3800 = vmatpush.bf16.msra.mxu0 %v3786
    %3801 = vmatpush.bf16.msra.mxu0 %v3785
    %3802 = vmatpush.bf16.msra.mxu0 %v3784
    %3803 = vmatmul.bf16.gmra.mxu0 %v3793
    %v3804 = vpop.f32.mrf.mxu0
    %v3805 = vadd.f32 %v3767, %v3804
    %v3806 = vpop.f32.mrf.mxu0
    %v3807 = vadd.f32 %v3767, %v3806
    %3808 = vdwg.mxu0
    %v3809 = vadd.f32 %v2997, %v3805
    %v3810 = vadd.f32 %v2998, %v3807
    %v3811 = vld [vmem:[#allocation7 + $0x14] sm:$0x1]
    %v3812 = vld [vmem:[#allocation7 + $0x15] sm:$0x1]
    %v3813 = vsel %vm233, %v3809, 0.0
    %3814 = vadd.xlane.f32.xlu0 %v3813
    %v3815 = vpop.xlane.xlu0 %3814
    %v3816 = vsel %vm233, %v3810, 0.0
    %3817 = vadd.xlane.f32.xlu0 %v3816
    %v3818 = vpop.xlane.xlu0 %3817
    %v3819 = vmul.f32 %v3815, %v243
    %v3820 = vmul.f32 %v3818, %v243
    %v3821 = vsub.f32 %v3809, %v3819
    %v3822 = vsub.f32 %v3810, %v3820
    %v3823 = vmul.f32 %v3821, %v3821
    %v3824 = vmul.f32 %v3822, %v3822
    %v3825 = vsel %vm233, %v3823, 0.0
    %3826 = vadd.xlane.f32.xlu0 %v3825
    %v3827 = vpop.xlane.xlu0 %3826
    %v3828 = vsel %vm233, %v3824, 0.0
    %3829 = vadd.xlane.f32.xlu0 %v3828
    %v3830 = vpop.xlane.xlu0 %3829
    %v3831 = vmul.f32 %v3827, %v243
    %v3832 = vmul.f32 %v3830, %v243
    %v3833 = vadd.f32 %v3831, 1e-12
    %v3834 = vadd.f32 %v3832, 1e-12
    %v3835 = vrsqrt.pop %v3833
    %v3836 = vmul.f32 %v3835, %v3833
    %v3837 = vmul.f32 %v3836, %v3835
    %v3838 = vmul.f32 0.5, %v3837
    %v3839 = vsub.f32 1.5, %v3838
    %v3840 = vmul.f32 %v3835, %v3839
    %vm3841 = vweird.f32 %v3833
    %vm3842 = vweird.f32 %v3835
    %vm3843 = vmor %vm3841, %vm3842
    %v3844 = vsel %vm3843, %v3835, %v3840
    %v3845 = vrsqrt.pop %v3834
    %v3846 = vmul.f32 %v3845, %v3834
    %v3847 = vmul.f32 %v3846, %v3845
    %v3848 = vmul.f32 0.5, %v3847
    %v3849 = vsub.f32 1.5, %v3848
    %v3850 = vmul.f32 %v3845, %v3849
    %vm3851 = vweird.f32 %v3834
    %vm3852 = vweird.f32 %v3845
    %vm3853 = vmor %vm3851, %vm3852
    %v3854 = vsel %vm3853, %v3845, %v3850
    %v3855 = vmul.f32 %v3821, %v3844
    %v3856 = vmul.f32 %v3822, %v3854
    %v3857 = vperm.slane %v3811, 0
    %v3858 = vmul.f32 %v3855, %v3857
    %v3859 = vmul.f32 %v3856, %v3857
    %v3860 = vperm.slane %v3812, 0
    %v3861 = vadd.f32 %v3858, %v3860
    %v3862 = vadd.f32 %v3859, %v3860
    %s3863 = scalar_lea.vmem [#allocation11], 32
    %v3864 = vld [vmem:[%s3863] sm:$0xf]
    %v3865 = vld [vmem:[%s3863 + $0x4] sm:$0xf]
    %v3866 = vld [vmem:[%s3863 + $0x8] sm:$0xf]
    %v3867 = vld [vmem:[%s3863 + $0xc] sm:$0xf]
    %v3868 = vld [vmem:[%s3863 + $0x10] sm:$0xf]
    %v3869 = vld [vmem:[%s3863 + $0x14] sm:$0xf]
    %v3870 = vld [vmem:[%s3863 + $0x18] sm:$0xf]
    %v3871 = vld [vmem:[%s3863 + $0x1c] sm:$0xf]
    %v3872 = vld [vmem:[%s4 + $0x1] sm:$0x1]
    %v3873 = vpack.c.bf16 %v3862, %v3861
    %v3874 = vperm.slane %v3872, 0
    %v3883 = vunpack.c.l.b16 %v3864
    %v3884 = vunpack.c.l.b16 %v3865
    %v3885 = vunpack.c.l.b16 %v3866
    %v3886 = vunpack.c.l.b16 %v3867
    %v3887 = vunpack.c.l.b16 %v3868
    %v3888 = vunpack.c.l.b16 %v3869
    %v3889 = vunpack.c.l.b16 %v3870
    %v3890 = vunpack.c.l.b16 %v3871
    %v3891 = vpack.c.b16 %v3884, %v3883
    %v3892 = vpack.c.b16 %v3886, %v3885
    %v3893 = vpack.c.b16 %v3888, %v3887
    %v3894 = vpack.c.b16 %v3890, %v3889
    %v3900 = vsel %vm233, %v3873, 0
    %3902 = vmatpush.bf16.msra.mxu0 0
    %3903 = vmatpush.bf16.msra.mxu0 0
    %3904 = vmatpush.bf16.msra.mxu0 0
    %3905 = vmatpush.bf16.msra.mxu0 0
    %3906 = vmatpush.bf16.msra.mxu0 %v3894
    %3907 = vmatpush.bf16.msra.mxu0 %v3893
    %3908 = vmatpush.bf16.msra.mxu0 %v3892
    %3909 = vmatpush.bf16.msra.mxu0 %v3891
    %3910 = vmatmul.bf16.gmra.mxu0 %v3900
    %v3911 = vpop.f32.mrf.mxu0
    %v3912 = vadd.f32 %v3874, %v3911
    %v3913 = vpop.f32.mrf.mxu0
    %v3914 = vadd.f32 %v3874, %v3913
    %3915 = vdwg.mxu0
    %v3916 = vmul.f32 %v3912, 0.5
    %v3917 = vmul.f32 %v3914, 0.5
    %v3918 = vmul.f32 %v3912, 0.70710677
    %v3919 = vmul.f32 %v3914, 0.70710677
    %v3920 = vmul.f32 %v3918, %v3918
    %v3921 = vmin.f32 16.0, %v3920
    %v3922 = vmul.f32 %v3921, 2.1237322e-06
    %v3923 = vadd.f32 %v3922, 0.00028619796
    %v3924 = vmul.f32 %v3921, %v3923
    %v3925 = vadd.f32 %v3924, 0.0036580483
    %v3926 = vmul.f32 %v3921, %v3925
    %v3927 = vadd.f32 %v3926, 0.05243302
    %v3928 = vmul.f32 %v3921, %v3927
    %v3929 = vadd.f32 %v3928, 0.18741608
    %v3930 = vmul.f32 %v3921, %v3929
    %v3931 = vadd.f32 %v3930, 1.1283791
    %v3932 = vmul.f32 %v3918, %v3931
    %v3933 = vmul.f32 %v3921, 3.8918573e-05
    %v3934 = vadd.f32 %v3933, 0.001143296
    %v3935 = vmul.f32 %v3921, %v3934
    %v3936 = vadd.f32 %v3935, 0.014752088
    %v3937 = vmul.f32 %v3921, %v3936
    %v3938 = vadd.f32 %v3937, 0.112945676
    %v3939 = vmul.f32 %v3921, %v3938
    %v3940 = vadd.f32 %v3939, 0.4994258
    %v3941 = vmul.f32 %v3921, %v3940
    %v3942 = vadd.f32 %v3941, 1.0
    %v3943 = vrcp.pop %v3942
    %v3944 = vmul.f32 %v3942, %v3943
    %v3945 = vsub.f32 1.0, %v3944
    %v3946 = vmul.f32 %v3943, %v3945
    %v3947 = vadd.f32 %v3943, %v3946
    %vm3948 = vweird.f32 %v3942
    %vm3949 = vweird.f32 %v3943
    %vm3950 = vmor %vm3948, %vm3949
    %v3951 = vsel %vm3950, %v3943, %v3947
    %v3952 = vand.u32 2147483647, %v3942
    %vm3953 = vcmp.eq.f32.partialorder %v3952, 8.507059e+37
    %v3954 = vand.u32 %v3942, 2147483648
    %v3955 = vor.u32 1.1754944e-38, %v3954
    %v3956 = vsel %vm3953, %v3955, %v3951
    %v3957 = vmul.f32 %v3932, %v3956
    %v3958 = vmin.f32 %v3957, 1.0
    %v3959 = vmax.f32 %v3958, -1.0
    %v3960 = vmul.f32 %v3919, %v3919
    %v3961 = vmin.f32 16.0, %v3960
    %v3962 = vmul.f32 %v3961, 2.1237322e-06
    %v3963 = vadd.f32 %v3962, 0.00028619796
    %v3964 = vmul.f32 %v3961, %v3963
    %v3965 = vadd.f32 %v3964, 0.0036580483
    %v3966 = vmul.f32 %v3961, %v3965
    %v3967 = vadd.f32 %v3966, 0.05243302
    %v3968 = vmul.f32 %v3961, %v3967
    %v3969 = vadd.f32 %v3968, 0.18741608
    %v3970 = vmul.f32 %v3961, %v3969
    %v3971 = vadd.f32 %v3970, 1.1283791
    %v3972 = vmul.f32 %v3919, %v3971
    %v3973 = vmul.f32 %v3961, 3.8918573e-05
    %v3974 = vadd.f32 %v3973, 0.001143296
    %v3975 = vmul.f32 %v3961, %v3974
    %v3976 = vadd.f32 %v3975, 0.014752088
    %v3977 = vmul.f32 %v3961, %v3976
    %v3978 = vadd.f32 %v3977, 0.112945676
    %v3979 = vmul.f32 %v3961, %v3978
    %v3980 = vadd.f32 %v3979, 0.4994258
    %v3981 = vmul.f32 %v3961, %v3980
    %v3982 = vadd.f32 %v3981, 1.0
    %v3983 = vrcp.pop %v3982
    %v3984 = vmul.f32 %v3982, %v3983
    %v3985 = vsub.f32 1.0, %v3984
    %v3986 = vmul.f32 %v3983, %v3985
    %v3987 = vadd.f32 %v3983, %v3986
    %vm3988 = vweird.f32 %v3982
    %vm3989 = vweird.f32 %v3983
    %vm3990 = vmor %vm3988, %vm3989
    %v3991 = vsel %vm3990, %v3983, %v3987
    %v3992 = vand.u32 2147483647, %v3982
    %vm3993 = vcmp.eq.f32.partialorder %v3992, 8.507059e+37
    %v3994 = vand.u32 %v3982, 2147483648
    %v3995 = vor.u32 1.1754944e-38, %v3994
    %v3996 = vsel %vm3993, %v3995, %v3991
    %v3997 = vmul.f32 %v3972, %v3996
    %v3998 = vmin.f32 %v3997, 1.0
    %v3999 = vmax.f32 %v3998, -1.0
    %v4000 = vadd.f32 %v3959, 1.0
    %v4001 = vadd.f32 %v3999, 1.0
    %v4002 = vmul.f32 %v3916, %v4000
    %v4003 = vmul.f32 %v3917, %v4001
    %s4004 = scalar_lea.vmem %s10, 64
    %v4005 = vld [vmem:[%s4004] sm:$0xf]
    %v4006 = vld [vmem:[%s4004 + $0x4] sm:$0xf]
    %v4007 = vld [vmem:[%s4004 + $0x8] sm:$0xf]
    %v4008 = vld [vmem:[%s4004 + $0xc] sm:$0xf]
    %v4009 = vld [vmem:[%s4004 + $0x10] sm:$0xf]
    %v4010 = vld [vmem:[%s4004 + $0x14] sm:$0xf]
    %v4011 = vld [vmem:[%s4004 + $0x18] sm:$0xf]
    %v4012 = vld [vmem:[%s4004 + $0x1c] sm:$0xf]
    %v4013 = vld [vmem:[%s4004 + $0x20] sm:$0xf]
    %v4014 = vld [vmem:[%s4004 + $0x24] sm:$0xf]
    %v4015 = vld [vmem:[%s4004 + $0x28] sm:$0xf]
    %v4016 = vld [vmem:[%s4004 + $0x2c] sm:$0xf]
    %v4017 = vld [vmem:[%s4004 + $0x30] sm:$0xf]
    %v4018 = vld [vmem:[%s4004 + $0x34] sm:$0xf]
    %v4019 = vld [vmem:[%s4004 + $0x38] sm:$0xf]
    %v4020 = vld [vmem:[%s4004 + $0x3c] sm:$0xf]
    %v4021 = vld [vmem:[#allocation7 + $0xf] sm:$0x1]
    %v4022 = vpack.c.bf16 %v4003, %v4002
    %v4023 = vperm.slane %v4021, 0
    %v4040 = vunpack.c.l.b16 %v4005
    %v4041 = vunpack.c.l.b16 %v4006
    %v4042 = vunpack.c.l.b16 %v4007
    %v4043 = vunpack.c.l.b16 %v4008
    %v4044 = vunpack.c.l.b16 %v4009
    %v4045 = vunpack.c.l.b16 %v4010
    %v4046 = vunpack.c.l.b16 %v4011
    %v4047 = vunpack.c.l.b16 %v4012
    %v4048 = vunpack.c.l.b16 %v4013
    %v4049 = vunpack.c.l.b16 %v4014
    %v4050 = vunpack.c.l.b16 %v4015
    %v4051 = vunpack.c.l.b16 %v4016
    %v4052 = vunpack.c.l.b16 %v4017
    %v4053 = vunpack.c.l.b16 %v4018
    %v4054 = vunpack.c.l.b16 %v4019
    %v4055 = vunpack.c.l.b16 %v4020
    %v4056 = vpack.c.b16 %v4041, %v4040
    %v4057 = vpack.c.b16 %v4043, %v4042
    %v4058 = vpack.c.b16 %v4045, %v4044
    %v4059 = vpack.c.b16 %v4047, %v4046
    %v4060 = vpack.c.b16 %v4049, %v4048
    %v4061 = vpack.c.b16 %v4051, %v4050
    %v4062 = vpack.c.b16 %v4053, %v4052
    %v4063 = vpack.c.b16 %v4055, %v4054
    %4072 = vmatpush.bf16.msra.mxu0 %v4063
    %4073 = vmatpush.bf16.msra.mxu0 %v4062
    %4074 = vmatpush.bf16.msra.mxu0 %v4061
    %4075 = vmatpush.bf16.msra.mxu0 %v4060
    %4076 = vmatpush.bf16.msra.mxu0 %v4059
    %4077 = vmatpush.bf16.msra.mxu0 %v4058
    %4078 = vmatpush.bf16.msra.mxu0 %v4057
    %4079 = vmatpush.bf16.msra.mxu0 %v4056
    %4080 = vmatmul.bf16.gmra.mxu0 %v4022
    %v4081 = vpop.f32.mrf.mxu0
    %v4082 = vadd.f32 %v4023, %v4081
    %v4083 = vpop.f32.mrf.mxu0
    %v4084 = vadd.f32 %v4023, %v4083
    %4085 = vdwg.mxu0
    %v4086 = vadd.f32 %v3861, %v4082
    %v4087 = vadd.f32 %v3862, %v4084
    %v4088 = vld [vmem:[#allocation7 + $0x10] sm:$0x1]
    %v4089 = vld [vmem:[#allocation7 + $0x11] sm:$0x1]
    %v4090 = vsel %vm233, %v4086, 0.0
    %4091 = vadd.xlane.f32.xlu0 %v4090
    %v4092 = vpop.xlane.xlu0 %4091
    %v4093 = vsel %vm233, %v4087, 0.0
    %4094 = vadd.xlane.f32.xlu0 %v4093
    %v4095 = vpop.xlane.xlu0 %4094
    %v4096 = vmul.f32 %v4092, %v243
    %v4097 = vmul.f32 %v4095, %v243
    %v4098 = vsub.f32 %v4086, %v4096
    %v4099 = vsub.f32 %v4087, %v4097
    %v4100 = vmul.f32 %v4098, %v4098
    %v4101 = vmul.f32 %v4099, %v4099
    %v4102 = vsel %vm233, %v4100, 0.0
    %4103 = vadd.xlane.f32.xlu0 %v4102
    %v4104 = vpop.xlane.xlu0 %4103
    %v4105 = vsel %vm233, %v4101, 0.0
    %4106 = vadd.xlane.f32.xlu0 %v4105
    %v4107 = vpop.xlane.xlu0 %4106
    %v4108 = vmul.f32 %v4104, %v243
    %v4109 = vmul.f32 %v4107, %v243
    %v4110 = vadd.f32 %v4108, 1e-12
    %v4111 = vadd.f32 %v4109, 1e-12
    %v4112 = vrsqrt.pop %v4110
    %v4113 = vmul.f32 %v4112, %v4110
    %v4114 = vmul.f32 %v4113, %v4112
    %v4115 = vmul.f32 0.5, %v4114
    %v4116 = vsub.f32 1.5, %v4115
    %v4117 = vmul.f32 %v4112, %v4116
    %vm4118 = vweird.f32 %v4110
    %vm4119 = vweird.f32 %v4112
    %vm4120 = vmor %vm4118, %vm4119
    %v4121 = vsel %vm4120, %v4112, %v4117
    %v4122 = vrsqrt.pop %v4111
    %v4123 = vmul.f32 %v4122, %v4111
    %v4124 = vmul.f32 %v4123, %v4122
    %v4125 = vmul.f32 0.5, %v4124
    %v4126 = vsub.f32 1.5, %v4125
    %v4127 = vmul.f32 %v4122, %v4126
    %vm4128 = vweird.f32 %v4111
    %vm4129 = vweird.f32 %v4122
    %vm4130 = vmor %vm4128, %vm4129
    %v4131 = vsel %vm4130, %v4122, %v4127
    %v4132 = vmul.f32 %v4098, %v4121
    %v4133 = vmul.f32 %v4099, %v4131
    %v4134 = vperm.slane %v4088, 0
    %v4135 = vmul.f32 %v4132, %v4134
    %v4136 = vmul.f32 %v4133, %v4134
    %v4137 = vperm.slane %v4089, 0
    %v4138 = vadd.f32 %v4135, %v4137
    %v4139 = vadd.f32 %v4136, %v4137
    %v4140 = vld [vmem:[#allocation17] sm:$0xf]
    %v4141 = vld [vmem:[#allocation17 + $0x4] sm:$0xf]
    %v4142 = vld [vmem:[#allocation17 + $0x8] sm:$0xf]
    %v4143 = vld [vmem:[#allocation17 + $0xc] sm:$0xf]
    %v4144 = vld [vmem:[#allocation17 + $0x10] sm:$0xf]
    %v4145 = vld [vmem:[#allocation17 + $0x14] sm:$0xf]
    %v4146 = vld [vmem:[#allocation17 + $0x18] sm:$0xf]
    %v4147 = vld [vmem:[#allocation17 + $0x1c] sm:$0xf]
    %v4148 = vld [vmem:[#allocation10] sm:$0x1]
    %v4149 = vpack.c.bf16 %v4139, %v4138
    %v4151 = vperm.slane %v4148, 0
    %v4161 = vunpack.c.l.b16 %v4140
    %v4162 = vunpack.c.l.b16 %v4141
    %v4163 = vunpack.c.l.b16 %v4142
    %v4164 = vunpack.c.l.b16 %v4143
    %v4165 = vunpack.c.l.b16 %v4144
    %v4166 = vunpack.c.l.b16 %v4145
    %v4167 = vunpack.c.l.b16 %v4146
    %v4168 = vunpack.c.l.b16 %v4147
    %v4169 = vpack.c.b16 %v4162, %v4161
    %v4170 = vpack.c.b16 %v4164, %v4163
    %v4171 = vpack.c.b16 %v4166, %v4165
    %v4172 = vpack.c.b16 %v4168, %v4167
    %v4178 = vsel %vm233, %v4149, 0
    %4180 = vmatpush.bf16.msra.mxu0 0
    %4181 = vmatpush.bf16.msra.mxu0 0
    %4182 = vmatpush.bf16.msra.mxu0 0
    %4183 = vmatpush.bf16.msra.mxu0 0
    %4184 = vmatpush.bf16.msra.mxu0 %v4172
    %4185 = vmatpush.bf16.msra.mxu0 %v4171
    %4186 = vmatpush.bf16.msra.mxu0 %v4170
    %4187 = vmatpush.bf16.msra.mxu0 %v4169
    %4188 = vmatmul.bf16.gmra.mxu0 %v4178
    %v4189 = vpop.f32.mrf.mxu0
    %v4190 = vadd.f32 %v4151, %v4189
    %v4191 = vpop.f32.mrf.mxu0
    %v4192 = vadd.f32 %v4151, %v4191
    %4193 = vdwg.mxu0
    %vm4194 = vcmask 785408
    %4195 = vst.msk [vmem:[#allocation19] sm:$0xff] %vm4194, %v4190
    %4196 = vst.msk [vmem:[#allocation19 + $0x8] sm:$0xff] %vm4194, %v4192
    // Predicated region
    $region102: #{tpu_custom_call.1} parent=1 // pred_check
      _
    $region103: #{tpu_custom_call.1} parent=1 // pred_check_branch
      %4198 = sbr.rel (0) target = $region105
    $region104: #{tpu_custom_call.1} parent=1 // pred_region
      %4200 = vsyncadd [#allocation4], 0
      %s4201 = sshll.u32 [#allocation19], 4
      %s4202 = int_to_ptr.vmem [resolvable:$true] %s4201
      %s4203 = sshll.u32 %s15, 4
      %s4204 = int_to_ptr.hbm [resolvable:$true] %s4203
      %4209 = dma.vmem_to_hbm [thread:$0]  %s4202, 256, %s4204, [#allocation4], 128, 128, 8
    $region105: #{tpu_custom_call.1} parent=1 // pred_fallthru
      _
    // Predicated region
    $region106: #{tpu_custom_call.1} parent=1 // pred_check
      _
    $region107: #{tpu_custom_call.1} parent=1 // pred_check_branch
      %4211 = sbr.rel (0) target = $region109
    $region108: #{tpu_custom_call.1} parent=1 // pred_region
      %4213 = dma.done [#allocation4], 256
    $region109: #{tpu_custom_call.1} parent=1 // pred_fallthru
      _
    %4214 = vsyncpa [#allocation3], 1
    %4215 = vsyncpa [#allocation6], 1
    %4216 = vsyncpa [#allocation9], 1
    %4217 = vsyncpa [#allocation12], 1
    %4218 = vsyncpa [#allocation15], 1
    %4219 = vsyncpa [#allocation18], 1
    %4220 = vsyncpa [#allocation4], 1

</llo_original>
